<compile_context>
chip_gen: v7x
topology: tpu7x:2x2x1
jax: 0.10.0
libtpu: 0.0.40
codegen_flags: <defaults>
</compile_context>

<pallas_src>
import functools

import jax
import jax.numpy as jnp
from jax.experimental import pallas as pl
from jax.experimental.pallas import tpu as pltpu

C_PAD = 128  # internal lane/sublane-dense channel width


# ---------------------------------------------------------------------------
# Parameter construction (deterministic, PyTorch-Conv1d-style uniform init).
# Raw layout: w (K, Cin, Cout), b (Cout,)
# ---------------------------------------------------------------------------
def _conv_init(key, k, cin, cout):
    kw, kb = jax.random.split(key)
    bound = 1.0 / float(cin * k) ** 0.5
    w = jax.random.uniform(kw, (k, cin, cout), jnp.float32, -bound, bound)
    b = jax.random.uniform(kb, (cout,), jnp.float32, -bound, bound)
    return w, b


def init_homi_decoder_params(key, in_channels, out_channels,
                             block_out_channels, layers_per_block):
    params = {}
    key, k = jax.random.split(key)
    params['conv_in'] = _conv_init(k, 3, in_channels, block_out_channels[-1])

    rev = list(reversed(block_out_channels))
    up_blocks = []
    output_channel = rev[0]
    for i in range(len(block_out_channels)):
        prev_out = output_channel
        output_channel = rev[i]
        is_final = i == len(block_out_channels) - 1
        layers = []
        cin = prev_out
        for _ in range(layers_per_block):
            key, k1, k2, k3 = jax.random.split(key, 4)
            layer = {}
            layer['w1'], layer['b1'] = _conv_init(k1, 3, cin, output_channel)
            layer['w2'], layer['b2'] = _conv_init(k2, 1, output_channel,
                                                  output_channel)
            if cin != output_channel:
                layer['ws'], layer['bs'] = _conv_init(k3, 1, cin,
                                                      output_channel)
            layers.append(layer)
            cin = output_channel
        blk = {'layers': layers}
        if not is_final:
            key, k = jax.random.split(key)
            blk['upsample'] = _conv_init(k, 3, output_channel, output_channel)
        up_blocks.append(blk)
    params['up_blocks'] = up_blocks

    key, k = jax.random.split(key)
    params['conv_out'] = _conv_init(k, 3, block_out_channels[0], out_channels)
    return params


# ---------------------------------------------------------------------------
# One-time weight packing for the channels-on-sublanes kernel layout:
#   per-tap weight  WT_k[co, ci] = w[k, ci, co], padded to (C_PAD, C_PAD),
#   k=3 convs stacked as (3*n3, C_PAD, C_PAD), k=1 convs as (n1, C_PAD, C_PAD)
#   (bf16 for the MXU); biases as dense f32 columns (C_PAD, n).
# Returns (packed pytree, static plan of python ints describing the network).
# ---------------------------------------------------------------------------
def pack_params(params, *, c_pad=C_PAD, matmul_dtype=jnp.bfloat16):
    w3_list, b3_list, w1_list, b1_list = [], [], [], []

    def _packed_w(w):
        k, cin, cout = w.shape
        if cin > c_pad or cout > c_pad:
            raise ValueError("channel count exceeds C_PAD lane packing")
        wt = jnp.transpose(w, (0, 2, 1))                     # (K, Cout, Cin)
        return jnp.pad(wt, ((0, 0), (0, c_pad - cout), (0, c_pad - cin)))

    def _packed_b(b):
        return jnp.pad(b, (0, c_pad - b.shape[0]))           # (c_pad,)

    def add3(wb):
        w, b = wb
        w3_list.append(_packed_w(w))                         # (3, c_pad, c_pad)
        b3_list.append(_packed_b(b))
        return len(b3_list) - 1

    def add1(wb):
        w, b = wb
        w1_list.append(_packed_w(w)[0])                      # (c_pad, c_pad)
        b1_list.append(_packed_b(b))
        return len(b1_list) - 1

    plan = {'conv_in': add3(params['conv_in'])}
    blocks = []
    for blk in params['up_blocks']:
        layers = []
        for lp in blk['layers']:
            i3 = add3((lp['w1'], lp['b1']))
            i1 = add1((lp['w2'], lp['b2']))
            ish = add1((lp['ws'], lp['bs'])) if 'ws' in lp else None
            layers.append((i3, i1, ish))
        iup = add3(blk['upsample']) if 'upsample' in blk else None
        blocks.append((layers, iup))
    plan['blocks'] = blocks
    plan['conv_out'] = add3(params['conv_out'])
    plan['c_out'] = int(params['conv_out'][1].shape[0])

    w3 = jnp.concatenate(w3_list, axis=0)                    # (3*n3, c_pad, c_pad)
    b3 = jnp.stack(b3_list, axis=1)                          # (c_pad, n3)
    if w1_list:
        w1 = jnp.stack(w1_list, axis=0)                      # (n1, c_pad, c_pad)
        b1 = jnp.stack(b1_list, axis=1)                      # (c_pad, n1)
    else:                                                    # keep ref shapes valid
        w1 = jnp.zeros((1, c_pad, c_pad), jnp.float32)
        b1 = jnp.zeros((c_pad, 1), jnp.float32)

    packed = {'w3': w3.astype(matmul_dtype), 'b3': b3,
              'w1': w1.astype(matmul_dtype), 'b1': b1}
    return packed, plan


# ---------------------------------------------------------------------------
# Fused decoder kernel: one grid step == `bt` batch elements, whole network.
# Activation layout inside the kernel: (C_PAD, bt*L) f32 — channels on
# sublanes, positions (batch-major, length-minor) on lanes.
# ---------------------------------------------------------------------------
def _build_kernel(plan, dilation, c_pad, c_in_pad, bt, matmul_dtype):

    def kernel(x_ref, w3_ref, b3_ref, w1_ref, b1_ref, o_ref):
        b3_all = b3_ref[...]                                 # (c_pad, n3) f32
        b1_all = b1_ref[...]                                 # (c_pad, n1) f32

        mask_cache = {}

        def edge_masks(lc, dil):
            # Zero the taps that would leak across batch boundaries inside the
            # flattened (bt*lc) lane axis.  Built once per length (hoisted).
            key = (lc, dil)
            if key not in mask_cache:
                m = bt * lc
                pos = jax.lax.broadcasted_iota(jnp.int32, (c_pad, m), 1)
                r = jax.lax.rem(pos, lc)
                mask_cache[key] = (r >= dil, r < (lc - dil))
            return mask_cache[key]

        def conv3(x, idx, dil):
            # x: (c_pad, m) f32.  'same' conv = 3 accumulated K=128 matmuls on
            # lane-slices of ONE bf16 pre-padded buffer (cast once, no im2col).
            # NOTE: on v5e/v6e (MRF result path) a single K=384 contraction of
            # the three taps is an alternative; split taps kept here (MRB on
            # v7x accumulates them in place for free).
            m = x.shape[1]
            lc = m // bt
            x_bf = x.astype(matmul_dtype)                    # cast ONCE
            zpad = jnp.zeros((c_pad, dil), matmul_dtype)
            xp = jnp.concatenate([zpad, x_bf, zpad], axis=1)  # (c_pad, m+2*dil)
            if bt > 1:
                mlo, mhi = edge_masks(lc, dil)
            acc = None
            for k in range(3):
                tap = xp[:, k * dil:k * dil + m]             # tap[:,p]=x[:,p+(k-1)*dil]
                if bt > 1 and k == 0:
                    tap = jnp.where(mlo, tap, jnp.zeros_like(tap))
                if bt > 1 and k == 2:
                    tap = jnp.where(mhi, tap, jnp.zeros_like(tap))
                part = jnp.dot(w3_ref[3 * idx + k], tap,
                               preferred_element_type=jnp.float32)
                acc = part if acc is None else acc + part
            return acc + b3_all[:, idx:idx + 1]              # (c_pad, m) f32

        def conv1(x, idx):
            acc = jnp.dot(w1_ref[idx], x.astype(matmul_dtype),
                          preferred_element_type=jnp.float32)
            return acc + b1_all[:, idx:idx + 1]

        def relu(v):
            return jnp.maximum(v, 0.0)

        # Zero-extend the real input channels to 128 sublanes in VMEM
        # (sublane-aligned concat; the 32x-padded array never touches HBM).
        x = x_ref[...]                                       # (c_in_pad, bt*L) f32
        if c_in_pad < c_pad:
            x = jnp.concatenate(
                [x, jnp.zeros((c_pad - c_in_pad, x.shape[1]), jnp.float32)],
                axis=0)

        x = conv3(x, plan['conv_in'], 1)                     # conv_in

        # mid_block: layers_mid_block=0 -> nn.Identity()
        for layers, iup in plan['blocks']:                   # up_blocks
            for i3, i1, ish in layers:                       # HoMiBlock1D unit
                h = conv3(relu(x), i3, dilation)
                if ish is not None:                          # 1x1 channel shortcut
                    x = conv1(x, ish)
                x = x + conv1(relu(h), i1)
            if iup is not None:                              # nearest-2x + conv
                # TODO(synk): phase-split transposed-conv form avoids the 2x
                # intermediate copy (matters for v7x's 64 MiB VMEM).
                x = jnp.repeat(x, 2, axis=1)
                x = conv3(x, iup, 1)

        # conv_norm_out: norm_type=None -> identity
        # TODO(synk): plug GroupNorm / SpatialNorm here if norm_type is set.
        # conv_act (relu) fused into conv_out.
        x = conv3(relu(x), plan['conv_out'], 1)

        o_ref[...] = x                                       # (c_pad, bt*L_out)

    return kernel


# ---------------------------------------------------------------------------
# Forward wrapper: one pallas_call for the whole decoder.
# ---------------------------------------------------------------------------
def homi_decoder_forward(packed, sample_ncl, *, plan, dilation=1,
                         c_pad=C_PAD, batch_tile=None):
    B, c_in, L = sample_ncl.shape
    if c_in > c_pad:
        raise ValueError("in_channels > C_PAD not supported by lane packing")

    n_up = sum(1 for _, iup in plan['blocks'] if iup is not None)
    L_out = L * (2 ** n_up)

    if batch_tile is None:
        batch_tile = B if B <= 8 else max(
            d for d in range(1, 9) if B % d == 0)
    bt = int(batch_tile)
    assert B % bt == 0, (B, bt)
    nb = B // bt
    m_in, m_out = bt * L, bt * L_out

    # Pad input channels only to the next sublane multiple (8) — ~2x the real
    # input bytes instead of a 32x host-side 128-lane pad.
    c_in_pad = min(c_pad, ((c_in + 7) // 8) * 8)
    x = sample_ncl
    if c_in_pad != c_in:
        x = jnp.pad(x, ((0, 0), (0, c_in_pad - c_in), (0, 0)))
    # (B, c, L) -> (nb, c, bt*L): tiny reshuffle of the un-padded-width data.
    x = x.reshape(nb, bt, c_in_pad, L).transpose(0, 2, 1, 3)
    x = x.reshape(nb, c_in_pad, m_in)

    w3, b3, w1, b1 = packed['w3'], packed['b3'], packed['w1'], packed['b1']
    kernel = _build_kernel(plan, dilation, c_pad, c_in_pad, bt, w3.dtype)

    # Explicit scoped-VMEM budget (v5e's default scoped limit is only 16 MiB).
    est = (2 * 2 * (w3.size + w1.size)                 # bf16 weights, 2 buffers
           + 8 * (c_pad * 128 * 4)                     # bias stacks (lane padded)
           + 2 * 4 * (c_in_pad * m_in + c_pad * m_out)  # I/O blocks, 2 buffers
           + 16 * 4 * c_pad * max(m_in, m_out))        # activation working set
    vmem_limit = int(min(max(2 * est, 32 * 2 ** 20), 64 * 2 ** 20))

    out_p = pl.pallas_call(
        kernel,
        out_shape=jax.ShapeDtypeStruct((nb, c_pad, m_out), jnp.float32),
        grid=(nb,),
        in_specs=[
            pl.BlockSpec((None, c_in_pad, m_in), lambda g: (g, 0, 0)),  # x
            pl.BlockSpec(w3.shape, lambda g: (0, 0, 0)),  # k=3 weight stack
            pl.BlockSpec(b3.shape, lambda g: (0, 0)),     # k=3 bias columns
            pl.BlockSpec(w1.shape, lambda g: (0, 0, 0)),  # k=1 weight stack
            pl.BlockSpec(b1.shape, lambda g: (0, 0)),     # k=1 bias columns
        ],
        out_specs=pl.BlockSpec((None, c_pad, m_out), lambda g: (g, 0, 0)),
        compiler_params=pltpu.CompilerParams(
            dimension_semantics=("parallel",),           # batch tiles over TCs
            vmem_limit_bytes=vmem_limit),
    )(x, w3, b3, w1, b1)

    # Only c_out of the 128 padded channel rows are touched on the way out.
    c_out = plan['c_out']
    out = out_p[:, :c_out, :].reshape(nb, c_out, bt, L_out)
    return jnp.transpose(out, (0, 2, 1, 3)).reshape(B, c_out, L_out)


# ---------------------------------------------------------------------------
# Pure-JAX reference (mirrors the kernel's bf16-weight / f32-accumulate math).
# ---------------------------------------------------------------------------
def homi_decoder_reference(params, sample_ncl, *, dilation=1,
                           matmul_dtype=jnp.bfloat16):
    def conv(x, w, b, dil):
        # x: (B, L, Cin) f32; w: (K, Cin, Cout); 'same' zero padding.
        K = w.shape[0]
        p = dil * (K // 2)
        xp = jnp.pad(x, ((0, 0), (p, p), (0, 0)))
        out = None
        for k in range(K):
            xs = xp[:, k * dil:k * dil + x.shape[1], :]
            t = jnp.einsum('blc,cd->bld', xs.astype(matmul_dtype),
                           w[k].astype(matmul_dtype),
                           preferred_element_type=jnp.float32)
            out = t if out is None else out + t
        return out + b

    relu = jax.nn.relu
    x = jnp.transpose(sample_ncl, (0, 2, 1))
    w, b = params['conv_in']
    x = conv(x, w, b, 1)
    for blk in params['up_blocks']:
        for lp in blk['layers']:
            h = conv(relu(x), lp['w1'], lp['b1'], dilation)
            if 'ws' in lp:
                x = conv(x, lp['ws'], lp['bs'], 1)
            x = x + conv(relu(h), lp['w2'], lp['b2'], 1)
        if 'upsample' in blk:
            x = jnp.repeat(x, 2, axis=1)
            w, b = blk['upsample']
            x = conv(x, w, b, 1)
    w, b = params['conv_out']
    x = conv(relu(x), w, b, 1)
    return jnp.transpose(x, (0, 2, 1))


# ---------------------------------------------------------------------------
if __name__ == "__main__":
    key = jax.random.PRNGKey(0)
    k_params, k_x = jax.random.split(key)

    B, C_IN, C_OUT, L = 2, 4, 4, 16
    BLOCK_OUT_CHANNELS = (32,)
    LAYERS_PER_BLOCK = 3

    params = init_homi_decoder_params(
        k_params, C_IN, C_OUT, BLOCK_OUT_CHANNELS, LAYERS_PER_BLOCK)
    packed, plan = pack_params(params)          # one-time pad/pack (bf16 MXU)

    sample = jax.random.normal(k_x, (B, C_IN, L), jnp.float32)

    fwd = jax.jit(functools.partial(homi_decoder_forward, plan=plan,
                                    dilation=1))
    out = fwd(packed, sample)
    jax.block_until_ready(out)

    assert out.shape == (B, C_OUT, L), out.shape
    assert out.dtype == jnp.float32

    ref = homi_decoder_reference(params, sample, dilation=1)
    err = float(jnp.max(jnp.abs(out - ref)))
    assert err < 1e-2, f"kernel vs reference mismatch: max|err|={err}"

    print("KERNEL_OK")
</pallas_src>

<mosaic_0001>
module attributes {stable_mosaic.version = 11 : i64} {
  func.func @kernel(%arg0: i32, %arg1: memref<1x8x32xf32, #tpu.memory_space<vmem>>, %arg2: memref<15x128x128xbf16, #tpu.memory_space<vmem>>, %arg3: memref<128x5xf32, #tpu.memory_space<vmem>>, %arg4: memref<3x128x128xbf16, #tpu.memory_space<vmem>>, %arg5: memref<128x3xf32, #tpu.memory_space<vmem>>, %arg6: memref<1x128x32xf32, #tpu.memory_space<vmem>>) attributes {dimension_semantics = [#tpu.dimension_semantics<parallel>], iteration_bounds = array<i64: 1>, scalar_prefetch = 0 : i64, scratch_operands = 0 : i64, tpu.core_type = #tpu.core_type<tc>, window_params = [{transform_indices = @transform_0, window_bounds = array<i64: 1, 8, 32>}, {pipeline_mode = #tpu.pipeline_mode<synchronous>, transform_indices = @transform_1, window_bounds = array<i64: 15, 128, 128>}, {pipeline_mode = #tpu.pipeline_mode<synchronous>, transform_indices = @transform_2, window_bounds = array<i64: 128, 5>}, {pipeline_mode = #tpu.pipeline_mode<synchronous>, transform_indices = @transform_3, window_bounds = array<i64: 3, 128, 128>}, {pipeline_mode = #tpu.pipeline_mode<synchronous>, transform_indices = @transform_4, window_bounds = array<i64: 128, 3>}, {transform_indices = @transform_5, window_bounds = array<i64: 1, 128, 32>}]} {
    %c0 = arith.constant 0 : index
    %c0_0 = arith.constant 0 : index
    %0 = vector.load %arg3[%c0, %c0_0] : memref<128x5xf32, #tpu.memory_space<vmem>>, vector<128x5xf32>
    %c0_1 = arith.constant 0 : index
    %c0_2 = arith.constant 0 : index
    %1 = vector.load %arg5[%c0_1, %c0_2] : memref<128x3xf32, #tpu.memory_space<vmem>>, vector<128x3xf32>
    %c0_3 = arith.constant 0 : index
    %c0_4 = arith.constant 0 : index
    %c0_5 = arith.constant 0 : index
    %2 = vector.load %arg1[%c0_3, %c0_4, %c0_5] : memref<1x8x32xf32, #tpu.memory_space<vmem>>, vector<1x8x32xf32>
    %3 = vector.shape_cast %2 : vector<1x8x32xf32> to vector<8x32xf32>
    %cst = arith.constant 0.000000e+00 : f32
    %4 = vector.broadcast %cst : f32 to vector<120x32xf32>
    %5 = tpu.concatenate %3, %4 in 0 : vector<8x32xf32>, vector<120x32xf32> -> vector<128x32xf32>
    %6 = arith.truncf %5 : vector<128x32xf32> to vector<128x32xbf16>
    %cst_6 = arith.constant 0.000000e+00 : bf16
    %7 = vector.broadcast %cst_6 : bf16 to vector<128x1xbf16>
    %8 = tpu.concatenate %7, %6, %7 in 1 : vector<128x1xbf16>, vector<128x32xbf16>, vector<128x1xbf16> -> vector<128x34xbf16>
    %9 = tpu.iota {dimensions = array<i32: 1>} : vector<128x32xi32>
    %c16_i32 = arith.constant 16 : i32
    %10 = vector.broadcast %c16_i32 : i32 to vector<128x32xi32>
    %11 = arith.remsi %9, %10 : vector<128x32xi32>
    %c1_i32 = arith.constant 1 : i32
    %12 = vector.broadcast %c1_i32 : i32 to vector<128x32xi32>
    %13 = arith.cmpi sge, %11, %12 : vector<128x32xi32>
    %c15_i32 = arith.constant 15 : i32
    %14 = vector.broadcast %c15_i32 : i32 to vector<128x32xi32>
    %15 = arith.cmpi slt, %11, %14 : vector<128x32xi32>
    %16 = vector.extract_strided_slice %8 {offsets = [0, 0], sizes = [128, 32], strides = [1, 1]} : vector<128x34xbf16> to vector<128x32xbf16>
    %cst_7 = arith.constant 0.000000e+00 : bf16
    %17 = vector.broadcast %cst_7 : bf16 to vector<128x32xbf16>
    %18 = arith.select %13, %16, %17 : vector<128x32xi1>, vector<128x32xbf16>
    %c0_8 = arith.constant 0 : index
    %c0_9 = arith.constant 0 : index
    %c0_10 = arith.constant 0 : index
    %19 = vector.load %arg2[%c0_8, %c0_9, %c0_10] : memref<15x128x128xbf16, #tpu.memory_space<vmem>>, vector<1x128x128xbf16>
    %20 = vector.shape_cast %19 : vector<1x128x128xbf16> to vector<128x128xbf16>
    %cst_11 = arith.constant dense<0.000000e+00> : vector<128x32xf32>
    %21 = tpu.matmul %20, %18, %cst_11 {dimension_numbers = #tpu.dot_dimension_numbers<[1], [0], [0], [1], [0, 0, 1, 1], [], []>} : vector<128x128xbf16>, vector<128x32xbf16>, vector<128x32xf32> -> vector<128x32xf32>
    %22 = vector.extract_strided_slice %8 {offsets = [0, 1], sizes = [128, 32], strides = [1, 1]} : vector<128x34xbf16> to vector<128x32xbf16>
    %c1 = arith.constant 1 : index
    %c0_12 = arith.constant 0 : index
    %c0_13 = arith.constant 0 : index
    %23 = vector.load %arg2[%c1, %c0_12, %c0_13] : memref<15x128x128xbf16, #tpu.memory_space<vmem>>, vector<1x128x128xbf16>
    %24 = vector.shape_cast %23 : vector<1x128x128xbf16> to vector<128x128xbf16>
    %cst_14 = arith.constant dense<0.000000e+00> : vector<128x32xf32>
    %25 = tpu.matmul %24, %22, %cst_14 {dimension_numbers = #tpu.dot_dimension_numbers<[1], [0], [0], [1], [0, 0, 1, 1], [], []>} : vector<128x128xbf16>, vector<128x32xbf16>, vector<128x32xf32> -> vector<128x32xf32>
    %26 = arith.addf %21, %25 : vector<128x32xf32>
    %27 = vector.extract_strided_slice %8 {offsets = [0, 2], sizes = [128, 32], strides = [1, 1]} : vector<128x34xbf16> to vector<128x32xbf16>
    %cst_15 = arith.constant 0.000000e+00 : bf16
    %28 = vector.broadcast %cst_15 : bf16 to vector<128x32xbf16>
    %29 = arith.select %15, %27, %28 : vector<128x32xi1>, vector<128x32xbf16>
    %c2 = arith.constant 2 : index
    %c0_16 = arith.constant 0 : index
    %c0_17 = arith.constant 0 : index
    %30 = vector.load %arg2[%c2, %c0_16, %c0_17] : memref<15x128x128xbf16, #tpu.memory_space<vmem>>, vector<1x128x128xbf16>
    %31 = vector.shape_cast %30 : vector<1x128x128xbf16> to vector<128x128xbf16>
    %cst_18 = arith.constant dense<0.000000e+00> : vector<128x32xf32>
    %32 = tpu.matmul %31, %29, %cst_18 {dimension_numbers = #tpu.dot_dimension_numbers<[1], [0], [0], [1], [0, 0, 1, 1], [], []>} : vector<128x128xbf16>, vector<128x32xbf16>, vector<128x32xf32> -> vector<128x32xf32>
    %33 = arith.addf %26, %32 : vector<128x32xf32>
    %34 = vector.extract_strided_slice %0 {offsets = [0, 0], sizes = [128, 1], strides = [1, 1]} : vector<128x5xf32> to vector<128x1xf32>
    %35 = vector.broadcast %34 : vector<128x1xf32> to vector<128x32xf32>
    %36 = arith.addf %33, %35 : vector<128x32xf32>
    %cst_19 = arith.constant 0.000000e+00 : f32
    %37 = vector.broadcast %cst_19 : f32 to vector<128x32xf32>
    %38 = arith.maximumf %36, %37 : vector<128x32xf32>
    %39 = arith.truncf %38 : vector<128x32xf32> to vector<128x32xbf16>
    %cst_20 = arith.constant 0.000000e+00 : bf16
    %40 = vector.broadcast %cst_20 : bf16 to vector<128x1xbf16>
    %41 = tpu.concatenate %40, %39, %40 in 1 : vector<128x1xbf16>, vector<128x32xbf16>, vector<128x1xbf16> -> vector<128x34xbf16>
    %42 = vector.extract_strided_slice %41 {offsets = [0, 0], sizes = [128, 32], strides = [1, 1]} : vector<128x34xbf16> to vector<128x32xbf16>
    %cst_21 = arith.constant 0.000000e+00 : bf16
    %43 = vector.broadcast %cst_21 : bf16 to vector<128x32xbf16>
    %44 = arith.select %13, %42, %43 : vector<128x32xi1>, vector<128x32xbf16>
    %c3 = arith.constant 3 : index
    %c0_22 = arith.constant 0 : index
    %c0_23 = arith.constant 0 : index
    %45 = vector.load %arg2[%c3, %c0_22, %c0_23] : memref<15x128x128xbf16, #tpu.memory_space<vmem>>, vector<1x128x128xbf16>
    %46 = vector.shape_cast %45 : vector<1x128x128xbf16> to vector<128x128xbf16>
    %cst_24 = arith.constant dense<0.000000e+00> : vector<128x32xf32>
    %47 = tpu.matmul %46, %44, %cst_24 {dimension_numbers = #tpu.dot_dimension_numbers<[1], [0], [0], [1], [0, 0, 1, 1], [], []>} : vector<128x128xbf16>, vector<128x32xbf16>, vector<128x32xf32> -> vector<128x32xf32>
    %48 = vector.extract_strided_slice %41 {offsets = [0, 1], sizes = [128, 32], strides = [1, 1]} : vector<128x34xbf16> to vector<128x32xbf16>
    %c4 = arith.constant 4 : index
    %c0_25 = arith.constant 0 : index
    %c0_26 = arith.constant 0 : index
    %49 = vector.load %arg2[%c4, %c0_25, %c0_26] : memref<15x128x128xbf16, #tpu.memory_space<vmem>>, vector<1x128x128xbf16>
    %50 = vector.shape_cast %49 : vector<1x128x128xbf16> to vector<128x128xbf16>
    %cst_27 = arith.constant dense<0.000000e+00> : vector<128x32xf32>
    %51 = tpu.matmul %50, %48, %cst_27 {dimension_numbers = #tpu.dot_dimension_numbers<[1], [0], [0], [1], [0, 0, 1, 1], [], []>} : vector<128x128xbf16>, vector<128x32xbf16>, vector<128x32xf32> -> vector<128x32xf32>
    %52 = arith.addf %47, %51 : vector<128x32xf32>
    %53 = vector.extract_strided_slice %41 {offsets = [0, 2], sizes = [128, 32], strides = [1, 1]} : vector<128x34xbf16> to vector<128x32xbf16>
    %cst_28 = arith.constant 0.000000e+00 : bf16
    %54 = vector.broadcast %cst_28 : bf16 to vector<128x32xbf16>
    %55 = arith.select %15, %53, %54 : vector<128x32xi1>, vector<128x32xbf16>
    %c5 = arith.constant 5 : index
    %c0_29 = arith.constant 0 : index
    %c0_30 = arith.constant 0 : index
    %56 = vector.load %arg2[%c5, %c0_29, %c0_30] : memref<15x128x128xbf16, #tpu.memory_space<vmem>>, vector<1x128x128xbf16>
    %57 = vector.shape_cast %56 : vector<1x128x128xbf16> to vector<128x128xbf16>
    %cst_31 = arith.constant dense<0.000000e+00> : vector<128x32xf32>
    %58 = tpu.matmul %57, %55, %cst_31 {dimension_numbers = #tpu.dot_dimension_numbers<[1], [0], [0], [1], [0, 0, 1, 1], [], []>} : vector<128x128xbf16>, vector<128x32xbf16>, vector<128x32xf32> -> vector<128x32xf32>
    %59 = arith.addf %52, %58 : vector<128x32xf32>
    %60 = vector.extract_strided_slice %0 {offsets = [0, 1], sizes = [128, 1], strides = [1, 1]} : vector<128x5xf32> to vector<128x1xf32>
    %61 = vector.broadcast %60 : vector<128x1xf32> to vector<128x32xf32>
    %62 = arith.addf %59, %61 : vector<128x32xf32>
    %cst_32 = arith.constant 0.000000e+00 : f32
    %63 = vector.broadcast %cst_32 : f32 to vector<128x32xf32>
    %64 = arith.maximumf %62, %63 : vector<128x32xf32>
    %c0_33 = arith.constant 0 : index
    %c0_34 = arith.constant 0 : index
    %c0_35 = arith.constant 0 : index
    %65 = vector.load %arg4[%c0_33, %c0_34, %c0_35] : memref<3x128x128xbf16, #tpu.memory_space<vmem>>, vector<1x128x128xbf16>
    %66 = vector.shape_cast %65 : vector<1x128x128xbf16> to vector<128x128xbf16>
    %67 = arith.truncf %64 : vector<128x32xf32> to vector<128x32xbf16>
    %cst_36 = arith.constant dense<0.000000e+00> : vector<128x32xf32>
    %68 = tpu.matmul %66, %67, %cst_36 {dimension_numbers = #tpu.dot_dimension_numbers<[1], [0], [0], [1], [0, 0, 1, 1], [], []>} : vector<128x128xbf16>, vector<128x32xbf16>, vector<128x32xf32> -> vector<128x32xf32>
    %69 = vector.extract_strided_slice %1 {offsets = [0, 0], sizes = [128, 1], strides = [1, 1]} : vector<128x3xf32> to vector<128x1xf32>
    %70 = vector.broadcast %69 : vector<128x1xf32> to vector<128x32xf32>
    %71 = arith.addf %68, %70 : vector<128x32xf32>
    %72 = arith.addf %36, %71 : vector<128x32xf32>
    %cst_37 = arith.constant 0.000000e+00 : f32
    %73 = vector.broadcast %cst_37 : f32 to vector<128x32xf32>
    %74 = arith.maximumf %72, %73 : vector<128x32xf32>
    %75 = arith.truncf %74 : vector<128x32xf32> to vector<128x32xbf16>
    %cst_38 = arith.constant 0.000000e+00 : bf16
    %76 = vector.broadcast %cst_38 : bf16 to vector<128x1xbf16>
    %77 = tpu.concatenate %76, %75, %76 in 1 : vector<128x1xbf16>, vector<128x32xbf16>, vector<128x1xbf16> -> vector<128x34xbf16>
    %78 = vector.extract_strided_slice %77 {offsets = [0, 0], sizes = [128, 32], strides = [1, 1]} : vector<128x34xbf16> to vector<128x32xbf16>
    %cst_39 = arith.constant 0.000000e+00 : bf16
    %79 = vector.broadcast %cst_39 : bf16 to vector<128x32xbf16>
    %80 = arith.select %13, %78, %79 : vector<128x32xi1>, vector<128x32xbf16>
    %c6 = arith.constant 6 : index
    %c0_40 = arith.constant 0 : index
    %c0_41 = arith.constant 0 : index
    %81 = vector.load %arg2[%c6, %c0_40, %c0_41] : memref<15x128x128xbf16, #tpu.memory_space<vmem>>, vector<1x128x128xbf16>
    %82 = vector.shape_cast %81 : vector<1x128x128xbf16> to vector<128x128xbf16>
    %cst_42 = arith.constant dense<0.000000e+00> : vector<128x32xf32>
    %83 = tpu.matmul %82, %80, %cst_42 {dimension_numbers = #tpu.dot_dimension_numbers<[1], [0], [0], [1], [0, 0, 1, 1], [], []>} : vector<128x128xbf16>, vector<128x32xbf16>, vector<128x32xf32> -> vector<128x32xf32>
    %84 = vector.extract_strided_slice %77 {offsets = [0, 1], sizes = [128, 32], strides = [1, 1]} : vector<128x34xbf16> to vector<128x32xbf16>
    %c7 = arith.constant 7 : index
    %c0_43 = arith.constant 0 : index
    %c0_44 = arith.constant 0 : index
    %85 = vector.load %arg2[%c7, %c0_43, %c0_44] : memref<15x128x128xbf16, #tpu.memory_space<vmem>>, vector<1x128x128xbf16>
    %86 = vector.shape_cast %85 : vector<1x128x128xbf16> to vector<128x128xbf16>
    %cst_45 = arith.constant dense<0.000000e+00> : vector<128x32xf32>
    %87 = tpu.matmul %86, %84, %cst_45 {dimension_numbers = #tpu.dot_dimension_numbers<[1], [0], [0], [1], [0, 0, 1, 1], [], []>} : vector<128x128xbf16>, vector<128x32xbf16>, vector<128x32xf32> -> vector<128x32xf32>
    %88 = arith.addf %83, %87 : vector<128x32xf32>
    %89 = vector.extract_strided_slice %77 {offsets = [0, 2], sizes = [128, 32], strides = [1, 1]} : vector<128x34xbf16> to vector<128x32xbf16>
    %cst_46 = arith.constant 0.000000e+00 : bf16
    %90 = vector.broadcast %cst_46 : bf16 to vector<128x32xbf16>
    %91 = arith.select %15, %89, %90 : vector<128x32xi1>, vector<128x32xbf16>
    %c8 = arith.constant 8 : index
    %c0_47 = arith.constant 0 : index
    %c0_48 = arith.constant 0 : index
    %92 = vector.load %arg2[%c8, %c0_47, %c0_48] : memref<15x128x128xbf16, #tpu.memory_space<vmem>>, vector<1x128x128xbf16>
    %93 = vector.shape_cast %92 : vector<1x128x128xbf16> to vector<128x128xbf16>
    %cst_49 = arith.constant dense<0.000000e+00> : vector<128x32xf32>
    %94 = tpu.matmul %93, %91, %cst_49 {dimension_numbers = #tpu.dot_dimension_numbers<[1], [0], [0], [1], [0, 0, 1, 1], [], []>} : vector<128x128xbf16>, vector<128x32xbf16>, vector<128x32xf32> -> vector<128x32xf32>
    %95 = arith.addf %88, %94 : vector<128x32xf32>
    %96 = vector.extract_strided_slice %0 {offsets = [0, 2], sizes = [128, 1], strides = [1, 1]} : vector<128x5xf32> to vector<128x1xf32>
    %97 = vector.broadcast %96 : vector<128x1xf32> to vector<128x32xf32>
    %98 = arith.addf %95, %97 : vector<128x32xf32>
    %cst_50 = arith.constant 0.000000e+00 : f32
    %99 = vector.broadcast %cst_50 : f32 to vector<128x32xf32>
    %100 = arith.maximumf %98, %99 : vector<128x32xf32>
    %c1_51 = arith.constant 1 : index
    %c0_52 = arith.constant 0 : index
    %c0_53 = arith.constant 0 : index
    %101 = vector.load %arg4[%c1_51, %c0_52, %c0_53] : memref<3x128x128xbf16, #tpu.memory_space<vmem>>, vector<1x128x128xbf16>
    %102 = vector.shape_cast %101 : vector<1x128x128xbf16> to vector<128x128xbf16>
    %103 = arith.truncf %100 : vector<128x32xf32> to vector<128x32xbf16>
    %cst_54 = arith.constant dense<0.000000e+00> : vector<128x32xf32>
    %104 = tpu.matmul %102, %103, %cst_54 {dimension_numbers = #tpu.dot_dimension_numbers<[1], [0], [0], [1], [0, 0, 1, 1], [], []>} : vector<128x128xbf16>, vector<128x32xbf16>, vector<128x32xf32> -> vector<128x32xf32>
    %105 = vector.extract_strided_slice %1 {offsets = [0, 1], sizes = [128, 1], strides = [1, 1]} : vector<128x3xf32> to vector<128x1xf32>
    %106 = vector.broadcast %105 : vector<128x1xf32> to vector<128x32xf32>
    %107 = arith.addf %104, %106 : vector<128x32xf32>
    %108 = arith.addf %72, %107 : vector<128x32xf32>
    %cst_55 = arith.constant 0.000000e+00 : f32
    %109 = vector.broadcast %cst_55 : f32 to vector<128x32xf32>
    %110 = arith.maximumf %108, %109 : vector<128x32xf32>
    %111 = arith.truncf %110 : vector<128x32xf32> to vector<128x32xbf16>
    %cst_56 = arith.constant 0.000000e+00 : bf16
    %112 = vector.broadcast %cst_56 : bf16 to vector<128x1xbf16>
    %113 = tpu.concatenate %112, %111, %112 in 1 : vector<128x1xbf16>, vector<128x32xbf16>, vector<128x1xbf16> -> vector<128x34xbf16>
    %114 = vector.extract_strided_slice %113 {offsets = [0, 0], sizes = [128, 32], strides = [1, 1]} : vector<128x34xbf16> to vector<128x32xbf16>
    %cst_57 = arith.constant 0.000000e+00 : bf16
    %115 = vector.broadcast %cst_57 : bf16 to vector<128x32xbf16>
    %116 = arith.select %13, %114, %115 : vector<128x32xi1>, vector<128x32xbf16>
    %c9 = arith.constant 9 : index
    %c0_58 = arith.constant 0 : index
    %c0_59 = arith.constant 0 : index
    %117 = vector.load %arg2[%c9, %c0_58, %c0_59] : memref<15x128x128xbf16, #tpu.memory_space<vmem>>, vector<1x128x128xbf16>
    %118 = vector.shape_cast %117 : vector<1x128x128xbf16> to vector<128x128xbf16>
    %cst_60 = arith.constant dense<0.000000e+00> : vector<128x32xf32>
    %119 = tpu.matmul %118, %116, %cst_60 {dimension_numbers = #tpu.dot_dimension_numbers<[1], [0], [0], [1], [0, 0, 1, 1], [], []>} : vector<128x128xbf16>, vector<128x32xbf16>, vector<128x32xf32> -> vector<128x32xf32>
    %120 = vector.extract_strided_slice %113 {offsets = [0, 1], sizes = [128, 32], strides = [1, 1]} : vector<128x34xbf16> to vector<128x32xbf16>
    %c10 = arith.constant 10 : index
    %c0_61 = arith.constant 0 : index
    %c0_62 = arith.constant 0 : index
    %121 = vector.load %arg2[%c10, %c0_61, %c0_62] : memref<15x128x128xbf16, #tpu.memory_space<vmem>>, vector<1x128x128xbf16>
    %122 = vector.shape_cast %121 : vector<1x128x128xbf16> to vector<128x128xbf16>
    %cst_63 = arith.constant dense<0.000000e+00> : vector<128x32xf32>
    %123 = tpu.matmul %122, %120, %cst_63 {dimension_numbers = #tpu.dot_dimension_numbers<[1], [0], [0], [1], [0, 0, 1, 1], [], []>} : vector<128x128xbf16>, vector<128x32xbf16>, vector<128x32xf32> -> vector<128x32xf32>
    %124 = arith.addf %119, %123 : vector<128x32xf32>
    %125 = vector.extract_strided_slice %113 {offsets = [0, 2], sizes = [128, 32], strides = [1, 1]} : vector<128x34xbf16> to vector<128x32xbf16>
    %cst_64 = arith.constant 0.000000e+00 : bf16
    %126 = vector.broadcast %cst_64 : bf16 to vector<128x32xbf16>
    %127 = arith.select %15, %125, %126 : vector<128x32xi1>, vector<128x32xbf16>
    %c11 = arith.constant 11 : index
    %c0_65 = arith.constant 0 : index
    %c0_66 = arith.constant 0 : index
    %128 = vector.load %arg2[%c11, %c0_65, %c0_66] : memref<15x128x128xbf16, #tpu.memory_space<vmem>>, vector<1x128x128xbf16>
    %129 = vector.shape_cast %128 : vector<1x128x128xbf16> to vector<128x128xbf16>
    %cst_67 = arith.constant dense<0.000000e+00> : vector<128x32xf32>
    %130 = tpu.matmul %129, %127, %cst_67 {dimension_numbers = #tpu.dot_dimension_numbers<[1], [0], [0], [1], [0, 0, 1, 1], [], []>} : vector<128x128xbf16>, vector<128x32xbf16>, vector<128x32xf32> -> vector<128x32xf32>
    %131 = arith.addf %124, %130 : vector<128x32xf32>
    %132 = vector.extract_strided_slice %0 {offsets = [0, 3], sizes = [128, 1], strides = [1, 1]} : vector<128x5xf32> to vector<128x1xf32>
    %133 = vector.broadcast %132 : vector<128x1xf32> to vector<128x32xf32>
    %134 = arith.addf %131, %133 : vector<128x32xf32>
    %cst_68 = arith.constant 0.000000e+00 : f32
    %135 = vector.broadcast %cst_68 : f32 to vector<128x32xf32>
    %136 = arith.maximumf %134, %135 : vector<128x32xf32>
    %c2_69 = arith.constant 2 : index
    %c0_70 = arith.constant 0 : index
    %c0_71 = arith.constant 0 : index
    %137 = vector.load %arg4[%c2_69, %c0_70, %c0_71] : memref<3x128x128xbf16, #tpu.memory_space<vmem>>, vector<1x128x128xbf16>
    %138 = vector.shape_cast %137 : vector<1x128x128xbf16> to vector<128x128xbf16>
    %139 = arith.truncf %136 : vector<128x32xf32> to vector<128x32xbf16>
    %cst_72 = arith.constant dense<0.000000e+00> : vector<128x32xf32>
    %140 = tpu.matmul %138, %139, %cst_72 {dimension_numbers = #tpu.dot_dimension_numbers<[1], [0], [0], [1], [0, 0, 1, 1], [], []>} : vector<128x128xbf16>, vector<128x32xbf16>, vector<128x32xf32> -> vector<128x32xf32>
    %141 = vector.extract_strided_slice %1 {offsets = [0, 2], sizes = [128, 1], strides = [1, 1]} : vector<128x3xf32> to vector<128x1xf32>
    %142 = vector.broadcast %141 : vector<128x1xf32> to vector<128x32xf32>
    %143 = arith.addf %140, %142 : vector<128x32xf32>
    %144 = arith.addf %108, %143 : vector<128x32xf32>
    %cst_73 = arith.constant 0.000000e+00 : f32
    %145 = vector.broadcast %cst_73 : f32 to vector<128x32xf32>
    %146 = arith.maximumf %144, %145 : vector<128x32xf32>
    %147 = arith.truncf %146 : vector<128x32xf32> to vector<128x32xbf16>
    %cst_74 = arith.constant 0.000000e+00 : bf16
    %148 = vector.broadcast %cst_74 : bf16 to vector<128x1xbf16>
    %149 = tpu.concatenate %148, %147, %148 in 1 : vector<128x1xbf16>, vector<128x32xbf16>, vector<128x1xbf16> -> vector<128x34xbf16>
    %150 = vector.extract_strided_slice %149 {offsets = [0, 0], sizes = [128, 32], strides = [1, 1]} : vector<128x34xbf16> to vector<128x32xbf16>
    %cst_75 = arith.constant 0.000000e+00 : bf16
    %151 = vector.broadcast %cst_75 : bf16 to vector<128x32xbf16>
    %152 = arith.select %13, %150, %151 : vector<128x32xi1>, vector<128x32xbf16>
    %c12 = arith.constant 12 : index
    %c0_76 = arith.constant 0 : index
    %c0_77 = arith.constant 0 : index
    %153 = vector.load %arg2[%c12, %c0_76, %c0_77] : memref<15x128x128xbf16, #tpu.memory_space<vmem>>, vector<1x128x128xbf16>
    %154 = vector.shape_cast %153 : vector<1x128x128xbf16> to vector<128x128xbf16>
    %cst_78 = arith.constant dense<0.000000e+00> : vector<128x32xf32>
    %155 = tpu.matmul %154, %152, %cst_78 {dimension_numbers = #tpu.dot_dimension_numbers<[1], [0], [0], [1], [0, 0, 1, 1], [], []>} : vector<128x128xbf16>, vector<128x32xbf16>, vector<128x32xf32> -> vector<128x32xf32>
    %156 = vector.extract_strided_slice %149 {offsets = [0, 1], sizes = [128, 32], strides = [1, 1]} : vector<128x34xbf16> to vector<128x32xbf16>
    %c13 = arith.constant 13 : index
    %c0_79 = arith.constant 0 : index
    %c0_80 = arith.constant 0 : index
    %157 = vector.load %arg2[%c13, %c0_79, %c0_80] : memref<15x128x128xbf16, #tpu.memory_space<vmem>>, vector<1x128x128xbf16>
    %158 = vector.shape_cast %157 : vector<1x128x128xbf16> to vector<128x128xbf16>
    %cst_81 = arith.constant dense<0.000000e+00> : vector<128x32xf32>
    %159 = tpu.matmul %158, %156, %cst_81 {dimension_numbers = #tpu.dot_dimension_numbers<[1], [0], [0], [1], [0, 0, 1, 1], [], []>} : vector<128x128xbf16>, vector<128x32xbf16>, vector<128x32xf32> -> vector<128x32xf32>
    %160 = arith.addf %155, %159 : vector<128x32xf32>
    %161 = vector.extract_strided_slice %149 {offsets = [0, 2], sizes = [128, 32], strides = [1, 1]} : vector<128x34xbf16> to vector<128x32xbf16>
    %cst_82 = arith.constant 0.000000e+00 : bf16
    %162 = vector.broadcast %cst_82 : bf16 to vector<128x32xbf16>
    %163 = arith.select %15, %161, %162 : vector<128x32xi1>, vector<128x32xbf16>
    %c14 = arith.constant 14 : index
    %c0_83 = arith.constant 0 : index
    %c0_84 = arith.constant 0 : index
    %164 = vector.load %arg2[%c14, %c0_83, %c0_84] : memref<15x128x128xbf16, #tpu.memory_space<vmem>>, vector<1x128x128xbf16>
    %165 = vector.shape_cast %164 : vector<1x128x128xbf16> to vector<128x128xbf16>
    %cst_85 = arith.constant dense<0.000000e+00> : vector<128x32xf32>
    %166 = tpu.matmul %165, %163, %cst_85 {dimension_numbers = #tpu.dot_dimension_numbers<[1], [0], [0], [1], [0, 0, 1, 1], [], []>} : vector<128x128xbf16>, vector<128x32xbf16>, vector<128x32xf32> -> vector<128x32xf32>
    %167 = arith.addf %160, %166 : vector<128x32xf32>
    %168 = vector.extract_strided_slice %0 {offsets = [0, 4], sizes = [128, 1], strides = [1, 1]} : vector<128x5xf32> to vector<128x1xf32>
    %169 = vector.broadcast %168 : vector<128x1xf32> to vector<128x32xf32>
    %170 = arith.addf %167, %169 : vector<128x32xf32>
    %c0_86 = arith.constant 0 : index
    %c0_87 = arith.constant 0 : index
    %c0_88 = arith.constant 0 : index
    %171 = vector.load %arg6[%c0_86, %c0_87, %c0_88] : memref<1x128x32xf32, #tpu.memory_space<vmem>>, vector<1x128x32xf32>
    %172 = vector.shape_cast %171 : vector<1x128x32xf32> to vector<128x32xf32>
    %173 = vector.shape_cast %170 : vector<128x32xf32> to vector<1x128x32xf32>
    tpu.vector_store %arg6[%c0_86, %c0_87, %c0_88], %173 {strides = array<i32>} : memref<1x128x32xf32, #tpu.memory_space<vmem>>, vector<1x128x32xf32>,
    return
  }
  func.func @transform_0(%arg0: i32) -> (i32, i32, i32) {
    %c0_i32 = arith.constant 0 : i32
    %c0_i32_0 = arith.constant 0 : i32
    %c0_i32_1 = arith.constant 0 : i32
    return %arg0, %c0_i32, %c0_i32_0 : i32, i32, i32
  }
  func.func @transform_1(%arg0: i32) -> (i32, i32, i32) {
    %c0_i32 = arith.constant 0 : i32
    %c0_i32_0 = arith.constant 0 : i32
    %c0_i32_1 = arith.constant 0 : i32
    %c0_i32_2 = arith.constant 0 : i32
    return %c0_i32, %c0_i32_0, %c0_i32_1 : i32, i32, i32
  }
  func.func @transform_2(%arg0: i32) -> (i32, i32) {
    %c0_i32 = arith.constant 0 : i32
    %c0_i32_0 = arith.constant 0 : i32
    %c0_i32_1 = arith.constant 0 : i32
    return %c0_i32, %c0_i32_0 : i32, i32
  }
  func.func @transform_3(%arg0: i32) -> (i32, i32, i32) {
    %c0_i32 = arith.constant 0 : i32
    %c0_i32_0 = arith.constant 0 : i32
    %c0_i32_1 = arith.constant 0 : i32
    %c0_i32_2 = arith.constant 0 : i32
    return %c0_i32, %c0_i32_0, %c0_i32_1 : i32, i32, i32
  }
  func.func @transform_4(%arg0: i32) -> (i32, i32) {
    %c0_i32 = arith.constant 0 : i32
    %c0_i32_0 = arith.constant 0 : i32
    %c0_i32_1 = arith.constant 0 : i32
    return %c0_i32, %c0_i32_0 : i32, i32
  }
  func.func @transform_5(%arg0: i32) -> (i32, i32, i32) {
    %c0_i32 = arith.constant 0 : i32
    %c0_i32_0 = arith.constant 0 : i32
    %c0_i32_1 = arith.constant 0 : i32
    return %arg0, %c0_i32, %c0_i32_0 : i32, i32, i32
  }
}

</mosaic_0001>

<llo_original>
// kernel: homi_decoder_forward.1
$region0: #{homi_decoder_forward.1}
  #allocation0 [shape = 'u32[]', space=smem, size = 0x4, offset = 0x4, fixed_abs, tag = 'smem constant byte address 0x4 - core index']
  #allocation1 [shape = 'u32[144,128]{1,0:T(1,128)}', space=vmem, size = 0x12000, scoped, tag = 'internal scratch']
  %s0 = inlined_call_operand.vmem [shape: f32[1,8,32], index: 0, kind: input, shape index: {}]
  %s1 = inlined_call_operand.hbm [shape: bf16[15,128,128], index: 1, kind: input, shape index: {}]
  %s2 = inlined_call_operand.vmem [shape: f32[128,5], index: 2, kind: input, shape index: {}]
  %s3 = inlined_call_operand.vmem [shape: bf16[3,128,128], index: 3, kind: input, shape index: {}]
  %s4 = inlined_call_operand.vmem [shape: f32[128,3], index: 4, kind: input, shape index: {}]
  %s5 = inlined_call_operand.vmem [shape: f32[1,128,32], index: 5, kind: output, shape index: {}]
  %s6 = sld [smem:[#allocation0]]
  $region34: #{homi_decoder_forward.1} parent=0
    _
  %s8 = ssub.s32 1, %s6
  %s9 = scalar_select 0, %s8, %s6
  $region1: #{homi_decoder_forward.1} parent=0
    #allocation2 [shape = 'u8[491520]{0}', space=vmem, size = 0x78000, scoped, tag = 'input window, operand 1, single buffered']
    #allocation3 [shape = 's32[1]{0}', space=sflag, size = 0x4, scoped, tag = 'scoped memory for homi_decoder_forward.1']
    %10 = vsyncpa [#allocation3], 0
    // Predicated region
    $region2: #{homi_decoder_forward.1} parent=1 // pred_check
      _
    $region3: #{homi_decoder_forward.1} parent=1 // pred_check_branch
      %12 = sbr.rel (0) target = $region5
    $region4: #{homi_decoder_forward.1} parent=1 // pred_region
      _
    $region5: #{homi_decoder_forward.1} parent=1 // pred_fallthru
      _
    // Predicated region
    $region6: #{homi_decoder_forward.1} parent=1 // pred_check
      _
    $region7: #{homi_decoder_forward.1} parent=1 // pred_check_branch
      %14 = sbr.rel (0) target = $region9
    $region8: #{homi_decoder_forward.1} parent=1 // pred_region
      %s16 = ssub.s32 15360, 15360
      %17 = vsyncadd [#allocation3], %s16
      %s18 = sshll.u32 [#allocation2], 4
      %s19 = int_to_ptr.vmem [resolvable:$true] %s18
      %24 = dma.hbm_to_vmem [thread:$0]  %s1, 15360, %s19, [#allocation3], 64, 64, 4
    $region9: #{homi_decoder_forward.1} parent=1 // pred_fallthru
      _
    // Predicated region
    $region10: #{homi_decoder_forward.1} parent=1 // pred_check
      _
    $region11: #{homi_decoder_forward.1} parent=1 // pred_check_branch
      %26 = sbr.rel (0) target = $region13
    $region12: #{homi_decoder_forward.1} parent=1 // pred_region
      _
    $region13: #{homi_decoder_forward.1} parent=1 // pred_fallthru
      _
    // Predicated region
    $region14: #{homi_decoder_forward.1} parent=1 // pred_check
      _
    $region15: #{homi_decoder_forward.1} parent=1 // pred_check_branch
      %28 = sbr.rel (0) target = $region17
    $region16: #{homi_decoder_forward.1} parent=1 // pred_region
      _
    $region17: #{homi_decoder_forward.1} parent=1 // pred_fallthru
      _
    // Predicated region
    $region18: #{homi_decoder_forward.1} parent=1 // pred_check
      _
    $region19: #{homi_decoder_forward.1} parent=1 // pred_check_branch
      %30 = sbr.rel (0) target = $region21
    $region20: #{homi_decoder_forward.1} parent=1 // pred_region
      _
    $region21: #{homi_decoder_forward.1} parent=1 // pred_fallthru
      _
    // Predicated region
    $region22: #{homi_decoder_forward.1} parent=1 // pred_check
      _
    $region23: #{homi_decoder_forward.1} parent=1 // pred_check_branch
      %32 = sbr.rel (0) target = $region25
    $region24: #{homi_decoder_forward.1} parent=1 // pred_region
      %33 = dma.done [#allocation3], 15360
    $region25: #{homi_decoder_forward.1} parent=1 // pred_fallthru
      _
    %v37 = vld [vmem:[%s2] sm:$0xff]
    %v38 = vld [vmem:[%s2 + $0x8] sm:$0xff]
    %v39 = vld [vmem:[%s2 + $0x10] sm:$0xff]
    %v40 = vld [vmem:[%s2 + $0x18] sm:$0xff]
    %v41 = vld [vmem:[%s2 + $0x20] sm:$0xff]
    %v42 = vld [vmem:[%s2 + $0x28] sm:$0xff]
    %v43 = vld [vmem:[%s2 + $0x30] sm:$0xff]
    %v44 = vld [vmem:[%s2 + $0x38] sm:$0xff]
    %v45 = vld [vmem:[%s2 + $0x40] sm:$0xff]
    %v46 = vld [vmem:[%s2 + $0x48] sm:$0xff]
    %v47 = vld [vmem:[%s2 + $0x50] sm:$0xff]
    %v48 = vld [vmem:[%s2 + $0x58] sm:$0xff]
    %v49 = vld [vmem:[%s2 + $0x60] sm:$0xff]
    %v50 = vld [vmem:[%s2 + $0x68] sm:$0xff]
    %v51 = vld [vmem:[%s2 + $0x70] sm:$0xff]
    %v52 = vld [vmem:[%s2 + $0x78] sm:$0xff]
    %v53 = vld [vmem:[%s4] sm:$0xff]
    %v54 = vld [vmem:[%s4 + $0x8] sm:$0xff]
    %v55 = vld [vmem:[%s4 + $0x10] sm:$0xff]
    %v56 = vld [vmem:[%s4 + $0x18] sm:$0xff]
    %v57 = vld [vmem:[%s4 + $0x20] sm:$0xff]
    %v58 = vld [vmem:[%s4 + $0x28] sm:$0xff]
    %v59 = vld [vmem:[%s4 + $0x30] sm:$0xff]
    %v60 = vld [vmem:[%s4 + $0x38] sm:$0xff]
    %v61 = vld [vmem:[%s4 + $0x40] sm:$0xff]
    %v62 = vld [vmem:[%s4 + $0x48] sm:$0xff]
    %v63 = vld [vmem:[%s4 + $0x50] sm:$0xff]
    %v64 = vld [vmem:[%s4 + $0x58] sm:$0xff]
    %v65 = vld [vmem:[%s4 + $0x60] sm:$0xff]
    %v66 = vld [vmem:[%s4 + $0x68] sm:$0xff]
    %v67 = vld [vmem:[%s4 + $0x70] sm:$0xff]
    %v68 = vld [vmem:[%s4 + $0x78] sm:$0xff]
    %v69 = vld [vmem:[%s0] sm:$0xff]
    %v70 = vpack.c.bf16 0.0, %v69
    %v71 = vpack.c.bf16 0.0, 0.0
    %74 = vrot.lane.b32.xlu0 %v70, 1
    %v75 = vpop.permute.xlu0 %74
    %76 = vrot.lane.b32.xlu0 %v71, 1
    %v77 = vpop.permute.xlu0 %76
    %vm78 = vcmask 7168
    %v81 = vsel %vm78, 0, %v75
    %v83 = vsel %vm78, 0, %v77
    %vm84 = vcmask 269312
    %v85 = vsel %vm84, %v81, 0
    %v87 = vsel %vm84, %v83, 0
    %v89 = vlaneseq
    %v90 = vand.u32 %v89, 127
    %vm91 = vcmp.lt.s32.totalorder %v90, 0
    %v92 = vsub.s32 0, %v90
    %v93 = vsel %vm91, %v92, %v90
    %v94 = vshrl.u32 %v93, 4
    %v95 = vand.u32 %v93, 15
    %v96 = vsub.s32 0, %v95
    %v97 = vsel %vm91, %v96, %v95
    %vm98 = vcmp.ge.s32.totalorder %v97, 1
    %vm99 = vcmp.lt.s32.totalorder %v97, 15
    %vm100 = vmpackc.low %vm98, %vm98
    %v101 = vsel %vm100, 65537, 0
    %v102 = vlaneseq
    %v103 = vshrl.u32 %v102, 7
    %v104 = vsub.s32 0, %v103
    %v105 = vrot.slane %v101, %v104
    %vm106 = vcmp.ne.s16.totalorder %v105, 0
    %v107 = vsel %vm106, %v85, 0
    %v108 = vsel %vm106, %v87, 0
    %v109 = vld [vmem:[#allocation2] sm:$0xf]
    %v110 = vld [vmem:[#allocation2 + $0x4] sm:$0xf]
    %v111 = vld [vmem:[#allocation2 + $0x8] sm:$0xf]
    %v112 = vld [vmem:[#allocation2 + $0xc] sm:$0xf]
    %v113 = vld [vmem:[#allocation2 + $0x10] sm:$0xf]
    %v114 = vld [vmem:[#allocation2 + $0x14] sm:$0xf]
    %v115 = vld [vmem:[#allocation2 + $0x18] sm:$0xf]
    %v116 = vld [vmem:[#allocation2 + $0x1c] sm:$0xf]
    %v117 = vld [vmem:[#allocation2 + $0x20] sm:$0xf]
    %v118 = vld [vmem:[#allocation2 + $0x24] sm:$0xf]
    %v119 = vld [vmem:[#allocation2 + $0x28] sm:$0xf]
    %v120 = vld [vmem:[#allocation2 + $0x2c] sm:$0xf]
    %v121 = vld [vmem:[#allocation2 + $0x30] sm:$0xf]
    %v122 = vld [vmem:[#allocation2 + $0x34] sm:$0xf]
    %v123 = vld [vmem:[#allocation2 + $0x38] sm:$0xf]
    %v124 = vld [vmem:[#allocation2 + $0x3c] sm:$0xf]
    %s125 = scalar_lea.vmem [#allocation2], 64
    %v126 = vld [vmem:[%s125] sm:$0xf]
    %v127 = vld [vmem:[%s125 + $0x4] sm:$0xf]
    %v128 = vld [vmem:[%s125 + $0x8] sm:$0xf]
    %v129 = vld [vmem:[%s125 + $0xc] sm:$0xf]
    %v130 = vld [vmem:[%s125 + $0x10] sm:$0xf]
    %v131 = vld [vmem:[%s125 + $0x14] sm:$0xf]
    %v132 = vld [vmem:[%s125 + $0x18] sm:$0xf]
    %v133 = vld [vmem:[%s125 + $0x1c] sm:$0xf]
    %v134 = vld [vmem:[%s125 + $0x20] sm:$0xf]
    %v135 = vld [vmem:[%s125 + $0x24] sm:$0xf]
    %v136 = vld [vmem:[%s125 + $0x28] sm:$0xf]
    %v137 = vld [vmem:[%s125 + $0x2c] sm:$0xf]
    %v138 = vld [vmem:[%s125 + $0x30] sm:$0xf]
    %v139 = vld [vmem:[%s125 + $0x34] sm:$0xf]
    %v140 = vld [vmem:[%s125 + $0x38] sm:$0xf]
    %v141 = vld [vmem:[%s125 + $0x3c] sm:$0xf]
    %v158 = vunpack.c.l.b16 %v126
    %v159 = vunpack.c.l.b16 %v127
    %v160 = vunpack.c.l.b16 %v128
    %v161 = vunpack.c.l.b16 %v129
    %v162 = vunpack.c.l.b16 %v130
    %v163 = vunpack.c.l.b16 %v131
    %v164 = vunpack.c.l.b16 %v132
    %v165 = vunpack.c.l.b16 %v133
    %v166 = vunpack.c.l.b16 %v134
    %v167 = vunpack.c.l.b16 %v135
    %v168 = vunpack.c.l.b16 %v136
    %v169 = vunpack.c.l.b16 %v137
    %v170 = vunpack.c.l.b16 %v138
    %v171 = vunpack.c.l.b16 %v139
    %v172 = vunpack.c.l.b16 %v140
    %v173 = vunpack.c.l.b16 %v141
    %v174 = vpack.c.b16 %v159, %v158
    %v175 = vpack.c.b16 %v161, %v160
    %v176 = vpack.c.b16 %v163, %v162
    %v177 = vpack.c.b16 %v165, %v164
    %v178 = vpack.c.b16 %v167, %v166
    %v179 = vpack.c.b16 %v169, %v168
    %v180 = vpack.c.b16 %v171, %v170
    %v181 = vpack.c.b16 %v173, %v172
    %192 = vrot.lane.b32.xlu0 %v85, 127
    %v193 = vpop.permute.xlu0 %192
    %194 = vrot.lane.b32.xlu0 %v87, 127
    %v195 = vpop.permute.xlu0 %194
    %198 = vmatprep.subr.bf16.mxu0 0
    %199 = vmatpush1.bf16.msra.mxu0 %v193
    %200 = vmatprep.subr.bf16.mxu0 0
    %201 = vmatpush1.bf16.msra.mxu0 %v195
    %202 = vmatprep.subr.bf16.mxu0 0
    %203 = vmatpush1.bf16.msra.mxu0 %v195
    %204 = vmatprep.subr.bf16.mxu0 0
    %205 = vmatpush1.bf16.msra.mxu0 %v195
    %206 = vmatprep.subr.bf16.mxu0 0
    %207 = vmatpush1.bf16.msra.mxu0 %v195
    %208 = vmatprep.subr.bf16.mxu0 0
    %209 = vmatpush1.bf16.msra.mxu0 %v195
    %210 = vmatprep.subr.bf16.mxu0 0
    %211 = vmatpush1.bf16.msra.mxu0 %v195
    %212 = vmatprep.subr.bf16.mxu0 0
    %213 = vmatpush1.bf16.msra.mxu0 %v195
    %214 = vmatprep.subr.bf16.mxu0 0
    %215 = vmatpush1.bf16.msra.mxu0 0
    %216 = vmatprep.subr.bf16.mxu0 0
    %217 = vmatpush1.bf16.msra.mxu0 0
    %218 = vmatprep.subr.bf16.mxu0 0
    %219 = vmatpush1.bf16.msra.mxu0 0
    %220 = vmatprep.subr.bf16.mxu0 0
    %221 = vmatpush1.bf16.msra.mxu0 0
    %222 = vmatprep.subr.bf16.mxu0 0
    %223 = vmatpush1.bf16.msra.mxu0 0
    %224 = vmatprep.subr.bf16.mxu0 0
    %225 = vmatpush1.bf16.msra.mxu0 0
    %226 = vmatprep.subr.bf16.mxu0 0
    %227 = vmatpush1.bf16.msra.mxu0 0
    %228 = vmatprep.subr.bf16.mxu0 0
    %229 = vmatpush1.bf16.msra.mxu0 0
    %230 = vmatprep.mubr.bf16.mxu0 0
    %231 = vmatmul.mubr.bf16.gmra.mrb[0].mxu0 %v174
    %v232 = vpop.f32.mrb[0].mxu0
    %v233 = vadd.f32 0.0, %v232
    %v234 = vpop.f32.mrb[0].mxu0
    %v235 = vpop.f32.mrb[0].mxu0
    %v236 = vadd.f32 0.0, %v235
    %v237 = vpop.f32.mrb[0].mxu0
    %238 = vmatprep.mubr.bf16.mxu0 0
    %239 = vmatmul.mubr.bf16.gmra.mrb[0].mxu0 %v175
    %v240 = vpop.f32.mrb[0].mxu0
    %v241 = vadd.f32 0.0, %v240
    %v242 = vpop.f32.mrb[0].mxu0
    %v243 = vpop.f32.mrb[0].mxu0
    %v244 = vadd.f32 0.0, %v243
    %v245 = vpop.f32.mrb[0].mxu0
    %246 = vmatprep.mubr.bf16.mxu0 0
    %247 = vmatmul.mubr.bf16.gmra.mrb[0].mxu0 %v176
    %v248 = vpop.f32.mrb[0].mxu0
    %v249 = vadd.f32 0.0, %v248
    %v250 = vpop.f32.mrb[0].mxu0
    %v251 = vpop.f32.mrb[0].mxu0
    %v252 = vadd.f32 0.0, %v251
    %v253 = vpop.f32.mrb[0].mxu0
    %254 = vmatprep.mubr.bf16.mxu0 0
    %255 = vmatmul.mubr.bf16.gmra.mrb[0].mxu0 %v177
    %v256 = vpop.f32.mrb[0].mxu0
    %v257 = vadd.f32 0.0, %v256
    %v258 = vpop.f32.mrb[0].mxu0
    %v259 = vpop.f32.mrb[0].mxu0
    %v260 = vadd.f32 0.0, %v259
    %v261 = vpop.f32.mrb[0].mxu0
    %262 = vmatprep.mubr.bf16.mxu0 0
    %263 = vmatmul.mubr.bf16.gmra.mrb[0].mxu0 %v178
    %v264 = vpop.f32.mrb[0].mxu0
    %v265 = vadd.f32 0.0, %v264
    %v266 = vpop.f32.mrb[0].mxu0
    %v267 = vpop.f32.mrb[0].mxu0
    %v268 = vadd.f32 0.0, %v267
    %v269 = vpop.f32.mrb[0].mxu0
    %270 = vmatprep.mubr.bf16.mxu0 0
    %271 = vmatmul.mubr.bf16.gmra.mrb[0].mxu0 %v179
    %v272 = vpop.f32.mrb[0].mxu0
    %v273 = vadd.f32 0.0, %v272
    %v274 = vpop.f32.mrb[0].mxu0
    %v275 = vpop.f32.mrb[0].mxu0
    %v276 = vadd.f32 0.0, %v275
    %v277 = vpop.f32.mrb[0].mxu0
    %278 = vmatprep.mubr.bf16.mxu0 0
    %279 = vmatmul.mubr.bf16.gmra.mrb[0].mxu0 %v180
    %v280 = vpop.f32.mrb[0].mxu0
    %v281 = vadd.f32 0.0, %v280
    %v282 = vpop.f32.mrb[0].mxu0
    %v283 = vpop.f32.mrb[0].mxu0
    %v284 = vadd.f32 0.0, %v283
    %v285 = vpop.f32.mrb[0].mxu0
    %286 = vmatprep.mubr.bf16.mxu0 0
    %287 = vmatmul.mubr.bf16.gmra.mrb[0].mxu0 %v181
    %v288 = vpop.f32.mrb[0].mxu0
    %v289 = vadd.f32 0.0, %v288
    %v290 = vpop.f32.mrb[0].mxu0
    %v291 = vpop.f32.mrb[0].mxu0
    %v292 = vadd.f32 0.0, %v291
    %v293 = vpop.f32.mrb[0].mxu0
    %294 = vdwg.mxu0
    %v311 = vunpack.c.l.b16 %v109
    %v312 = vunpack.c.l.b16 %v110
    %v313 = vunpack.c.l.b16 %v111
    %v314 = vunpack.c.l.b16 %v112
    %v315 = vunpack.c.l.b16 %v113
    %v316 = vunpack.c.l.b16 %v114
    %v317 = vunpack.c.l.b16 %v115
    %v318 = vunpack.c.l.b16 %v116
    %v319 = vunpack.c.l.b16 %v117
    %v320 = vunpack.c.l.b16 %v118
    %v321 = vunpack.c.l.b16 %v119
    %v322 = vunpack.c.l.b16 %v120
    %v323 = vunpack.c.l.b16 %v121
    %v324 = vunpack.c.l.b16 %v122
    %v325 = vunpack.c.l.b16 %v123
    %v326 = vunpack.c.l.b16 %v124
    %v327 = vpack.c.b16 %v312, %v311
    %v328 = vpack.c.b16 %v314, %v313
    %v329 = vpack.c.b16 %v316, %v315
    %v330 = vpack.c.b16 %v318, %v317
    %v331 = vpack.c.b16 %v320, %v319
    %v332 = vpack.c.b16 %v322, %v321
    %v333 = vpack.c.b16 %v324, %v323
    %v334 = vpack.c.b16 %v326, %v325
    %343 = vmatprep.subr.bf16.mxu0 0
    %344 = vmatpush1.bf16.msra.mxu0 %v107
    %345 = vmatprep.subr.bf16.mxu0 0
    %346 = vmatpush1.bf16.msra.mxu0 %v108
    %347 = vmatprep.subr.bf16.mxu0 0
    %348 = vmatpush1.bf16.msra.mxu0 %v108
    %349 = vmatprep.subr.bf16.mxu0 0
    %350 = vmatpush1.bf16.msra.mxu0 %v108
    %351 = vmatprep.subr.bf16.mxu0 0
    %352 = vmatpush1.bf16.msra.mxu0 %v108
    %353 = vmatprep.subr.bf16.mxu0 0
    %354 = vmatpush1.bf16.msra.mxu0 %v108
    %355 = vmatprep.subr.bf16.mxu0 0
    %356 = vmatpush1.bf16.msra.mxu0 %v108
    %357 = vmatprep.subr.bf16.mxu0 0
    %358 = vmatpush1.bf16.msra.mxu0 %v108
    %359 = vmatprep.subr.bf16.mxu0 0
    %360 = vmatpush1.bf16.msra.mxu0 0
    %361 = vmatprep.subr.bf16.mxu0 0
    %362 = vmatpush1.bf16.msra.mxu0 0
    %363 = vmatprep.subr.bf16.mxu0 0
    %364 = vmatpush1.bf16.msra.mxu0 0
    %365 = vmatprep.subr.bf16.mxu0 0
    %366 = vmatpush1.bf16.msra.mxu0 0
    %367 = vmatprep.subr.bf16.mxu0 0
    %368 = vmatpush1.bf16.msra.mxu0 0
    %369 = vmatprep.subr.bf16.mxu0 0
    %370 = vmatpush1.bf16.msra.mxu0 0
    %371 = vmatprep.subr.bf16.mxu0 0
    %372 = vmatpush1.bf16.msra.mxu0 0
    %373 = vmatprep.subr.bf16.mxu0 0
    %374 = vmatpush1.bf16.msra.mxu0 0
    %375 = vmatprep.mubr.bf16.mxu0 0
    %376 = vmatmul.mubr.bf16.gmra.mrb[0].mxu0 %v327
    %v377 = vpop.f32.mrb[0].mxu0
    %v378 = vadd.f32 %v233, %v377
    %v379 = vpop.f32.mrb[0].mxu0
    %v380 = vpop.f32.mrb[0].mxu0
    %v381 = vadd.f32 %v236, %v380
    %v382 = vpop.f32.mrb[0].mxu0
    %383 = vmatprep.mubr.bf16.mxu0 0
    %384 = vmatmul.mubr.bf16.gmra.mrb[0].mxu0 %v328
    %v385 = vpop.f32.mrb[0].mxu0
    %v386 = vadd.f32 %v241, %v385
    %v387 = vpop.f32.mrb[0].mxu0
    %v388 = vpop.f32.mrb[0].mxu0
    %v389 = vadd.f32 %v244, %v388
    %v390 = vpop.f32.mrb[0].mxu0
    %391 = vmatprep.mubr.bf16.mxu0 0
    %392 = vmatmul.mubr.bf16.gmra.mrb[0].mxu0 %v329
    %v393 = vpop.f32.mrb[0].mxu0
    %v394 = vadd.f32 %v249, %v393
    %v395 = vpop.f32.mrb[0].mxu0
    %v396 = vpop.f32.mrb[0].mxu0
    %v397 = vadd.f32 %v252, %v396
    %v398 = vpop.f32.mrb[0].mxu0
    %399 = vmatprep.mubr.bf16.mxu0 0
    %400 = vmatmul.mubr.bf16.gmra.mrb[0].mxu0 %v330
    %v401 = vpop.f32.mrb[0].mxu0
    %v402 = vadd.f32 %v257, %v401
    %v403 = vpop.f32.mrb[0].mxu0
    %v404 = vpop.f32.mrb[0].mxu0
    %v405 = vadd.f32 %v260, %v404
    %v406 = vpop.f32.mrb[0].mxu0
    %407 = vmatprep.mubr.bf16.mxu0 0
    %408 = vmatmul.mubr.bf16.gmra.mrb[0].mxu0 %v331
    %v409 = vpop.f32.mrb[0].mxu0
    %v410 = vadd.f32 %v265, %v409
    %v411 = vpop.f32.mrb[0].mxu0
    %v412 = vpop.f32.mrb[0].mxu0
    %v413 = vadd.f32 %v268, %v412
    %v414 = vpop.f32.mrb[0].mxu0
    %415 = vmatprep.mubr.bf16.mxu0 0
    %416 = vmatmul.mubr.bf16.gmra.mrb[0].mxu0 %v332
    %v417 = vpop.f32.mrb[0].mxu0
    %v418 = vadd.f32 %v273, %v417
    %v419 = vpop.f32.mrb[0].mxu0
    %v420 = vpop.f32.mrb[0].mxu0
    %v421 = vadd.f32 %v276, %v420
    %v422 = vpop.f32.mrb[0].mxu0
    %423 = vmatprep.mubr.bf16.mxu0 0
    %424 = vmatmul.mubr.bf16.gmra.mrb[0].mxu0 %v333
    %v425 = vpop.f32.mrb[0].mxu0
    %v426 = vadd.f32 %v281, %v425
    %v427 = vpop.f32.mrb[0].mxu0
    %v428 = vpop.f32.mrb[0].mxu0
    %v429 = vadd.f32 %v284, %v428
    %v430 = vpop.f32.mrb[0].mxu0
    %431 = vmatprep.mubr.bf16.mxu0 0
    %432 = vmatmul.mubr.bf16.gmra.mrb[0].mxu0 %v334
    %v433 = vpop.f32.mrb[0].mxu0
    %v434 = vadd.f32 %v289, %v433
    %v435 = vpop.f32.mrb[0].mxu0
    %v436 = vpop.f32.mrb[0].mxu0
    %v437 = vadd.f32 %v292, %v436
    %v438 = vpop.f32.mrb[0].mxu0
    %439 = vdwg.mxu0
    %vm440 = vmpackc.low %vm99, %vm99
    %v441 = vsel %vm440, 65537, 0
    %v442 = vlaneseq
    %v443 = vshrl.u32 %v442, 7
    %v444 = vsub.s32 0, %v443
    %v445 = vrot.slane %v441, %v444
    %446 = vrot.lane.b32.xlu0 %v445, 2
    %v447 = vpop.permute.xlu0 %446
    %vm448 = vcmp.ne.s16.totalorder %v447, 0
    %v449 = vsel %vm448, %v85, 0
    %v450 = vsel %vm448, %v87, 0
    %s451 = scalar_lea.vmem [#allocation2], 128
    %v452 = vld [vmem:[%s451] sm:$0xf]
    %v453 = vld [vmem:[%s451 + $0x4] sm:$0xf]
    %v454 = vld [vmem:[%s451 + $0x8] sm:$0xf]
    %v455 = vld [vmem:[%s451 + $0xc] sm:$0xf]
    %v456 = vld [vmem:[%s451 + $0x10] sm:$0xf]
    %v457 = vld [vmem:[%s451 + $0x14] sm:$0xf]
    %v458 = vld [vmem:[%s451 + $0x18] sm:$0xf]
    %v459 = vld [vmem:[%s451 + $0x1c] sm:$0xf]
    %v460 = vld [vmem:[%s451 + $0x20] sm:$0xf]
    %v461 = vld [vmem:[%s451 + $0x24] sm:$0xf]
    %v462 = vld [vmem:[%s451 + $0x28] sm:$0xf]
    %v463 = vld [vmem:[%s451 + $0x2c] sm:$0xf]
    %v464 = vld [vmem:[%s451 + $0x30] sm:$0xf]
    %v465 = vld [vmem:[%s451 + $0x34] sm:$0xf]
    %v466 = vld [vmem:[%s451 + $0x38] sm:$0xf]
    %v467 = vld [vmem:[%s451 + $0x3c] sm:$0xf]
    %v484 = vunpack.c.l.b16 %v452
    %v485 = vunpack.c.l.b16 %v453
    %v486 = vunpack.c.l.b16 %v454
    %v487 = vunpack.c.l.b16 %v455
    %v488 = vunpack.c.l.b16 %v456
    %v489 = vunpack.c.l.b16 %v457
    %v490 = vunpack.c.l.b16 %v458
    %v491 = vunpack.c.l.b16 %v459
    %v492 = vunpack.c.l.b16 %v460
    %v493 = vunpack.c.l.b16 %v461
    %v494 = vunpack.c.l.b16 %v462
    %v495 = vunpack.c.l.b16 %v463
    %v496 = vunpack.c.l.b16 %v464
    %v497 = vunpack.c.l.b16 %v465
    %v498 = vunpack.c.l.b16 %v466
    %v499 = vunpack.c.l.b16 %v467
    %v500 = vpack.c.b16 %v485, %v484
    %v501 = vpack.c.b16 %v487, %v486
    %v502 = vpack.c.b16 %v489, %v488
    %v503 = vpack.c.b16 %v491, %v490
    %v504 = vpack.c.b16 %v493, %v492
    %v505 = vpack.c.b16 %v495, %v494
    %v506 = vpack.c.b16 %v497, %v496
    %v507 = vpack.c.b16 %v499, %v498
    %518 = vrot.lane.b32.xlu0 %v449, 126
    %v519 = vpop.permute.xlu0 %518
    %520 = vrot.lane.b32.xlu0 %v450, 126
    %v521 = vpop.permute.xlu0 %520
    %524 = vmatprep.subr.bf16.mxu0 0
    %525 = vmatpush1.bf16.msra.mxu0 %v519
    %526 = vmatprep.subr.bf16.mxu0 0
    %527 = vmatpush1.bf16.msra.mxu0 %v521
    %528 = vmatprep.subr.bf16.mxu0 0
    %529 = vmatpush1.bf16.msra.mxu0 %v521
    %530 = vmatprep.subr.bf16.mxu0 0
    %531 = vmatpush1.bf16.msra.mxu0 %v521
    %532 = vmatprep.subr.bf16.mxu0 0
    %533 = vmatpush1.bf16.msra.mxu0 %v521
    %534 = vmatprep.subr.bf16.mxu0 0
    %535 = vmatpush1.bf16.msra.mxu0 %v521
    %536 = vmatprep.subr.bf16.mxu0 0
    %537 = vmatpush1.bf16.msra.mxu0 %v521
    %538 = vmatprep.subr.bf16.mxu0 0
    %539 = vmatpush1.bf16.msra.mxu0 %v521
    %540 = vmatprep.subr.bf16.mxu0 0
    %541 = vmatpush1.bf16.msra.mxu0 0
    %542 = vmatprep.subr.bf16.mxu0 0
    %543 = vmatpush1.bf16.msra.mxu0 0
    %544 = vmatprep.subr.bf16.mxu0 0
    %545 = vmatpush1.bf16.msra.mxu0 0
    %546 = vmatprep.subr.bf16.mxu0 0
    %547 = vmatpush1.bf16.msra.mxu0 0
    %548 = vmatprep.subr.bf16.mxu0 0
    %549 = vmatpush1.bf16.msra.mxu0 0
    %550 = vmatprep.subr.bf16.mxu0 0
    %551 = vmatpush1.bf16.msra.mxu0 0
    %552 = vmatprep.subr.bf16.mxu0 0
    %553 = vmatpush1.bf16.msra.mxu0 0
    %554 = vmatprep.subr.bf16.mxu0 0
    %555 = vmatpush1.bf16.msra.mxu0 0
    %556 = vmatprep.mubr.bf16.mxu0 0
    %557 = vmatmul.mubr.bf16.gmra.mrb[0].mxu0 %v500
    %v558 = vpop.f32.mrb[0].mxu0
    %v559 = vadd.f32 0.0, %v558
    %v560 = vpop.f32.mrb[0].mxu0
    %v561 = vpop.f32.mrb[0].mxu0
    %v562 = vadd.f32 0.0, %v561
    %v563 = vpop.f32.mrb[0].mxu0
    %564 = vmatprep.mubr.bf16.mxu0 0
    %565 = vmatmul.mubr.bf16.gmra.mrb[0].mxu0 %v501
    %v566 = vpop.f32.mrb[0].mxu0
    %v567 = vadd.f32 0.0, %v566
    %v568 = vpop.f32.mrb[0].mxu0
    %v569 = vpop.f32.mrb[0].mxu0
    %v570 = vadd.f32 0.0, %v569
    %v571 = vpop.f32.mrb[0].mxu0
    %572 = vmatprep.mubr.bf16.mxu0 0
    %573 = vmatmul.mubr.bf16.gmra.mrb[0].mxu0 %v502
    %v574 = vpop.f32.mrb[0].mxu0
    %v575 = vadd.f32 0.0, %v574
    %v576 = vpop.f32.mrb[0].mxu0
    %v577 = vpop.f32.mrb[0].mxu0
    %v578 = vadd.f32 0.0, %v577
    %v579 = vpop.f32.mrb[0].mxu0
    %580 = vmatprep.mubr.bf16.mxu0 0
    %581 = vmatmul.mubr.bf16.gmra.mrb[0].mxu0 %v503
    %v582 = vpop.f32.mrb[0].mxu0
    %v583 = vadd.f32 0.0, %v582
    %v584 = vpop.f32.mrb[0].mxu0
    %v585 = vpop.f32.mrb[0].mxu0
    %v586 = vadd.f32 0.0, %v585
    %v587 = vpop.f32.mrb[0].mxu0
    %588 = vmatprep.mubr.bf16.mxu0 0
    %589 = vmatmul.mubr.bf16.gmra.mrb[0].mxu0 %v504
    %v590 = vpop.f32.mrb[0].mxu0
    %v591 = vadd.f32 0.0, %v590
    %v592 = vpop.f32.mrb[0].mxu0
    %v593 = vpop.f32.mrb[0].mxu0
    %v594 = vadd.f32 0.0, %v593
    %v595 = vpop.f32.mrb[0].mxu0
    %596 = vmatprep.mubr.bf16.mxu0 0
    %597 = vmatmul.mubr.bf16.gmra.mrb[0].mxu0 %v505
    %v598 = vpop.f32.mrb[0].mxu0
    %v599 = vadd.f32 0.0, %v598
    %v600 = vpop.f32.mrb[0].mxu0
    %v601 = vpop.f32.mrb[0].mxu0
    %v602 = vadd.f32 0.0, %v601
    %v603 = vpop.f32.mrb[0].mxu0
    %604 = vmatprep.mubr.bf16.mxu0 0
    %605 = vmatmul.mubr.bf16.gmra.mrb[0].mxu0 %v506
    %v606 = vpop.f32.mrb[0].mxu0
    %v607 = vadd.f32 0.0, %v606
    %v608 = vpop.f32.mrb[0].mxu0
    %v609 = vpop.f32.mrb[0].mxu0
    %v610 = vadd.f32 0.0, %v609
    %v611 = vpop.f32.mrb[0].mxu0
    %612 = vmatprep.mubr.bf16.mxu0 0
    %613 = vmatmul.mubr.bf16.gmra.mrb[0].mxu0 %v507
    %v614 = vpop.f32.mrb[0].mxu0
    %v615 = vadd.f32 0.0, %v614
    %v616 = vpop.f32.mrb[0].mxu0
    %v617 = vpop.f32.mrb[0].mxu0
    %v618 = vadd.f32 0.0, %v617
    %v619 = vpop.f32.mrb[0].mxu0
    %620 = vdwg.mxu0
    %v621 = vadd.f32 %v378, %v559
    %v622 = vadd.f32 %v381, %v562
    %v623 = vadd.f32 %v386, %v567
    %v624 = vadd.f32 %v389, %v570
    %v625 = vadd.f32 %v394, %v575
    %v626 = vadd.f32 %v397, %v578
    %v627 = vadd.f32 %v402, %v583
    %v628 = vadd.f32 %v405, %v586
    %v629 = vadd.f32 %v410, %v591
    %v630 = vadd.f32 %v413, %v594
    %v631 = vadd.f32 %v418, %v599
    %v632 = vadd.f32 %v421, %v602
    %v633 = vadd.f32 %v426, %v607
    %v634 = vadd.f32 %v429, %v610
    %v635 = vadd.f32 %v434, %v615
    %v636 = vadd.f32 %v437, %v618
    %638 = vset.pattern.permute.xlu0 0
    %639 = vperm.xlu0 %638, %v37
    %v640 = vpop.permute.xlu0 %639
    %643 = vset.pattern.permute.xlu0 0
    %644 = vperm.xlu0 %643, %v38
    %v645 = vpop.permute.xlu0 %644
    %648 = vset.pattern.permute.xlu0 0
    %649 = vperm.xlu0 %648, %v39
    %v650 = vpop.permute.xlu0 %649
    %653 = vset.pattern.permute.xlu0 0
    %654 = vperm.xlu0 %653, %v40
    %v655 = vpop.permute.xlu0 %654
    %658 = vset.pattern.permute.xlu0 0
    %659 = vperm.xlu0 %658, %v41
    %v660 = vpop.permute.xlu0 %659
    %663 = vset.pattern.permute.xlu0 0
    %664 = vperm.xlu0 %663, %v42
    %v665 = vpop.permute.xlu0 %664
    %668 = vset.pattern.permute.xlu0 0
    %669 = vperm.xlu0 %668, %v43
    %v670 = vpop.permute.xlu0 %669
    %673 = vset.pattern.permute.xlu0 0
    %674 = vperm.xlu0 %673, %v44
    %v675 = vpop.permute.xlu0 %674
    %678 = vset.pattern.permute.xlu0 0
    %679 = vperm.xlu0 %678, %v45
    %v680 = vpop.permute.xlu0 %679
    %683 = vset.pattern.permute.xlu0 0
    %684 = vperm.xlu0 %683, %v46
    %v685 = vpop.permute.xlu0 %684
    %688 = vset.pattern.permute.xlu0 0
    %689 = vperm.xlu0 %688, %v47
    %v690 = vpop.permute.xlu0 %689
    %693 = vset.pattern.permute.xlu0 0
    %694 = vperm.xlu0 %693, %v48
    %v695 = vpop.permute.xlu0 %694
    %698 = vset.pattern.permute.xlu0 0
    %699 = vperm.xlu0 %698, %v49
    %v700 = vpop.permute.xlu0 %699
    %703 = vset.pattern.permute.xlu0 0
    %704 = vperm.xlu0 %703, %v50
    %v705 = vpop.permute.xlu0 %704
    %708 = vset.pattern.permute.xlu0 0
    %709 = vperm.xlu0 %708, %v51
    %v710 = vpop.permute.xlu0 %709
    %713 = vset.pattern.permute.xlu0 0
    %714 = vperm.xlu0 %713, %v52
    %v715 = vpop.permute.xlu0 %714
    %v717 = vadd.f32 %v621, %v640
    %v718 = vadd.f32 %v622, %v645
    %v719 = vadd.f32 %v623, %v650
    %v720 = vadd.f32 %v624, %v655
    %v721 = vadd.f32 %v625, %v660
    %v722 = vadd.f32 %v626, %v665
    %v723 = vadd.f32 %v627, %v670
    %v724 = vadd.f32 %v628, %v675
    %v725 = vadd.f32 %v629, %v680
    %v726 = vadd.f32 %v630, %v685
    %v727 = vadd.f32 %v631, %v690
    %v728 = vadd.f32 %v632, %v695
    %v729 = vadd.f32 %v633, %v700
    %v730 = vadd.f32 %v634, %v705
    %v731 = vadd.f32 %v635, %v710
    %v732 = vadd.f32 %v636, %v715
    %v733 = vmax.f32 %v717, 0.0
    %v734 = vmax.f32 %v718, 0.0
    %v735 = vmax.f32 %v719, 0.0
    %v736 = vmax.f32 %v720, 0.0
    %v737 = vmax.f32 %v721, 0.0
    %v738 = vmax.f32 %v722, 0.0
    %v739 = vmax.f32 %v723, 0.0
    %v740 = vmax.f32 %v724, 0.0
    %v741 = vmax.f32 %v725, 0.0
    %v742 = vmax.f32 %v726, 0.0
    %v743 = vmax.f32 %v727, 0.0
    %v744 = vmax.f32 %v728, 0.0
    %v745 = vmax.f32 %v729, 0.0
    %v746 = vmax.f32 %v730, 0.0
    %v747 = vmax.f32 %v731, 0.0
    %v748 = vmax.f32 %v732, 0.0
    %v749 = vpack.c.bf16 %v734, %v733
    %v750 = vpack.c.bf16 %v736, %v735
    %v751 = vpack.c.bf16 %v738, %v737
    %v752 = vpack.c.bf16 %v740, %v739
    %v753 = vpack.c.bf16 %v742, %v741
    %v754 = vpack.c.bf16 %v744, %v743
    %v755 = vpack.c.bf16 %v746, %v745
    %v756 = vpack.c.bf16 %v748, %v747
    %765 = vrot.lane.b32.xlu0 %v749, 1
    %v766 = vpop.permute.xlu0 %765
    %767 = vrot.lane.b32.xlu0 %v750, 1
    %v768 = vpop.permute.xlu0 %767
    %769 = vrot.lane.b32.xlu0 %v751, 1
    %v770 = vpop.permute.xlu0 %769
    %771 = vrot.lane.b32.xlu0 %v752, 1
    %v772 = vpop.permute.xlu0 %771
    %773 = vrot.lane.b32.xlu0 %v753, 1
    %v774 = vpop.permute.xlu0 %773
    %775 = vrot.lane.b32.xlu0 %v754, 1
    %v776 = vpop.permute.xlu0 %775
    %777 = vrot.lane.b32.xlu0 %v755, 1
    %v778 = vpop.permute.xlu0 %777
    %779 = vrot.lane.b32.xlu0 %v756, 1
    %v780 = vpop.permute.xlu0 %779
    %v782 = vsel %vm78, 0, %v766
    %v784 = vsel %vm78, 0, %v768
    %v786 = vsel %vm78, 0, %v770
    %v788 = vsel %vm78, 0, %v772
    %v790 = vsel %vm78, 0, %v774
    %v792 = vsel %vm78, 0, %v776
    %v794 = vsel %vm78, 0, %v778
    %v796 = vsel %vm78, 0, %v780
    %v797 = vsel %vm84, %v782, 0
    %v799 = vsel %vm84, %v784, 0
    %v801 = vsel %vm84, %v786, 0
    %v803 = vsel %vm84, %v788, 0
    %v805 = vsel %vm84, %v790, 0
    %v807 = vsel %vm84, %v792, 0
    %v809 = vsel %vm84, %v794, 0
    %v811 = vsel %vm84, %v796, 0
    %v813 = vsel %vm106, %v797, 0
    %v814 = vsel %vm106, %v799, 0
    %v815 = vsel %vm106, %v801, 0
    %v816 = vsel %vm106, %v803, 0
    %v817 = vsel %vm106, %v805, 0
    %v818 = vsel %vm106, %v807, 0
    %v819 = vsel %vm106, %v809, 0
    %v820 = vsel %vm106, %v811, 0
    %s821 = scalar_lea.vmem [#allocation2], 192
    %v822 = vld [vmem:[%s821] sm:$0xf]
    %v823 = vld [vmem:[%s821 + $0x4] sm:$0xf]
    %v824 = vld [vmem:[%s821 + $0x8] sm:$0xf]
    %v825 = vld [vmem:[%s821 + $0xc] sm:$0xf]
    %v826 = vld [vmem:[%s821 + $0x10] sm:$0xf]
    %v827 = vld [vmem:[%s821 + $0x14] sm:$0xf]
    %v828 = vld [vmem:[%s821 + $0x18] sm:$0xf]
    %v829 = vld [vmem:[%s821 + $0x1c] sm:$0xf]
    %v830 = vld [vmem:[%s821 + $0x20] sm:$0xf]
    %v831 = vld [vmem:[%s821 + $0x24] sm:$0xf]
    %v832 = vld [vmem:[%s821 + $0x28] sm:$0xf]
    %v833 = vld [vmem:[%s821 + $0x2c] sm:$0xf]
    %v834 = vld [vmem:[%s821 + $0x30] sm:$0xf]
    %v835 = vld [vmem:[%s821 + $0x34] sm:$0xf]
    %v836 = vld [vmem:[%s821 + $0x38] sm:$0xf]
    %v837 = vld [vmem:[%s821 + $0x3c] sm:$0xf]
    %s838 = scalar_lea.vmem [#allocation2], 256
    %v839 = vld [vmem:[%s838] sm:$0xf]
    %v840 = vld [vmem:[%s838 + $0x4] sm:$0xf]
    %v841 = vld [vmem:[%s838 + $0x8] sm:$0xf]
    %v842 = vld [vmem:[%s838 + $0xc] sm:$0xf]
    %v843 = vld [vmem:[%s838 + $0x10] sm:$0xf]
    %v844 = vld [vmem:[%s838 + $0x14] sm:$0xf]
    %v845 = vld [vmem:[%s838 + $0x18] sm:$0xf]
    %v846 = vld [vmem:[%s838 + $0x1c] sm:$0xf]
    %v847 = vld [vmem:[%s838 + $0x20] sm:$0xf]
    %v848 = vld [vmem:[%s838 + $0x24] sm:$0xf]
    %v849 = vld [vmem:[%s838 + $0x28] sm:$0xf]
    %v850 = vld [vmem:[%s838 + $0x2c] sm:$0xf]
    %v851 = vld [vmem:[%s838 + $0x30] sm:$0xf]
    %v852 = vld [vmem:[%s838 + $0x34] sm:$0xf]
    %v853 = vld [vmem:[%s838 + $0x38] sm:$0xf]
    %v854 = vld [vmem:[%s838 + $0x3c] sm:$0xf]
    %v871 = vunpack.c.l.b16 %v839
    %v872 = vunpack.c.l.b16 %v840
    %v873 = vunpack.c.l.b16 %v841
    %v874 = vunpack.c.l.b16 %v842
    %v875 = vunpack.c.l.b16 %v843
    %v876 = vunpack.c.l.b16 %v844
    %v877 = vunpack.c.l.b16 %v845
    %v878 = vunpack.c.l.b16 %v846
    %v879 = vunpack.c.l.b16 %v847
    %v880 = vunpack.c.l.b16 %v848
    %v881 = vunpack.c.l.b16 %v849
    %v882 = vunpack.c.l.b16 %v850
    %v883 = vunpack.c.l.b16 %v851
    %v884 = vunpack.c.l.b16 %v852
    %v885 = vunpack.c.l.b16 %v853
    %v886 = vunpack.c.l.b16 %v854
    %v887 = vpack.c.b16 %v872, %v871
    %v888 = vpack.c.b16 %v874, %v873
    %v889 = vpack.c.b16 %v876, %v875
    %v890 = vpack.c.b16 %v878, %v877
    %v891 = vpack.c.b16 %v880, %v879
    %v892 = vpack.c.b16 %v882, %v881
    %v893 = vpack.c.b16 %v884, %v883
    %v894 = vpack.c.b16 %v886, %v885
    %911 = vrot.lane.b32.xlu0 %v797, 127
    %v912 = vpop.permute.xlu0 %911
    %913 = vrot.lane.b32.xlu0 %v799, 127
    %v914 = vpop.permute.xlu0 %913
    %915 = vrot.lane.b32.xlu0 %v801, 127
    %v916 = vpop.permute.xlu0 %915
    %917 = vrot.lane.b32.xlu0 %v803, 127
    %v918 = vpop.permute.xlu0 %917
    %919 = vrot.lane.b32.xlu0 %v805, 127
    %v920 = vpop.permute.xlu0 %919
    %921 = vrot.lane.b32.xlu0 %v807, 127
    %v922 = vpop.permute.xlu0 %921
    %923 = vrot.lane.b32.xlu0 %v809, 127
    %v924 = vpop.permute.xlu0 %923
    %925 = vrot.lane.b32.xlu0 %v811, 127
    %v926 = vpop.permute.xlu0 %925
    %935 = vmatprep.subr.bf16.mxu0 0
    %936 = vmatpush1.bf16.msra.mxu0 %v912
    %937 = vmatprep.subr.bf16.mxu0 0
    %938 = vmatpush1.bf16.msra.mxu0 %v914
    %939 = vmatprep.subr.bf16.mxu0 0
    %940 = vmatpush1.bf16.msra.mxu0 %v916
    %941 = vmatprep.subr.bf16.mxu0 0
    %942 = vmatpush1.bf16.msra.mxu0 %v918
    %943 = vmatprep.subr.bf16.mxu0 0
    %944 = vmatpush1.bf16.msra.mxu0 %v920
    %945 = vmatprep.subr.bf16.mxu0 0
    %946 = vmatpush1.bf16.msra.mxu0 %v922
    %947 = vmatprep.subr.bf16.mxu0 0
    %948 = vmatpush1.bf16.msra.mxu0 %v924
    %949 = vmatprep.subr.bf16.mxu0 0
    %950 = vmatpush1.bf16.msra.mxu0 %v926
    %951 = vmatprep.subr.bf16.mxu0 0
    %952 = vmatpush1.bf16.msra.mxu0 0
    %953 = vmatprep.subr.bf16.mxu0 0
    %954 = vmatpush1.bf16.msra.mxu0 0
    %955 = vmatprep.subr.bf16.mxu0 0
    %956 = vmatpush1.bf16.msra.mxu0 0
    %957 = vmatprep.subr.bf16.mxu0 0
    %958 = vmatpush1.bf16.msra.mxu0 0
    %959 = vmatprep.subr.bf16.mxu0 0
    %960 = vmatpush1.bf16.msra.mxu0 0
    %961 = vmatprep.subr.bf16.mxu0 0
    %962 = vmatpush1.bf16.msra.mxu0 0
    %963 = vmatprep.subr.bf16.mxu0 0
    %964 = vmatpush1.bf16.msra.mxu0 0
    %965 = vmatprep.subr.bf16.mxu0 0
    %966 = vmatpush1.bf16.msra.mxu0 0
    %967 = vmatprep.mubr.bf16.mxu0 0
    %968 = vmatmul.mubr.bf16.gmra.mrb[0].mxu0 %v887
    %v969 = vpop.f32.mrb[0].mxu0
    %v970 = vadd.f32 0.0, %v969
    %v971 = vpop.f32.mrb[0].mxu0
    %v972 = vpop.f32.mrb[0].mxu0
    %v973 = vadd.f32 0.0, %v972
    %v974 = vpop.f32.mrb[0].mxu0
    %975 = vmatprep.mubr.bf16.mxu0 0
    %976 = vmatmul.mubr.bf16.gmra.mrb[0].mxu0 %v888
    %v977 = vpop.f32.mrb[0].mxu0
    %v978 = vadd.f32 0.0, %v977
    %v979 = vpop.f32.mrb[0].mxu0
    %v980 = vpop.f32.mrb[0].mxu0
    %v981 = vadd.f32 0.0, %v980
    %v982 = vpop.f32.mrb[0].mxu0
    %983 = vmatprep.mubr.bf16.mxu0 0
    %984 = vmatmul.mubr.bf16.gmra.mrb[0].mxu0 %v889
    %v985 = vpop.f32.mrb[0].mxu0
    %v986 = vadd.f32 0.0, %v985
    %v987 = vpop.f32.mrb[0].mxu0
    %v988 = vpop.f32.mrb[0].mxu0
    %v989 = vadd.f32 0.0, %v988
    %v990 = vpop.f32.mrb[0].mxu0
    %991 = vmatprep.mubr.bf16.mxu0 0
    %992 = vmatmul.mubr.bf16.gmra.mrb[0].mxu0 %v890
    %v993 = vpop.f32.mrb[0].mxu0
    %v994 = vadd.f32 0.0, %v993
    %v995 = vpop.f32.mrb[0].mxu0
    %v996 = vpop.f32.mrb[0].mxu0
    %v997 = vadd.f32 0.0, %v996
    %v998 = vpop.f32.mrb[0].mxu0
    %999 = vmatprep.mubr.bf16.mxu0 0
    %1000 = vmatmul.mubr.bf16.gmra.mrb[0].mxu0 %v891
    %v1001 = vpop.f32.mrb[0].mxu0
    %v1002 = vadd.f32 0.0, %v1001
    %v1003 = vpop.f32.mrb[0].mxu0
    %v1004 = vpop.f32.mrb[0].mxu0
    %v1005 = vadd.f32 0.0, %v1004
    %v1006 = vpop.f32.mrb[0].mxu0
    %1007 = vmatprep.mubr.bf16.mxu0 0
    %1008 = vmatmul.mubr.bf16.gmra.mrb[0].mxu0 %v892
    %v1009 = vpop.f32.mrb[0].mxu0
    %v1010 = vadd.f32 0.0, %v1009
    %v1011 = vpop.f32.mrb[0].mxu0
    %v1012 = vpop.f32.mrb[0].mxu0
    %v1013 = vadd.f32 0.0, %v1012
    %v1014 = vpop.f32.mrb[0].mxu0
    %1015 = vmatprep.mubr.bf16.mxu0 0
    %1016 = vmatmul.mubr.bf16.gmra.mrb[0].mxu0 %v893
    %v1017 = vpop.f32.mrb[0].mxu0
    %v1018 = vadd.f32 0.0, %v1017
    %v1019 = vpop.f32.mrb[0].mxu0
    %v1020 = vpop.f32.mrb[0].mxu0
    %v1021 = vadd.f32 0.0, %v1020
    %v1022 = vpop.f32.mrb[0].mxu0
    %1023 = vmatprep.mubr.bf16.mxu0 0
    %1024 = vmatmul.mubr.bf16.gmra.mrb[0].mxu0 %v894
    %v1025 = vpop.f32.mrb[0].mxu0
    %v1026 = vadd.f32 0.0, %v1025
    %v1027 = vpop.f32.mrb[0].mxu0
    %v1028 = vpop.f32.mrb[0].mxu0
    %v1029 = vadd.f32 0.0, %v1028
    %v1030 = vpop.f32.mrb[0].mxu0
    %1031 = vdwg.mxu0
    %v1048 = vunpack.c.l.b16 %v822
    %v1049 = vunpack.c.l.b16 %v823
    %v1050 = vunpack.c.l.b16 %v824
    %v1051 = vunpack.c.l.b16 %v825
    %v1052 = vunpack.c.l.b16 %v826
    %v1053 = vunpack.c.l.b16 %v827
    %v1054 = vunpack.c.l.b16 %v828
    %v1055 = vunpack.c.l.b16 %v829
    %v1056 = vunpack.c.l.b16 %v830
    %v1057 = vunpack.c.l.b16 %v831
    %v1058 = vunpack.c.l.b16 %v832
    %v1059 = vunpack.c.l.b16 %v833
    %v1060 = vunpack.c.l.b16 %v834
    %v1061 = vunpack.c.l.b16 %v835
    %v1062 = vunpack.c.l.b16 %v836
    %v1063 = vunpack.c.l.b16 %v837
    %v1064 = vpack.c.b16 %v1049, %v1048
    %v1065 = vpack.c.b16 %v1051, %v1050
    %v1066 = vpack.c.b16 %v1053, %v1052
    %v1067 = vpack.c.b16 %v1055, %v1054
    %v1068 = vpack.c.b16 %v1057, %v1056
    %v1069 = vpack.c.b16 %v1059, %v1058
    %v1070 = vpack.c.b16 %v1061, %v1060
    %v1071 = vpack.c.b16 %v1063, %v1062
    %1080 = vmatprep.subr.bf16.mxu0 0
    %1081 = vmatpush1.bf16.msra.mxu0 %v813
    %1082 = vmatprep.subr.bf16.mxu0 0
    %1083 = vmatpush1.bf16.msra.mxu0 %v814
    %1084 = vmatprep.subr.bf16.mxu0 0
    %1085 = vmatpush1.bf16.msra.mxu0 %v815
    %1086 = vmatprep.subr.bf16.mxu0 0
    %1087 = vmatpush1.bf16.msra.mxu0 %v816
    %1088 = vmatprep.subr.bf16.mxu0 0
    %1089 = vmatpush1.bf16.msra.mxu0 %v817
    %1090 = vmatprep.subr.bf16.mxu0 0
    %1091 = vmatpush1.bf16.msra.mxu0 %v818
    %1092 = vmatprep.subr.bf16.mxu0 0
    %1093 = vmatpush1.bf16.msra.mxu0 %v819
    %1094 = vmatprep.subr.bf16.mxu0 0
    %1095 = vmatpush1.bf16.msra.mxu0 %v820
    %1096 = vmatprep.subr.bf16.mxu0 0
    %1097 = vmatpush1.bf16.msra.mxu0 0
    %1098 = vmatprep.subr.bf16.mxu0 0
    %1099 = vmatpush1.bf16.msra.mxu0 0
    %1100 = vmatprep.subr.bf16.mxu0 0
    %1101 = vmatpush1.bf16.msra.mxu0 0
    %1102 = vmatprep.subr.bf16.mxu0 0
    %1103 = vmatpush1.bf16.msra.mxu0 0
    %1104 = vmatprep.subr.bf16.mxu0 0
    %1105 = vmatpush1.bf16.msra.mxu0 0
    %1106 = vmatprep.subr.bf16.mxu0 0
    %1107 = vmatpush1.bf16.msra.mxu0 0
    %1108 = vmatprep.subr.bf16.mxu0 0
    %1109 = vmatpush1.bf16.msra.mxu0 0
    %1110 = vmatprep.subr.bf16.mxu0 0
    %1111 = vmatpush1.bf16.msra.mxu0 0
    %1112 = vmatprep.mubr.bf16.mxu0 0
    %1113 = vmatmul.mubr.bf16.gmra.mrb[0].mxu0 %v1064
    %v1114 = vpop.f32.mrb[0].mxu0
    %v1115 = vadd.f32 %v970, %v1114
    %v1116 = vpop.f32.mrb[0].mxu0
    %v1117 = vpop.f32.mrb[0].mxu0
    %v1118 = vadd.f32 %v973, %v1117
    %v1119 = vpop.f32.mrb[0].mxu0
    %1120 = vmatprep.mubr.bf16.mxu0 0
    %1121 = vmatmul.mubr.bf16.gmra.mrb[0].mxu0 %v1065
    %v1122 = vpop.f32.mrb[0].mxu0
    %v1123 = vadd.f32 %v978, %v1122
    %v1124 = vpop.f32.mrb[0].mxu0
    %v1125 = vpop.f32.mrb[0].mxu0
    %v1126 = vadd.f32 %v981, %v1125
    %v1127 = vpop.f32.mrb[0].mxu0
    %1128 = vmatprep.mubr.bf16.mxu0 0
    %1129 = vmatmul.mubr.bf16.gmra.mrb[0].mxu0 %v1066
    %v1130 = vpop.f32.mrb[0].mxu0
    %v1131 = vadd.f32 %v986, %v1130
    %v1132 = vpop.f32.mrb[0].mxu0
    %v1133 = vpop.f32.mrb[0].mxu0
    %v1134 = vadd.f32 %v989, %v1133
    %v1135 = vpop.f32.mrb[0].mxu0
    %1136 = vmatprep.mubr.bf16.mxu0 0
    %1137 = vmatmul.mubr.bf16.gmra.mrb[0].mxu0 %v1067
    %v1138 = vpop.f32.mrb[0].mxu0
    %v1139 = vadd.f32 %v994, %v1138
    %v1140 = vpop.f32.mrb[0].mxu0
    %v1141 = vpop.f32.mrb[0].mxu0
    %v1142 = vadd.f32 %v997, %v1141
    %v1143 = vpop.f32.mrb[0].mxu0
    %1144 = vmatprep.mubr.bf16.mxu0 0
    %1145 = vmatmul.mubr.bf16.gmra.mrb[0].mxu0 %v1068
    %v1146 = vpop.f32.mrb[0].mxu0
    %v1147 = vadd.f32 %v1002, %v1146
    %v1148 = vpop.f32.mrb[0].mxu0
    %v1149 = vpop.f32.mrb[0].mxu0
    %v1150 = vadd.f32 %v1005, %v1149
    %v1151 = vpop.f32.mrb[0].mxu0
    %1152 = vmatprep.mubr.bf16.mxu0 0
    %1153 = vmatmul.mubr.bf16.gmra.mrb[0].mxu0 %v1069
    %v1154 = vpop.f32.mrb[0].mxu0
    %v1155 = vadd.f32 %v1010, %v1154
    %v1156 = vpop.f32.mrb[0].mxu0
    %v1157 = vpop.f32.mrb[0].mxu0
    %v1158 = vadd.f32 %v1013, %v1157
    %v1159 = vpop.f32.mrb[0].mxu0
    %1160 = vmatprep.mubr.bf16.mxu0 0
    %1161 = vmatmul.mubr.bf16.gmra.mrb[0].mxu0 %v1070
    %v1162 = vpop.f32.mrb[0].mxu0
    %v1163 = vadd.f32 %v1018, %v1162
    %v1164 = vpop.f32.mrb[0].mxu0
    %v1165 = vpop.f32.mrb[0].mxu0
    %v1166 = vadd.f32 %v1021, %v1165
    %v1167 = vpop.f32.mrb[0].mxu0
    %1168 = vmatprep.mubr.bf16.mxu0 0
    %1169 = vmatmul.mubr.bf16.gmra.mrb[0].mxu0 %v1071
    %v1170 = vpop.f32.mrb[0].mxu0
    %v1171 = vadd.f32 %v1026, %v1170
    %v1172 = vpop.f32.mrb[0].mxu0
    %v1173 = vpop.f32.mrb[0].mxu0
    %v1174 = vadd.f32 %v1029, %v1173
    %v1175 = vpop.f32.mrb[0].mxu0
    %1176 = vdwg.mxu0
    %v1177 = vsel %vm448, %v797, 0
    %v1178 = vsel %vm448, %v799, 0
    %v1179 = vsel %vm448, %v801, 0
    %v1180 = vsel %vm448, %v803, 0
    %v1181 = vsel %vm448, %v805, 0
    %v1182 = vsel %vm448, %v807, 0
    %v1183 = vsel %vm448, %v809, 0
    %v1184 = vsel %vm448, %v811, 0
    %s1185 = scalar_lea.vmem [#allocation2], 320
    %v1186 = vld [vmem:[%s1185] sm:$0xf]
    %v1187 = vld [vmem:[%s1185 + $0x4] sm:$0xf]
    %v1188 = vld [vmem:[%s1185 + $0x8] sm:$0xf]
    %v1189 = vld [vmem:[%s1185 + $0xc] sm:$0xf]
    %v1190 = vld [vmem:[%s1185 + $0x10] sm:$0xf]
    %v1191 = vld [vmem:[%s1185 + $0x14] sm:$0xf]
    %v1192 = vld [vmem:[%s1185 + $0x18] sm:$0xf]
    %v1193 = vld [vmem:[%s1185 + $0x1c] sm:$0xf]
    %v1194 = vld [vmem:[%s1185 + $0x20] sm:$0xf]
    %v1195 = vld [vmem:[%s1185 + $0x24] sm:$0xf]
    %v1196 = vld [vmem:[%s1185 + $0x28] sm:$0xf]
    %v1197 = vld [vmem:[%s1185 + $0x2c] sm:$0xf]
    %v1198 = vld [vmem:[%s1185 + $0x30] sm:$0xf]
    %v1199 = vld [vmem:[%s1185 + $0x34] sm:$0xf]
    %v1200 = vld [vmem:[%s1185 + $0x38] sm:$0xf]
    %v1201 = vld [vmem:[%s1185 + $0x3c] sm:$0xf]
    %v1218 = vunpack.c.l.b16 %v1186
    %v1219 = vunpack.c.l.b16 %v1187
    %v1220 = vunpack.c.l.b16 %v1188
    %v1221 = vunpack.c.l.b16 %v1189
    %v1222 = vunpack.c.l.b16 %v1190
    %v1223 = vunpack.c.l.b16 %v1191
    %v1224 = vunpack.c.l.b16 %v1192
    %v1225 = vunpack.c.l.b16 %v1193
    %v1226 = vunpack.c.l.b16 %v1194
    %v1227 = vunpack.c.l.b16 %v1195
    %v1228 = vunpack.c.l.b16 %v1196
    %v1229 = vunpack.c.l.b16 %v1197
    %v1230 = vunpack.c.l.b16 %v1198
    %v1231 = vunpack.c.l.b16 %v1199
    %v1232 = vunpack.c.l.b16 %v1200
    %v1233 = vunpack.c.l.b16 %v1201
    %v1234 = vpack.c.b16 %v1219, %v1218
    %v1235 = vpack.c.b16 %v1221, %v1220
    %v1236 = vpack.c.b16 %v1223, %v1222
    %v1237 = vpack.c.b16 %v1225, %v1224
    %v1238 = vpack.c.b16 %v1227, %v1226
    %v1239 = vpack.c.b16 %v1229, %v1228
    %v1240 = vpack.c.b16 %v1231, %v1230
    %v1241 = vpack.c.b16 %v1233, %v1232
    %1258 = vrot.lane.b32.xlu0 %v1177, 126
    %v1259 = vpop.permute.xlu0 %1258
    %1260 = vrot.lane.b32.xlu0 %v1178, 126
    %v1261 = vpop.permute.xlu0 %1260
    %1262 = vrot.lane.b32.xlu0 %v1179, 126
    %v1263 = vpop.permute.xlu0 %1262
    %1264 = vrot.lane.b32.xlu0 %v1180, 126
    %v1265 = vpop.permute.xlu0 %1264
    %1266 = vrot.lane.b32.xlu0 %v1181, 126
    %v1267 = vpop.permute.xlu0 %1266
    %1268 = vrot.lane.b32.xlu0 %v1182, 126
    %v1269 = vpop.permute.xlu0 %1268
    %1270 = vrot.lane.b32.xlu0 %v1183, 126
    %v1271 = vpop.permute.xlu0 %1270
    %1272 = vrot.lane.b32.xlu0 %v1184, 126
    %v1273 = vpop.permute.xlu0 %1272
    %1282 = vmatprep.subr.bf16.mxu0 0
    %1283 = vmatpush1.bf16.msra.mxu0 %v1259
    %1284 = vmatprep.subr.bf16.mxu0 0
    %1285 = vmatpush1.bf16.msra.mxu0 %v1261
    %1286 = vmatprep.subr.bf16.mxu0 0
    %1287 = vmatpush1.bf16.msra.mxu0 %v1263
    %1288 = vmatprep.subr.bf16.mxu0 0
    %1289 = vmatpush1.bf16.msra.mxu0 %v1265
    %1290 = vmatprep.subr.bf16.mxu0 0
    %1291 = vmatpush1.bf16.msra.mxu0 %v1267
    %1292 = vmatprep.subr.bf16.mxu0 0
    %1293 = vmatpush1.bf16.msra.mxu0 %v1269
    %1294 = vmatprep.subr.bf16.mxu0 0
    %1295 = vmatpush1.bf16.msra.mxu0 %v1271
    %1296 = vmatprep.subr.bf16.mxu0 0
    %1297 = vmatpush1.bf16.msra.mxu0 %v1273
    %1298 = vmatprep.subr.bf16.mxu0 0
    %1299 = vmatpush1.bf16.msra.mxu0 0
    %1300 = vmatprep.subr.bf16.mxu0 0
    %1301 = vmatpush1.bf16.msra.mxu0 0
    %1302 = vmatprep.subr.bf16.mxu0 0
    %1303 = vmatpush1.bf16.msra.mxu0 0
    %1304 = vmatprep.subr.bf16.mxu0 0
    %1305 = vmatpush1.bf16.msra.mxu0 0
    %1306 = vmatprep.subr.bf16.mxu0 0
    %1307 = vmatpush1.bf16.msra.mxu0 0
    %1308 = vmatprep.subr.bf16.mxu0 0
    %1309 = vmatpush1.bf16.msra.mxu0 0
    %1310 = vmatprep.subr.bf16.mxu0 0
    %1311 = vmatpush1.bf16.msra.mxu0 0
    %1312 = vmatprep.subr.bf16.mxu0 0
    %1313 = vmatpush1.bf16.msra.mxu0 0
    %1314 = vmatprep.mubr.bf16.mxu0 0
    %1315 = vmatmul.mubr.bf16.gmra.mrb[0].mxu0 %v1234
    %v1316 = vpop.f32.mrb[0].mxu0
    %v1317 = vadd.f32 0.0, %v1316
    %v1318 = vpop.f32.mrb[0].mxu0
    %v1319 = vpop.f32.mrb[0].mxu0
    %v1320 = vadd.f32 0.0, %v1319
    %v1321 = vpop.f32.mrb[0].mxu0
    %1322 = vmatprep.mubr.bf16.mxu0 0
    %1323 = vmatmul.mubr.bf16.gmra.mrb[0].mxu0 %v1235
    %v1324 = vpop.f32.mrb[0].mxu0
    %v1325 = vadd.f32 0.0, %v1324
    %v1326 = vpop.f32.mrb[0].mxu0
    %v1327 = vpop.f32.mrb[0].mxu0
    %v1328 = vadd.f32 0.0, %v1327
    %v1329 = vpop.f32.mrb[0].mxu0
    %1330 = vmatprep.mubr.bf16.mxu0 0
    %1331 = vmatmul.mubr.bf16.gmra.mrb[0].mxu0 %v1236
    %v1332 = vpop.f32.mrb[0].mxu0
    %v1333 = vadd.f32 0.0, %v1332
    %v1334 = vpop.f32.mrb[0].mxu0
    %v1335 = vpop.f32.mrb[0].mxu0
    %v1336 = vadd.f32 0.0, %v1335
    %v1337 = vpop.f32.mrb[0].mxu0
    %1338 = vmatprep.mubr.bf16.mxu0 0
    %1339 = vmatmul.mubr.bf16.gmra.mrb[0].mxu0 %v1237
    %v1340 = vpop.f32.mrb[0].mxu0
    %v1341 = vadd.f32 0.0, %v1340
    %v1342 = vpop.f32.mrb[0].mxu0
    %v1343 = vpop.f32.mrb[0].mxu0
    %v1344 = vadd.f32 0.0, %v1343
    %v1345 = vpop.f32.mrb[0].mxu0
    %1346 = vmatprep.mubr.bf16.mxu0 0
    %1347 = vmatmul.mubr.bf16.gmra.mrb[0].mxu0 %v1238
    %v1348 = vpop.f32.mrb[0].mxu0
    %v1349 = vadd.f32 0.0, %v1348
    %v1350 = vpop.f32.mrb[0].mxu0
    %v1351 = vpop.f32.mrb[0].mxu0
    %v1352 = vadd.f32 0.0, %v1351
    %v1353 = vpop.f32.mrb[0].mxu0
    %1354 = vmatprep.mubr.bf16.mxu0 0
    %1355 = vmatmul.mubr.bf16.gmra.mrb[0].mxu0 %v1239
    %v1356 = vpop.f32.mrb[0].mxu0
    %v1357 = vadd.f32 0.0, %v1356
    %v1358 = vpop.f32.mrb[0].mxu0
    %v1359 = vpop.f32.mrb[0].mxu0
    %v1360 = vadd.f32 0.0, %v1359
    %v1361 = vpop.f32.mrb[0].mxu0
    %1362 = vmatprep.mubr.bf16.mxu0 0
    %1363 = vmatmul.mubr.bf16.gmra.mrb[0].mxu0 %v1240
    %v1364 = vpop.f32.mrb[0].mxu0
    %v1365 = vadd.f32 0.0, %v1364
    %v1366 = vpop.f32.mrb[0].mxu0
    %v1367 = vpop.f32.mrb[0].mxu0
    %v1368 = vadd.f32 0.0, %v1367
    %v1369 = vpop.f32.mrb[0].mxu0
    %1370 = vmatprep.mubr.bf16.mxu0 0
    %1371 = vmatmul.mubr.bf16.gmra.mrb[0].mxu0 %v1241
    %v1372 = vpop.f32.mrb[0].mxu0
    %v1373 = vadd.f32 0.0, %v1372
    %v1374 = vpop.f32.mrb[0].mxu0
    %v1375 = vpop.f32.mrb[0].mxu0
    %v1376 = vadd.f32 0.0, %v1375
    %v1377 = vpop.f32.mrb[0].mxu0
    %1378 = vdwg.mxu0
    %v1379 = vadd.f32 %v1115, %v1317
    %v1380 = vadd.f32 %v1118, %v1320
    %v1381 = vadd.f32 %v1123, %v1325
    %v1382 = vadd.f32 %v1126, %v1328
    %v1383 = vadd.f32 %v1131, %v1333
    %v1384 = vadd.f32 %v1134, %v1336
    %v1385 = vadd.f32 %v1139, %v1341
    %v1386 = vadd.f32 %v1142, %v1344
    %v1387 = vadd.f32 %v1147, %v1349
    %v1388 = vadd.f32 %v1150, %v1352
    %v1389 = vadd.f32 %v1155, %v1357
    %v1390 = vadd.f32 %v1158, %v1360
    %v1391 = vadd.f32 %v1163, %v1365
    %v1392 = vadd.f32 %v1166, %v1368
    %v1393 = vadd.f32 %v1171, %v1373
    %v1394 = vadd.f32 %v1174, %v1376
    %1395 = vset.pattern.permute.xlu0 1
    %1396 = vperm.xlu0 %1395, %v37
    %v1397 = vpop.permute.xlu0 %1396
    %1399 = vset.pattern.permute.xlu0 1
    %1400 = vperm.xlu0 %1399, %v38
    %v1401 = vpop.permute.xlu0 %1400
    %1403 = vset.pattern.permute.xlu0 1
    %1404 = vperm.xlu0 %1403, %v39
    %v1405 = vpop.permute.xlu0 %1404
    %1407 = vset.pattern.permute.xlu0 1
    %1408 = vperm.xlu0 %1407, %v40
    %v1409 = vpop.permute.xlu0 %1408
    %1411 = vset.pattern.permute.xlu0 1
    %1412 = vperm.xlu0 %1411, %v41
    %v1413 = vpop.permute.xlu0 %1412
    %1415 = vset.pattern.permute.xlu0 1
    %1416 = vperm.xlu0 %1415, %v42
    %v1417 = vpop.permute.xlu0 %1416
    %1419 = vset.pattern.permute.xlu0 1
    %1420 = vperm.xlu0 %1419, %v43
    %v1421 = vpop.permute.xlu0 %1420
    %1423 = vset.pattern.permute.xlu0 1
    %1424 = vperm.xlu0 %1423, %v44
    %v1425 = vpop.permute.xlu0 %1424
    %1427 = vset.pattern.permute.xlu0 1
    %1428 = vperm.xlu0 %1427, %v45
    %v1429 = vpop.permute.xlu0 %1428
    %1431 = vset.pattern.permute.xlu0 1
    %1432 = vperm.xlu0 %1431, %v46
    %v1433 = vpop.permute.xlu0 %1432
    %1435 = vset.pattern.permute.xlu0 1
    %1436 = vperm.xlu0 %1435, %v47
    %v1437 = vpop.permute.xlu0 %1436
    %1439 = vset.pattern.permute.xlu0 1
    %1440 = vperm.xlu0 %1439, %v48
    %v1441 = vpop.permute.xlu0 %1440
    %1443 = vset.pattern.permute.xlu0 1
    %1444 = vperm.xlu0 %1443, %v49
    %v1445 = vpop.permute.xlu0 %1444
    %1447 = vset.pattern.permute.xlu0 1
    %1448 = vperm.xlu0 %1447, %v50
    %v1449 = vpop.permute.xlu0 %1448
    %1451 = vset.pattern.permute.xlu0 1
    %1452 = vperm.xlu0 %1451, %v51
    %v1453 = vpop.permute.xlu0 %1452
    %1455 = vset.pattern.permute.xlu0 1
    %1456 = vperm.xlu0 %1455, %v52
    %v1457 = vpop.permute.xlu0 %1456
    %v1459 = vadd.f32 %v1379, %v1397
    %v1460 = vadd.f32 %v1380, %v1401
    %v1461 = vadd.f32 %v1381, %v1405
    %v1462 = vadd.f32 %v1382, %v1409
    %v1463 = vadd.f32 %v1383, %v1413
    %v1464 = vadd.f32 %v1384, %v1417
    %v1465 = vadd.f32 %v1385, %v1421
    %v1466 = vadd.f32 %v1386, %v1425
    %v1467 = vadd.f32 %v1387, %v1429
    %v1468 = vadd.f32 %v1388, %v1433
    %v1469 = vadd.f32 %v1389, %v1437
    %v1470 = vadd.f32 %v1390, %v1441
    %v1471 = vadd.f32 %v1391, %v1445
    %v1472 = vadd.f32 %v1392, %v1449
    %v1473 = vadd.f32 %v1393, %v1453
    %v1474 = vadd.f32 %v1394, %v1457
    %v1475 = vmax.f32 %v1459, 0.0
    %v1476 = vmax.f32 %v1460, 0.0
    %v1477 = vmax.f32 %v1461, 0.0
    %v1478 = vmax.f32 %v1462, 0.0
    %v1479 = vmax.f32 %v1463, 0.0
    %v1480 = vmax.f32 %v1464, 0.0
    %v1481 = vmax.f32 %v1465, 0.0
    %v1482 = vmax.f32 %v1466, 0.0
    %v1483 = vmax.f32 %v1467, 0.0
    %v1484 = vmax.f32 %v1468, 0.0
    %v1485 = vmax.f32 %v1469, 0.0
    %v1486 = vmax.f32 %v1470, 0.0
    %v1487 = vmax.f32 %v1471, 0.0
    %v1488 = vmax.f32 %v1472, 0.0
    %v1489 = vmax.f32 %v1473, 0.0
    %v1490 = vmax.f32 %v1474, 0.0
    %v1491 = vld [vmem:[%s3] sm:$0xf]
    %v1492 = vld [vmem:[%s3 + $0x4] sm:$0xf]
    %v1493 = vld [vmem:[%s3 + $0x8] sm:$0xf]
    %v1494 = vld [vmem:[%s3 + $0xc] sm:$0xf]
    %v1495 = vld [vmem:[%s3 + $0x10] sm:$0xf]
    %v1496 = vld [vmem:[%s3 + $0x14] sm:$0xf]
    %v1497 = vld [vmem:[%s3 + $0x18] sm:$0xf]
    %v1498 = vld [vmem:[%s3 + $0x1c] sm:$0xf]
    %v1499 = vld [vmem:[%s3 + $0x20] sm:$0xf]
    %v1500 = vld [vmem:[%s3 + $0x24] sm:$0xf]
    %v1501 = vld [vmem:[%s3 + $0x28] sm:$0xf]
    %v1502 = vld [vmem:[%s3 + $0x2c] sm:$0xf]
    %v1503 = vld [vmem:[%s3 + $0x30] sm:$0xf]
    %v1504 = vld [vmem:[%s3 + $0x34] sm:$0xf]
    %v1505 = vld [vmem:[%s3 + $0x38] sm:$0xf]
    %v1506 = vld [vmem:[%s3 + $0x3c] sm:$0xf]
    %v1507 = vpack.c.bf16 %v1476, %v1475
    %v1508 = vpack.c.bf16 %v1478, %v1477
    %v1509 = vpack.c.bf16 %v1480, %v1479
    %v1510 = vpack.c.bf16 %v1482, %v1481
    %v1511 = vpack.c.bf16 %v1484, %v1483
    %v1512 = vpack.c.bf16 %v1486, %v1485
    %v1513 = vpack.c.bf16 %v1488, %v1487
    %v1514 = vpack.c.bf16 %v1490, %v1489
    %1516 = vset.pattern.permute.xlu0 0
    %1517 = vperm.xlu0 %1516, %v53
    %v1518 = vpop.permute.xlu0 %1517
    %1521 = vset.pattern.permute.xlu0 0
    %1522 = vperm.xlu0 %1521, %v54
    %v1523 = vpop.permute.xlu0 %1522
    %1526 = vset.pattern.permute.xlu0 0
    %1527 = vperm.xlu0 %1526, %v55
    %v1528 = vpop.permute.xlu0 %1527
    %1531 = vset.pattern.permute.xlu0 0
    %1532 = vperm.xlu0 %1531, %v56
    %v1533 = vpop.permute.xlu0 %1532
    %1536 = vset.pattern.permute.xlu0 0
    %1537 = vperm.xlu0 %1536, %v57
    %v1538 = vpop.permute.xlu0 %1537
    %1541 = vset.pattern.permute.xlu0 0
    %1542 = vperm.xlu0 %1541, %v58
    %v1543 = vpop.permute.xlu0 %1542
    %1546 = vset.pattern.permute.xlu0 0
    %1547 = vperm.xlu0 %1546, %v59
    %v1548 = vpop.permute.xlu0 %1547
    %1551 = vset.pattern.permute.xlu0 0
    %1552 = vperm.xlu0 %1551, %v60
    %v1553 = vpop.permute.xlu0 %1552
    %1556 = vset.pattern.permute.xlu0 0
    %1557 = vperm.xlu0 %1556, %v61
    %v1558 = vpop.permute.xlu0 %1557
    %1561 = vset.pattern.permute.xlu0 0
    %1562 = vperm.xlu0 %1561, %v62
    %v1563 = vpop.permute.xlu0 %1562
    %1566 = vset.pattern.permute.xlu0 0
    %1567 = vperm.xlu0 %1566, %v63
    %v1568 = vpop.permute.xlu0 %1567
    %1571 = vset.pattern.permute.xlu0 0
    %1572 = vperm.xlu0 %1571, %v64
    %v1573 = vpop.permute.xlu0 %1572
    %1576 = vset.pattern.permute.xlu0 0
    %1577 = vperm.xlu0 %1576, %v65
    %v1578 = vpop.permute.xlu0 %1577
    %1581 = vset.pattern.permute.xlu0 0
    %1582 = vperm.xlu0 %1581, %v66
    %v1583 = vpop.permute.xlu0 %1582
    %1586 = vset.pattern.permute.xlu0 0
    %1587 = vperm.xlu0 %1586, %v67
    %v1588 = vpop.permute.xlu0 %1587
    %1591 = vset.pattern.permute.xlu0 0
    %1592 = vperm.xlu0 %1591, %v68
    %v1593 = vpop.permute.xlu0 %1592
    %v1611 = vunpack.c.l.b16 %v1491
    %v1612 = vunpack.c.l.b16 %v1492
    %v1613 = vunpack.c.l.b16 %v1493
    %v1614 = vunpack.c.l.b16 %v1494
    %v1615 = vunpack.c.l.b16 %v1495
    %v1616 = vunpack.c.l.b16 %v1496
    %v1617 = vunpack.c.l.b16 %v1497
    %v1618 = vunpack.c.l.b16 %v1498
    %v1619 = vunpack.c.l.b16 %v1499
    %v1620 = vunpack.c.l.b16 %v1500
    %v1621 = vunpack.c.l.b16 %v1501
    %v1622 = vunpack.c.l.b16 %v1502
    %v1623 = vunpack.c.l.b16 %v1503
    %v1624 = vunpack.c.l.b16 %v1504
    %v1625 = vunpack.c.l.b16 %v1505
    %v1626 = vunpack.c.l.b16 %v1506
    %v1627 = vpack.c.b16 %v1612, %v1611
    %v1628 = vpack.c.b16 %v1614, %v1613
    %v1629 = vpack.c.b16 %v1616, %v1615
    %v1630 = vpack.c.b16 %v1618, %v1617
    %v1631 = vpack.c.b16 %v1620, %v1619
    %v1632 = vpack.c.b16 %v1622, %v1621
    %v1633 = vpack.c.b16 %v1624, %v1623
    %v1634 = vpack.c.b16 %v1626, %v1625
    %1643 = vmatprep.subr.bf16.mxu0 0
    %1644 = vmatpush1.bf16.msra.mxu0 %v1507
    %1645 = vmatprep.subr.bf16.mxu0 0
    %1646 = vmatpush1.bf16.msra.mxu0 %v1508
    %1647 = vmatprep.subr.bf16.mxu0 0
    %1648 = vmatpush1.bf16.msra.mxu0 %v1509
    %1649 = vmatprep.subr.bf16.mxu0 0
    %1650 = vmatpush1.bf16.msra.mxu0 %v1510
    %1651 = vmatprep.subr.bf16.mxu0 0
    %1652 = vmatpush1.bf16.msra.mxu0 %v1511
    %1653 = vmatprep.subr.bf16.mxu0 0
    %1654 = vmatpush1.bf16.msra.mxu0 %v1512
    %1655 = vmatprep.subr.bf16.mxu0 0
    %1656 = vmatpush1.bf16.msra.mxu0 %v1513
    %1657 = vmatprep.subr.bf16.mxu0 0
    %1658 = vmatpush1.bf16.msra.mxu0 %v1514
    %1659 = vmatprep.subr.bf16.mxu0 0
    %1660 = vmatpush1.bf16.msra.mxu0 0
    %1661 = vmatprep.subr.bf16.mxu0 0
    %1662 = vmatpush1.bf16.msra.mxu0 0
    %1663 = vmatprep.subr.bf16.mxu0 0
    %1664 = vmatpush1.bf16.msra.mxu0 0
    %1665 = vmatprep.subr.bf16.mxu0 0
    %1666 = vmatpush1.bf16.msra.mxu0 0
    %1667 = vmatprep.subr.bf16.mxu0 0
    %1668 = vmatpush1.bf16.msra.mxu0 0
    %1669 = vmatprep.subr.bf16.mxu0 0
    %1670 = vmatpush1.bf16.msra.mxu0 0
    %1671 = vmatprep.subr.bf16.mxu0 0
    %1672 = vmatpush1.bf16.msra.mxu0 0
    %1673 = vmatprep.subr.bf16.mxu0 0
    %1674 = vmatpush1.bf16.msra.mxu0 0
    %1675 = vmatprep.mubr.bf16.mxu0 0
    %1676 = vmatmul.mubr.bf16.gmra.mrb[0].mxu0 %v1627
    %v1677 = vpop.f32.mrb[0].mxu0
    %v1678 = vadd.f32 %v1518, %v1677
    %v1679 = vpop.f32.mrb[0].mxu0
    %v1680 = vpop.f32.mrb[0].mxu0
    %v1681 = vadd.f32 %v1523, %v1680
    %v1682 = vpop.f32.mrb[0].mxu0
    %1683 = vmatprep.mubr.bf16.mxu0 0
    %1684 = vmatmul.mubr.bf16.gmra.mrb[0].mxu0 %v1628
    %v1685 = vpop.f32.mrb[0].mxu0
    %v1686 = vadd.f32 %v1528, %v1685
    %v1687 = vpop.f32.mrb[0].mxu0
    %v1688 = vpop.f32.mrb[0].mxu0
    %v1689 = vadd.f32 %v1533, %v1688
    %v1690 = vpop.f32.mrb[0].mxu0
    %1691 = vmatprep.mubr.bf16.mxu0 0
    %1692 = vmatmul.mubr.bf16.gmra.mrb[0].mxu0 %v1629
    %v1693 = vpop.f32.mrb[0].mxu0
    %v1694 = vadd.f32 %v1538, %v1693
    %v1695 = vpop.f32.mrb[0].mxu0
    %v1696 = vpop.f32.mrb[0].mxu0
    %v1697 = vadd.f32 %v1543, %v1696
    %v1698 = vpop.f32.mrb[0].mxu0
    %1699 = vmatprep.mubr.bf16.mxu0 0
    %1700 = vmatmul.mubr.bf16.gmra.mrb[0].mxu0 %v1630
    %v1701 = vpop.f32.mrb[0].mxu0
    %v1702 = vadd.f32 %v1548, %v1701
    %v1703 = vpop.f32.mrb[0].mxu0
    %v1704 = vpop.f32.mrb[0].mxu0
    %v1705 = vadd.f32 %v1553, %v1704
    %v1706 = vpop.f32.mrb[0].mxu0
    %1707 = vmatprep.mubr.bf16.mxu0 0
    %1708 = vmatmul.mubr.bf16.gmra.mrb[0].mxu0 %v1631
    %v1709 = vpop.f32.mrb[0].mxu0
    %v1710 = vadd.f32 %v1558, %v1709
    %v1711 = vpop.f32.mrb[0].mxu0
    %v1712 = vpop.f32.mrb[0].mxu0
    %v1713 = vadd.f32 %v1563, %v1712
    %v1714 = vpop.f32.mrb[0].mxu0
    %1715 = vmatprep.mubr.bf16.mxu0 0
    %1716 = vmatmul.mubr.bf16.gmra.mrb[0].mxu0 %v1632
    %v1717 = vpop.f32.mrb[0].mxu0
    %v1718 = vadd.f32 %v1568, %v1717
    %v1719 = vpop.f32.mrb[0].mxu0
    %v1720 = vpop.f32.mrb[0].mxu0
    %v1721 = vadd.f32 %v1573, %v1720
    %v1722 = vpop.f32.mrb[0].mxu0
    %1723 = vmatprep.mubr.bf16.mxu0 0
    %1724 = vmatmul.mubr.bf16.gmra.mrb[0].mxu0 %v1633
    %v1725 = vpop.f32.mrb[0].mxu0
    %v1726 = vadd.f32 %v1578, %v1725
    %v1727 = vpop.f32.mrb[0].mxu0
    %v1728 = vpop.f32.mrb[0].mxu0
    %v1729 = vadd.f32 %v1583, %v1728
    %v1730 = vpop.f32.mrb[0].mxu0
    %1731 = vmatprep.mubr.bf16.mxu0 0
    %1732 = vmatmul.mubr.bf16.gmra.mrb[0].mxu0 %v1634
    %v1733 = vpop.f32.mrb[0].mxu0
    %v1734 = vadd.f32 %v1588, %v1733
    %v1735 = vpop.f32.mrb[0].mxu0
    %v1736 = vpop.f32.mrb[0].mxu0
    %v1737 = vadd.f32 %v1593, %v1736
    %v1738 = vpop.f32.mrb[0].mxu0
    %1739 = vdwg.mxu0
    %v1740 = vadd.f32 %v717, %v1678
    %v1741 = vadd.f32 %v718, %v1681
    %v1742 = vadd.f32 %v719, %v1686
    %v1743 = vadd.f32 %v720, %v1689
    %v1744 = vadd.f32 %v721, %v1694
    %v1745 = vadd.f32 %v722, %v1697
    %v1746 = vadd.f32 %v723, %v1702
    %v1747 = vadd.f32 %v724, %v1705
    %v1748 = vadd.f32 %v725, %v1710
    %v1749 = vadd.f32 %v726, %v1713
    %v1750 = vadd.f32 %v727, %v1718
    %v1751 = vadd.f32 %v728, %v1721
    %v1752 = vadd.f32 %v729, %v1726
    %v1753 = vadd.f32 %v730, %v1729
    %v1754 = vadd.f32 %v731, %v1734
    %v1755 = vadd.f32 %v732, %v1737
    %v1756 = vmax.f32 %v1740, 0.0
    %v1757 = vmax.f32 %v1741, 0.0
    %v1758 = vmax.f32 %v1742, 0.0
    %v1759 = vmax.f32 %v1743, 0.0
    %v1760 = vmax.f32 %v1744, 0.0
    %v1761 = vmax.f32 %v1745, 0.0
    %v1762 = vmax.f32 %v1746, 0.0
    %v1763 = vmax.f32 %v1747, 0.0
    %v1764 = vmax.f32 %v1748, 0.0
    %v1765 = vmax.f32 %v1749, 0.0
    %v1766 = vmax.f32 %v1750, 0.0
    %v1767 = vmax.f32 %v1751, 0.0
    %v1768 = vmax.f32 %v1752, 0.0
    %v1769 = vmax.f32 %v1753, 0.0
    %v1770 = vmax.f32 %v1754, 0.0
    %v1771 = vmax.f32 %v1755, 0.0
    %v1772 = vpack.c.bf16 %v1757, %v1756
    %v1773 = vpack.c.bf16 %v1759, %v1758
    %v1774 = vpack.c.bf16 %v1761, %v1760
    %v1775 = vpack.c.bf16 %v1763, %v1762
    %v1776 = vpack.c.bf16 %v1765, %v1764
    %v1777 = vpack.c.bf16 %v1767, %v1766
    %v1778 = vpack.c.bf16 %v1769, %v1768
    %v1779 = vpack.c.bf16 %v1771, %v1770
    %1788 = vrot.lane.b32.xlu0 %v1772, 1
    %v1789 = vpop.permute.xlu0 %1788
    %1790 = vrot.lane.b32.xlu0 %v1773, 1
    %v1791 = vpop.permute.xlu0 %1790
    %1792 = vrot.lane.b32.xlu0 %v1774, 1
    %v1793 = vpop.permute.xlu0 %1792
    %1794 = vrot.lane.b32.xlu0 %v1775, 1
    %v1795 = vpop.permute.xlu0 %1794
    %1796 = vrot.lane.b32.xlu0 %v1776, 1
    %v1797 = vpop.permute.xlu0 %1796
    %1798 = vrot.lane.b32.xlu0 %v1777, 1
    %v1799 = vpop.permute.xlu0 %1798
    %1800 = vrot.lane.b32.xlu0 %v1778, 1
    %v1801 = vpop.permute.xlu0 %1800
    %1802 = vrot.lane.b32.xlu0 %v1779, 1
    %v1803 = vpop.permute.xlu0 %1802
    %v1805 = vsel %vm78, 0, %v1789
    %v1807 = vsel %vm78, 0, %v1791
    %v1809 = vsel %vm78, 0, %v1793
    %v1811 = vsel %vm78, 0, %v1795
    %v1813 = vsel %vm78, 0, %v1797
    %v1815 = vsel %vm78, 0, %v1799
    %v1817 = vsel %vm78, 0, %v1801
    %v1819 = vsel %vm78, 0, %v1803
    %v1820 = vsel %vm84, %v1805, 0
    %v1822 = vsel %vm84, %v1807, 0
    %v1824 = vsel %vm84, %v1809, 0
    %v1826 = vsel %vm84, %v1811, 0
    %v1828 = vsel %vm84, %v1813, 0
    %v1830 = vsel %vm84, %v1815, 0
    %v1832 = vsel %vm84, %v1817, 0
    %v1834 = vsel %vm84, %v1819, 0
    %v1836 = vsel %vm106, %v1820, 0
    %v1837 = vsel %vm106, %v1822, 0
    %v1838 = vsel %vm106, %v1824, 0
    %v1839 = vsel %vm106, %v1826, 0
    %v1840 = vsel %vm106, %v1828, 0
    %v1841 = vsel %vm106, %v1830, 0
    %v1842 = vsel %vm106, %v1832, 0
    %v1843 = vsel %vm106, %v1834, 0
    %s1844 = scalar_lea.vmem [#allocation2], 384
    %v1845 = vld [vmem:[%s1844] sm:$0xf]
    %v1846 = vld [vmem:[%s1844 + $0x4] sm:$0xf]
    %v1847 = vld [vmem:[%s1844 + $0x8] sm:$0xf]
    %v1848 = vld [vmem:[%s1844 + $0xc] sm:$0xf]
    %v1849 = vld [vmem:[%s1844 + $0x10] sm:$0xf]
    %v1850 = vld [vmem:[%s1844 + $0x14] sm:$0xf]
    %v1851 = vld [vmem:[%s1844 + $0x18] sm:$0xf]
    %v1852 = vld [vmem:[%s1844 + $0x1c] sm:$0xf]
    %v1853 = vld [vmem:[%s1844 + $0x20] sm:$0xf]
    %v1854 = vld [vmem:[%s1844 + $0x24] sm:$0xf]
    %v1855 = vld [vmem:[%s1844 + $0x28] sm:$0xf]
    %v1856 = vld [vmem:[%s1844 + $0x2c] sm:$0xf]
    %v1857 = vld [vmem:[%s1844 + $0x30] sm:$0xf]
    %v1858 = vld [vmem:[%s1844 + $0x34] sm:$0xf]
    %v1859 = vld [vmem:[%s1844 + $0x38] sm:$0xf]
    %v1860 = vld [vmem:[%s1844 + $0x3c] sm:$0xf]
    %s1861 = scalar_lea.vmem [#allocation2], 448
    %v1862 = vld [vmem:[%s1861] sm:$0xf]
    %v1863 = vld [vmem:[%s1861 + $0x4] sm:$0xf]
    %v1864 = vld [vmem:[%s1861 + $0x8] sm:$0xf]
    %v1865 = vld [vmem:[%s1861 + $0xc] sm:$0xf]
    %v1866 = vld [vmem:[%s1861 + $0x10] sm:$0xf]
    %v1867 = vld [vmem:[%s1861 + $0x14] sm:$0xf]
    %v1868 = vld [vmem:[%s1861 + $0x18] sm:$0xf]
    %v1869 = vld [vmem:[%s1861 + $0x1c] sm:$0xf]
    %v1870 = vld [vmem:[%s1861 + $0x20] sm:$0xf]
    %v1871 = vld [vmem:[%s1861 + $0x24] sm:$0xf]
    %v1872 = vld [vmem:[%s1861 + $0x28] sm:$0xf]
    %v1873 = vld [vmem:[%s1861 + $0x2c] sm:$0xf]
    %v1874 = vld [vmem:[%s1861 + $0x30] sm:$0xf]
    %v1875 = vld [vmem:[%s1861 + $0x34] sm:$0xf]
    %v1876 = vld [vmem:[%s1861 + $0x38] sm:$0xf]
    %v1877 = vld [vmem:[%s1861 + $0x3c] sm:$0xf]
    %v1894 = vunpack.c.l.b16 %v1862
    %v1895 = vunpack.c.l.b16 %v1863
    %v1896 = vunpack.c.l.b16 %v1864
    %v1897 = vunpack.c.l.b16 %v1865
    %v1898 = vunpack.c.l.b16 %v1866
    %v1899 = vunpack.c.l.b16 %v1867
    %v1900 = vunpack.c.l.b16 %v1868
    %v1901 = vunpack.c.l.b16 %v1869
    %v1902 = vunpack.c.l.b16 %v1870
    %v1903 = vunpack.c.l.b16 %v1871
    %v1904 = vunpack.c.l.b16 %v1872
    %v1905 = vunpack.c.l.b16 %v1873
    %v1906 = vunpack.c.l.b16 %v1874
    %v1907 = vunpack.c.l.b16 %v1875
    %v1908 = vunpack.c.l.b16 %v1876
    %v1909 = vunpack.c.l.b16 %v1877
    %v1910 = vpack.c.b16 %v1895, %v1894
    %v1911 = vpack.c.b16 %v1897, %v1896
    %v1912 = vpack.c.b16 %v1899, %v1898
    %v1913 = vpack.c.b16 %v1901, %v1900
    %v1914 = vpack.c.b16 %v1903, %v1902
    %v1915 = vpack.c.b16 %v1905, %v1904
    %v1916 = vpack.c.b16 %v1907, %v1906
    %v1917 = vpack.c.b16 %v1909, %v1908
    %1934 = vrot.lane.b32.xlu0 %v1820, 127
    %v1935 = vpop.permute.xlu0 %1934
    %1936 = vrot.lane.b32.xlu0 %v1822, 127
    %v1937 = vpop.permute.xlu0 %1936
    %1938 = vrot.lane.b32.xlu0 %v1824, 127
    %v1939 = vpop.permute.xlu0 %1938
    %1940 = vrot.lane.b32.xlu0 %v1826, 127
    %v1941 = vpop.permute.xlu0 %1940
    %1942 = vrot.lane.b32.xlu0 %v1828, 127
    %v1943 = vpop.permute.xlu0 %1942
    %1944 = vrot.lane.b32.xlu0 %v1830, 127
    %v1945 = vpop.permute.xlu0 %1944
    %1946 = vrot.lane.b32.xlu0 %v1832, 127
    %v1947 = vpop.permute.xlu0 %1946
    %1948 = vrot.lane.b32.xlu0 %v1834, 127
    %v1949 = vpop.permute.xlu0 %1948
    %1958 = vmatprep.subr.bf16.mxu0 0
    %1959 = vmatpush1.bf16.msra.mxu0 %v1935
    %1960 = vmatprep.subr.bf16.mxu0 0
    %1961 = vmatpush1.bf16.msra.mxu0 %v1937
    %1962 = vmatprep.subr.bf16.mxu0 0
    %1963 = vmatpush1.bf16.msra.mxu0 %v1939
    %1964 = vmatprep.subr.bf16.mxu0 0
    %1965 = vmatpush1.bf16.msra.mxu0 %v1941
    %1966 = vmatprep.subr.bf16.mxu0 0
    %1967 = vmatpush1.bf16.msra.mxu0 %v1943
    %1968 = vmatprep.subr.bf16.mxu0 0
    %1969 = vmatpush1.bf16.msra.mxu0 %v1945
    %1970 = vmatprep.subr.bf16.mxu0 0
    %1971 = vmatpush1.bf16.msra.mxu0 %v1947
    %1972 = vmatprep.subr.bf16.mxu0 0
    %1973 = vmatpush1.bf16.msra.mxu0 %v1949
    %1974 = vmatprep.subr.bf16.mxu0 0
    %1975 = vmatpush1.bf16.msra.mxu0 0
    %1976 = vmatprep.subr.bf16.mxu0 0
    %1977 = vmatpush1.bf16.msra.mxu0 0
    %1978 = vmatprep.subr.bf16.mxu0 0
    %1979 = vmatpush1.bf16.msra.mxu0 0
    %1980 = vmatprep.subr.bf16.mxu0 0
    %1981 = vmatpush1.bf16.msra.mxu0 0
    %1982 = vmatprep.subr.bf16.mxu0 0
    %1983 = vmatpush1.bf16.msra.mxu0 0
    %1984 = vmatprep.subr.bf16.mxu0 0
    %1985 = vmatpush1.bf16.msra.mxu0 0
    %1986 = vmatprep.subr.bf16.mxu0 0
    %1987 = vmatpush1.bf16.msra.mxu0 0
    %1988 = vmatprep.subr.bf16.mxu0 0
    %1989 = vmatpush1.bf16.msra.mxu0 0
    %1990 = vmatprep.mubr.bf16.mxu0 0
    %1991 = vmatmul.mubr.bf16.gmra.mrb[0].mxu0 %v1910
    %v1992 = vpop.f32.mrb[0].mxu0
    %v1993 = vadd.f32 0.0, %v1992
    %v1994 = vpop.f32.mrb[0].mxu0
    %v1995 = vpop.f32.mrb[0].mxu0
    %v1996 = vadd.f32 0.0, %v1995
    %v1997 = vpop.f32.mrb[0].mxu0
    %1998 = vmatprep.mubr.bf16.mxu0 0
    %1999 = vmatmul.mubr.bf16.gmra.mrb[0].mxu0 %v1911
    %v2000 = vpop.f32.mrb[0].mxu0
    %v2001 = vadd.f32 0.0, %v2000
    %v2002 = vpop.f32.mrb[0].mxu0
    %v2003 = vpop.f32.mrb[0].mxu0
    %v2004 = vadd.f32 0.0, %v2003
    %v2005 = vpop.f32.mrb[0].mxu0
    %2006 = vmatprep.mubr.bf16.mxu0 0
    %2007 = vmatmul.mubr.bf16.gmra.mrb[0].mxu0 %v1912
    %v2008 = vpop.f32.mrb[0].mxu0
    %v2009 = vadd.f32 0.0, %v2008
    %v2010 = vpop.f32.mrb[0].mxu0
    %v2011 = vpop.f32.mrb[0].mxu0
    %v2012 = vadd.f32 0.0, %v2011
    %v2013 = vpop.f32.mrb[0].mxu0
    %2014 = vmatprep.mubr.bf16.mxu0 0
    %2015 = vmatmul.mubr.bf16.gmra.mrb[0].mxu0 %v1913
    %v2016 = vpop.f32.mrb[0].mxu0
    %v2017 = vadd.f32 0.0, %v2016
    %v2018 = vpop.f32.mrb[0].mxu0
    %v2019 = vpop.f32.mrb[0].mxu0
    %v2020 = vadd.f32 0.0, %v2019
    %v2021 = vpop.f32.mrb[0].mxu0
    %2022 = vmatprep.mubr.bf16.mxu0 0
    %2023 = vmatmul.mubr.bf16.gmra.mrb[0].mxu0 %v1914
    %v2024 = vpop.f32.mrb[0].mxu0
    %v2025 = vadd.f32 0.0, %v2024
    %v2026 = vpop.f32.mrb[0].mxu0
    %v2027 = vpop.f32.mrb[0].mxu0
    %v2028 = vadd.f32 0.0, %v2027
    %v2029 = vpop.f32.mrb[0].mxu0
    %2030 = vmatprep.mubr.bf16.mxu0 0
    %2031 = vmatmul.mubr.bf16.gmra.mrb[0].mxu0 %v1915
    %v2032 = vpop.f32.mrb[0].mxu0
    %v2033 = vadd.f32 0.0, %v2032
    %v2034 = vpop.f32.mrb[0].mxu0
    %v2035 = vpop.f32.mrb[0].mxu0
    %v2036 = vadd.f32 0.0, %v2035
    %v2037 = vpop.f32.mrb[0].mxu0
    %2038 = vmatprep.mubr.bf16.mxu0 0
    %2039 = vmatmul.mubr.bf16.gmra.mrb[0].mxu0 %v1916
    %v2040 = vpop.f32.mrb[0].mxu0
    %v2041 = vadd.f32 0.0, %v2040
    %v2042 = vpop.f32.mrb[0].mxu0
    %v2043 = vpop.f32.mrb[0].mxu0
    %v2044 = vadd.f32 0.0, %v2043
    %v2045 = vpop.f32.mrb[0].mxu0
    %2046 = vmatprep.mubr.bf16.mxu0 0
    %2047 = vmatmul.mubr.bf16.gmra.mrb[0].mxu0 %v1917
    %v2048 = vpop.f32.mrb[0].mxu0
    %v2049 = vadd.f32 0.0, %v2048
    %v2050 = vpop.f32.mrb[0].mxu0
    %v2051 = vpop.f32.mrb[0].mxu0
    %v2052 = vadd.f32 0.0, %v2051
    %v2053 = vpop.f32.mrb[0].mxu0
    %2054 = vdwg.mxu0
    %v2071 = vunpack.c.l.b16 %v1845
    %v2072 = vunpack.c.l.b16 %v1846
    %v2073 = vunpack.c.l.b16 %v1847
    %v2074 = vunpack.c.l.b16 %v1848
    %v2075 = vunpack.c.l.b16 %v1849
    %v2076 = vunpack.c.l.b16 %v1850
    %v2077 = vunpack.c.l.b16 %v1851
    %v2078 = vunpack.c.l.b16 %v1852
    %v2079 = vunpack.c.l.b16 %v1853
    %v2080 = vunpack.c.l.b16 %v1854
    %v2081 = vunpack.c.l.b16 %v1855
    %v2082 = vunpack.c.l.b16 %v1856
    %v2083 = vunpack.c.l.b16 %v1857
    %v2084 = vunpack.c.l.b16 %v1858
    %v2085 = vunpack.c.l.b16 %v1859
    %v2086 = vunpack.c.l.b16 %v1860
    %v2087 = vpack.c.b16 %v2072, %v2071
    %v2088 = vpack.c.b16 %v2074, %v2073
    %v2089 = vpack.c.b16 %v2076, %v2075
    %v2090 = vpack.c.b16 %v2078, %v2077
    %v2091 = vpack.c.b16 %v2080, %v2079
    %v2092 = vpack.c.b16 %v2082, %v2081
    %v2093 = vpack.c.b16 %v2084, %v2083
    %v2094 = vpack.c.b16 %v2086, %v2085
    %2103 = vmatprep.subr.bf16.mxu0 0
    %2104 = vmatpush1.bf16.msra.mxu0 %v1836
    %2105 = vmatprep.subr.bf16.mxu0 0
    %2106 = vmatpush1.bf16.msra.mxu0 %v1837
    %2107 = vmatprep.subr.bf16.mxu0 0
    %2108 = vmatpush1.bf16.msra.mxu0 %v1838
    %2109 = vmatprep.subr.bf16.mxu0 0
    %2110 = vmatpush1.bf16.msra.mxu0 %v1839
    %2111 = vmatprep.subr.bf16.mxu0 0
    %2112 = vmatpush1.bf16.msra.mxu0 %v1840
    %2113 = vmatprep.subr.bf16.mxu0 0
    %2114 = vmatpush1.bf16.msra.mxu0 %v1841
    %2115 = vmatprep.subr.bf16.mxu0 0
    %2116 = vmatpush1.bf16.msra.mxu0 %v1842
    %2117 = vmatprep.subr.bf16.mxu0 0
    %2118 = vmatpush1.bf16.msra.mxu0 %v1843
    %2119 = vmatprep.subr.bf16.mxu0 0
    %2120 = vmatpush1.bf16.msra.mxu0 0
    %2121 = vmatprep.subr.bf16.mxu0 0
    %2122 = vmatpush1.bf16.msra.mxu0 0
    %2123 = vmatprep.subr.bf16.mxu0 0
    %2124 = vmatpush1.bf16.msra.mxu0 0
    %2125 = vmatprep.subr.bf16.mxu0 0
    %2126 = vmatpush1.bf16.msra.mxu0 0
    %2127 = vmatprep.subr.bf16.mxu0 0
    %2128 = vmatpush1.bf16.msra.mxu0 0
    %2129 = vmatprep.subr.bf16.mxu0 0
    %2130 = vmatpush1.bf16.msra.mxu0 0
    %2131 = vmatprep.subr.bf16.mxu0 0
    %2132 = vmatpush1.bf16.msra.mxu0 0
    %2133 = vmatprep.subr.bf16.mxu0 0
    %2134 = vmatpush1.bf16.msra.mxu0 0
    %2135 = vmatprep.mubr.bf16.mxu0 0
    %2136 = vmatmul.mubr.bf16.gmra.mrb[0].mxu0 %v2087
    %v2137 = vpop.f32.mrb[0].mxu0
    %v2138 = vadd.f32 %v1993, %v2137
    %v2139 = vpop.f32.mrb[0].mxu0
    %v2140 = vpop.f32.mrb[0].mxu0
    %v2141 = vadd.f32 %v1996, %v2140
    %v2142 = vpop.f32.mrb[0].mxu0
    %2143 = vmatprep.mubr.bf16.mxu0 0
    %2144 = vmatmul.mubr.bf16.gmra.mrb[0].mxu0 %v2088
    %v2145 = vpop.f32.mrb[0].mxu0
    %v2146 = vadd.f32 %v2001, %v2145
    %v2147 = vpop.f32.mrb[0].mxu0
    %v2148 = vpop.f32.mrb[0].mxu0
    %v2149 = vadd.f32 %v2004, %v2148
    %v2150 = vpop.f32.mrb[0].mxu0
    %2151 = vmatprep.mubr.bf16.mxu0 0
    %2152 = vmatmul.mubr.bf16.gmra.mrb[0].mxu0 %v2089
    %v2153 = vpop.f32.mrb[0].mxu0
    %v2154 = vadd.f32 %v2009, %v2153
    %v2155 = vpop.f32.mrb[0].mxu0
    %v2156 = vpop.f32.mrb[0].mxu0
    %v2157 = vadd.f32 %v2012, %v2156
    %v2158 = vpop.f32.mrb[0].mxu0
    %2159 = vmatprep.mubr.bf16.mxu0 0
    %2160 = vmatmul.mubr.bf16.gmra.mrb[0].mxu0 %v2090
    %v2161 = vpop.f32.mrb[0].mxu0
    %v2162 = vadd.f32 %v2017, %v2161
    %v2163 = vpop.f32.mrb[0].mxu0
    %v2164 = vpop.f32.mrb[0].mxu0
    %v2165 = vadd.f32 %v2020, %v2164
    %v2166 = vpop.f32.mrb[0].mxu0
    %2167 = vmatprep.mubr.bf16.mxu0 0
    %2168 = vmatmul.mubr.bf16.gmra.mrb[0].mxu0 %v2091
    %v2169 = vpop.f32.mrb[0].mxu0
    %v2170 = vadd.f32 %v2025, %v2169
    %v2171 = vpop.f32.mrb[0].mxu0
    %v2172 = vpop.f32.mrb[0].mxu0
    %v2173 = vadd.f32 %v2028, %v2172
    %v2174 = vpop.f32.mrb[0].mxu0
    %2175 = vmatprep.mubr.bf16.mxu0 0
    %2176 = vmatmul.mubr.bf16.gmra.mrb[0].mxu0 %v2092
    %v2177 = vpop.f32.mrb[0].mxu0
    %v2178 = vadd.f32 %v2033, %v2177
    %v2179 = vpop.f32.mrb[0].mxu0
    %v2180 = vpop.f32.mrb[0].mxu0
    %v2181 = vadd.f32 %v2036, %v2180
    %v2182 = vpop.f32.mrb[0].mxu0
    %2183 = vmatprep.mubr.bf16.mxu0 0
    %2184 = vmatmul.mubr.bf16.gmra.mrb[0].mxu0 %v2093
    %v2185 = vpop.f32.mrb[0].mxu0
    %v2186 = vadd.f32 %v2041, %v2185
    %v2187 = vpop.f32.mrb[0].mxu0
    %v2188 = vpop.f32.mrb[0].mxu0
    %v2189 = vadd.f32 %v2044, %v2188
    %v2190 = vpop.f32.mrb[0].mxu0
    %2191 = vmatprep.mubr.bf16.mxu0 0
    %2192 = vmatmul.mubr.bf16.gmra.mrb[0].mxu0 %v2094
    %v2193 = vpop.f32.mrb[0].mxu0
    %v2194 = vadd.f32 %v2049, %v2193
    %v2195 = vpop.f32.mrb[0].mxu0
    %v2196 = vpop.f32.mrb[0].mxu0
    %v2197 = vadd.f32 %v2052, %v2196
    %v2198 = vpop.f32.mrb[0].mxu0
    %2199 = vdwg.mxu0
    %v2200 = vsel %vm448, %v1820, 0
    %v2201 = vsel %vm448, %v1822, 0
    %v2202 = vsel %vm448, %v1824, 0
    %v2203 = vsel %vm448, %v1826, 0
    %v2204 = vsel %vm448, %v1828, 0
    %v2205 = vsel %vm448, %v1830, 0
    %v2206 = vsel %vm448, %v1832, 0
    %v2207 = vsel %vm448, %v1834, 0
    %s2208 = scalar_lea.vmem [#allocation2], 512
    %v2209 = vld [vmem:[%s2208] sm:$0xf]
    %v2210 = vld [vmem:[%s2208 + $0x4] sm:$0xf]
    %v2211 = vld [vmem:[%s2208 + $0x8] sm:$0xf]
    %v2212 = vld [vmem:[%s2208 + $0xc] sm:$0xf]
    %v2213 = vld [vmem:[%s2208 + $0x10] sm:$0xf]
    %v2214 = vld [vmem:[%s2208 + $0x14] sm:$0xf]
    %v2215 = vld [vmem:[%s2208 + $0x18] sm:$0xf]
    %v2216 = vld [vmem:[%s2208 + $0x1c] sm:$0xf]
    %v2217 = vld [vmem:[%s2208 + $0x20] sm:$0xf]
    %v2218 = vld [vmem:[%s2208 + $0x24] sm:$0xf]
    %v2219 = vld [vmem:[%s2208 + $0x28] sm:$0xf]
    %v2220 = vld [vmem:[%s2208 + $0x2c] sm:$0xf]
    %v2221 = vld [vmem:[%s2208 + $0x30] sm:$0xf]
    %v2222 = vld [vmem:[%s2208 + $0x34] sm:$0xf]
    %v2223 = vld [vmem:[%s2208 + $0x38] sm:$0xf]
    %v2224 = vld [vmem:[%s2208 + $0x3c] sm:$0xf]
    %v2241 = vunpack.c.l.b16 %v2209
    %v2242 = vunpack.c.l.b16 %v2210
    %v2243 = vunpack.c.l.b16 %v2211
    %v2244 = vunpack.c.l.b16 %v2212
    %v2245 = vunpack.c.l.b16 %v2213
    %v2246 = vunpack.c.l.b16 %v2214
    %v2247 = vunpack.c.l.b16 %v2215
    %v2248 = vunpack.c.l.b16 %v2216
    %v2249 = vunpack.c.l.b16 %v2217
    %v2250 = vunpack.c.l.b16 %v2218
    %v2251 = vunpack.c.l.b16 %v2219
    %v2252 = vunpack.c.l.b16 %v2220
    %v2253 = vunpack.c.l.b16 %v2221
    %v2254 = vunpack.c.l.b16 %v2222
    %v2255 = vunpack.c.l.b16 %v2223
    %v2256 = vunpack.c.l.b16 %v2224
    %v2257 = vpack.c.b16 %v2242, %v2241
    %v2258 = vpack.c.b16 %v2244, %v2243
    %v2259 = vpack.c.b16 %v2246, %v2245
    %v2260 = vpack.c.b16 %v2248, %v2247
    %v2261 = vpack.c.b16 %v2250, %v2249
    %v2262 = vpack.c.b16 %v2252, %v2251
    %v2263 = vpack.c.b16 %v2254, %v2253
    %v2264 = vpack.c.b16 %v2256, %v2255
    %2281 = vrot.lane.b32.xlu0 %v2200, 126
    %v2282 = vpop.permute.xlu0 %2281
    %2283 = vrot.lane.b32.xlu0 %v2201, 126
    %v2284 = vpop.permute.xlu0 %2283
    %2285 = vrot.lane.b32.xlu0 %v2202, 126
    %v2286 = vpop.permute.xlu0 %2285
    %2287 = vrot.lane.b32.xlu0 %v2203, 126
    %v2288 = vpop.permute.xlu0 %2287
    %2289 = vrot.lane.b32.xlu0 %v2204, 126
    %v2290 = vpop.permute.xlu0 %2289
    %2291 = vrot.lane.b32.xlu0 %v2205, 126
    %v2292 = vpop.permute.xlu0 %2291
    %2293 = vrot.lane.b32.xlu0 %v2206, 126
    %v2294 = vpop.permute.xlu0 %2293
    %2295 = vrot.lane.b32.xlu0 %v2207, 126
    %v2296 = vpop.permute.xlu0 %2295
    %2305 = vmatprep.subr.bf16.mxu0 0
    %2306 = vmatpush1.bf16.msra.mxu0 %v2282
    %2307 = vmatprep.subr.bf16.mxu0 0
    %2308 = vmatpush1.bf16.msra.mxu0 %v2284
    %2309 = vmatprep.subr.bf16.mxu0 0
    %2310 = vmatpush1.bf16.msra.mxu0 %v2286
    %2311 = vmatprep.subr.bf16.mxu0 0
    %2312 = vmatpush1.bf16.msra.mxu0 %v2288
    %2313 = vmatprep.subr.bf16.mxu0 0
    %2314 = vmatpush1.bf16.msra.mxu0 %v2290
    %2315 = vmatprep.subr.bf16.mxu0 0
    %2316 = vmatpush1.bf16.msra.mxu0 %v2292
    %2317 = vmatprep.subr.bf16.mxu0 0
    %2318 = vmatpush1.bf16.msra.mxu0 %v2294
    %2319 = vmatprep.subr.bf16.mxu0 0
    %2320 = vmatpush1.bf16.msra.mxu0 %v2296
    %2321 = vmatprep.subr.bf16.mxu0 0
    %2322 = vmatpush1.bf16.msra.mxu0 0
    %2323 = vmatprep.subr.bf16.mxu0 0
    %2324 = vmatpush1.bf16.msra.mxu0 0
    %2325 = vmatprep.subr.bf16.mxu0 0
    %2326 = vmatpush1.bf16.msra.mxu0 0
    %2327 = vmatprep.subr.bf16.mxu0 0
    %2328 = vmatpush1.bf16.msra.mxu0 0
    %2329 = vmatprep.subr.bf16.mxu0 0
    %2330 = vmatpush1.bf16.msra.mxu0 0
    %2331 = vmatprep.subr.bf16.mxu0 0
    %2332 = vmatpush1.bf16.msra.mxu0 0
    %2333 = vmatprep.subr.bf16.mxu0 0
    %2334 = vmatpush1.bf16.msra.mxu0 0
    %2335 = vmatprep.subr.bf16.mxu0 0
    %2336 = vmatpush1.bf16.msra.mxu0 0
    %2337 = vmatprep.mubr.bf16.mxu0 0
    %2338 = vmatmul.mubr.bf16.gmra.mrb[0].mxu0 %v2257
    %v2339 = vpop.f32.mrb[0].mxu0
    %v2340 = vadd.f32 0.0, %v2339
    %v2341 = vpop.f32.mrb[0].mxu0
    %v2342 = vpop.f32.mrb[0].mxu0
    %v2343 = vadd.f32 0.0, %v2342
    %v2344 = vpop.f32.mrb[0].mxu0
    %2345 = vmatprep.mubr.bf16.mxu0 0
    %2346 = vmatmul.mubr.bf16.gmra.mrb[0].mxu0 %v2258
    %v2347 = vpop.f32.mrb[0].mxu0
    %v2348 = vadd.f32 0.0, %v2347
    %v2349 = vpop.f32.mrb[0].mxu0
    %v2350 = vpop.f32.mrb[0].mxu0
    %v2351 = vadd.f32 0.0, %v2350
    %v2352 = vpop.f32.mrb[0].mxu0
    %2353 = vmatprep.mubr.bf16.mxu0 0
    %2354 = vmatmul.mubr.bf16.gmra.mrb[0].mxu0 %v2259
    %v2355 = vpop.f32.mrb[0].mxu0
    %v2356 = vadd.f32 0.0, %v2355
    %v2357 = vpop.f32.mrb[0].mxu0
    %v2358 = vpop.f32.mrb[0].mxu0
    %v2359 = vadd.f32 0.0, %v2358
    %v2360 = vpop.f32.mrb[0].mxu0
    %2361 = vmatprep.mubr.bf16.mxu0 0
    %2362 = vmatmul.mubr.bf16.gmra.mrb[0].mxu0 %v2260
    %v2363 = vpop.f32.mrb[0].mxu0
    %v2364 = vadd.f32 0.0, %v2363
    %v2365 = vpop.f32.mrb[0].mxu0
    %v2366 = vpop.f32.mrb[0].mxu0
    %v2367 = vadd.f32 0.0, %v2366
    %v2368 = vpop.f32.mrb[0].mxu0
    %2369 = vmatprep.mubr.bf16.mxu0 0
    %2370 = vmatmul.mubr.bf16.gmra.mrb[0].mxu0 %v2261
    %v2371 = vpop.f32.mrb[0].mxu0
    %v2372 = vadd.f32 0.0, %v2371
    %v2373 = vpop.f32.mrb[0].mxu0
    %v2374 = vpop.f32.mrb[0].mxu0
    %v2375 = vadd.f32 0.0, %v2374
    %v2376 = vpop.f32.mrb[0].mxu0
    %2377 = vmatprep.mubr.bf16.mxu0 0
    %2378 = vmatmul.mubr.bf16.gmra.mrb[0].mxu0 %v2262
    %v2379 = vpop.f32.mrb[0].mxu0
    %v2380 = vadd.f32 0.0, %v2379
    %v2381 = vpop.f32.mrb[0].mxu0
    %v2382 = vpop.f32.mrb[0].mxu0
    %v2383 = vadd.f32 0.0, %v2382
    %v2384 = vpop.f32.mrb[0].mxu0
    %2385 = vmatprep.mubr.bf16.mxu0 0
    %2386 = vmatmul.mubr.bf16.gmra.mrb[0].mxu0 %v2263
    %v2387 = vpop.f32.mrb[0].mxu0
    %v2388 = vadd.f32 0.0, %v2387
    %v2389 = vpop.f32.mrb[0].mxu0
    %v2390 = vpop.f32.mrb[0].mxu0
    %v2391 = vadd.f32 0.0, %v2390
    %v2392 = vpop.f32.mrb[0].mxu0
    %2393 = vmatprep.mubr.bf16.mxu0 0
    %2394 = vmatmul.mubr.bf16.gmra.mrb[0].mxu0 %v2264
    %v2395 = vpop.f32.mrb[0].mxu0
    %v2396 = vadd.f32 0.0, %v2395
    %v2397 = vpop.f32.mrb[0].mxu0
    %v2398 = vpop.f32.mrb[0].mxu0
    %v2399 = vadd.f32 0.0, %v2398
    %v2400 = vpop.f32.mrb[0].mxu0
    %2401 = vdwg.mxu0
    %v2402 = vadd.f32 %v2138, %v2340
    %v2403 = vadd.f32 %v2141, %v2343
    %v2404 = vadd.f32 %v2146, %v2348
    %v2405 = vadd.f32 %v2149, %v2351
    %v2406 = vadd.f32 %v2154, %v2356
    %v2407 = vadd.f32 %v2157, %v2359
    %v2408 = vadd.f32 %v2162, %v2364
    %v2409 = vadd.f32 %v2165, %v2367
    %v2410 = vadd.f32 %v2170, %v2372
    %v2411 = vadd.f32 %v2173, %v2375
    %v2412 = vadd.f32 %v2178, %v2380
    %v2413 = vadd.f32 %v2181, %v2383
    %v2414 = vadd.f32 %v2186, %v2388
    %v2415 = vadd.f32 %v2189, %v2391
    %v2416 = vadd.f32 %v2194, %v2396
    %v2417 = vadd.f32 %v2197, %v2399
    %2418 = vset.pattern.permute.xlu0 2
    %2419 = vperm.xlu0 %2418, %v37
    %v2420 = vpop.permute.xlu0 %2419
    %2422 = vset.pattern.permute.xlu0 2
    %2423 = vperm.xlu0 %2422, %v38
    %v2424 = vpop.permute.xlu0 %2423
    %2426 = vset.pattern.permute.xlu0 2
    %2427 = vperm.xlu0 %2426, %v39
    %v2428 = vpop.permute.xlu0 %2427
    %2430 = vset.pattern.permute.xlu0 2
    %2431 = vperm.xlu0 %2430, %v40
    %v2432 = vpop.permute.xlu0 %2431
    %2434 = vset.pattern.permute.xlu0 2
    %2435 = vperm.xlu0 %2434, %v41
    %v2436 = vpop.permute.xlu0 %2435
    %2438 = vset.pattern.permute.xlu0 2
    %2439 = vperm.xlu0 %2438, %v42
    %v2440 = vpop.permute.xlu0 %2439
    %2442 = vset.pattern.permute.xlu0 2
    %2443 = vperm.xlu0 %2442, %v43
    %v2444 = vpop.permute.xlu0 %2443
    %2446 = vset.pattern.permute.xlu0 2
    %2447 = vperm.xlu0 %2446, %v44
    %v2448 = vpop.permute.xlu0 %2447
    %2450 = vset.pattern.permute.xlu0 2
    %2451 = vperm.xlu0 %2450, %v45
    %v2452 = vpop.permute.xlu0 %2451
    %2454 = vset.pattern.permute.xlu0 2
    %2455 = vperm.xlu0 %2454, %v46
    %v2456 = vpop.permute.xlu0 %2455
    %2458 = vset.pattern.permute.xlu0 2
    %2459 = vperm.xlu0 %2458, %v47
    %v2460 = vpop.permute.xlu0 %2459
    %2462 = vset.pattern.permute.xlu0 2
    %2463 = vperm.xlu0 %2462, %v48
    %v2464 = vpop.permute.xlu0 %2463
    %2466 = vset.pattern.permute.xlu0 2
    %2467 = vperm.xlu0 %2466, %v49
    %v2468 = vpop.permute.xlu0 %2467
    %2470 = vset.pattern.permute.xlu0 2
    %2471 = vperm.xlu0 %2470, %v50
    %v2472 = vpop.permute.xlu0 %2471
    %2474 = vset.pattern.permute.xlu0 2
    %2475 = vperm.xlu0 %2474, %v51
    %v2476 = vpop.permute.xlu0 %2475
    %2478 = vset.pattern.permute.xlu0 2
    %2479 = vperm.xlu0 %2478, %v52
    %v2480 = vpop.permute.xlu0 %2479
    %v2482 = vadd.f32 %v2402, %v2420
    %v2483 = vadd.f32 %v2403, %v2424
    %v2484 = vadd.f32 %v2404, %v2428
    %v2485 = vadd.f32 %v2405, %v2432
    %v2486 = vadd.f32 %v2406, %v2436
    %v2487 = vadd.f32 %v2407, %v2440
    %v2488 = vadd.f32 %v2408, %v2444
    %v2489 = vadd.f32 %v2409, %v2448
    %v2490 = vadd.f32 %v2410, %v2452
    %v2491 = vadd.f32 %v2411, %v2456
    %v2492 = vadd.f32 %v2412, %v2460
    %v2493 = vadd.f32 %v2413, %v2464
    %v2494 = vadd.f32 %v2414, %v2468
    %v2495 = vadd.f32 %v2415, %v2472
    %v2496 = vadd.f32 %v2416, %v2476
    %v2497 = vadd.f32 %v2417, %v2480
    %v2498 = vmax.f32 %v2482, 0.0
    %v2499 = vmax.f32 %v2483, 0.0
    %v2500 = vmax.f32 %v2484, 0.0
    %v2501 = vmax.f32 %v2485, 0.0
    %v2502 = vmax.f32 %v2486, 0.0
    %v2503 = vmax.f32 %v2487, 0.0
    %v2504 = vmax.f32 %v2488, 0.0
    %v2505 = vmax.f32 %v2489, 0.0
    %v2506 = vmax.f32 %v2490, 0.0
    %v2507 = vmax.f32 %v2491, 0.0
    %v2508 = vmax.f32 %v2492, 0.0
    %v2509 = vmax.f32 %v2493, 0.0
    %v2510 = vmax.f32 %v2494, 0.0
    %v2511 = vmax.f32 %v2495, 0.0
    %v2512 = vmax.f32 %v2496, 0.0
    %v2513 = vmax.f32 %v2497, 0.0
    %s2514 = scalar_lea.vmem %s3, 64
    %v2515 = vld [vmem:[%s2514] sm:$0xf]
    %v2516 = vld [vmem:[%s2514 + $0x4] sm:$0xf]
    %v2517 = vld [vmem:[%s2514 + $0x8] sm:$0xf]
    %v2518 = vld [vmem:[%s2514 + $0xc] sm:$0xf]
    %v2519 = vld [vmem:[%s2514 + $0x10] sm:$0xf]
    %v2520 = vld [vmem:[%s2514 + $0x14] sm:$0xf]
    %v2521 = vld [vmem:[%s2514 + $0x18] sm:$0xf]
    %v2522 = vld [vmem:[%s2514 + $0x1c] sm:$0xf]
    %v2523 = vld [vmem:[%s2514 + $0x20] sm:$0xf]
    %v2524 = vld [vmem:[%s2514 + $0x24] sm:$0xf]
    %v2525 = vld [vmem:[%s2514 + $0x28] sm:$0xf]
    %v2526 = vld [vmem:[%s2514 + $0x2c] sm:$0xf]
    %v2527 = vld [vmem:[%s2514 + $0x30] sm:$0xf]
    %v2528 = vld [vmem:[%s2514 + $0x34] sm:$0xf]
    %v2529 = vld [vmem:[%s2514 + $0x38] sm:$0xf]
    %v2530 = vld [vmem:[%s2514 + $0x3c] sm:$0xf]
    %v2531 = vpack.c.bf16 %v2499, %v2498
    %v2532 = vpack.c.bf16 %v2501, %v2500
    %v2533 = vpack.c.bf16 %v2503, %v2502
    %v2534 = vpack.c.bf16 %v2505, %v2504
    %v2535 = vpack.c.bf16 %v2507, %v2506
    %v2536 = vpack.c.bf16 %v2509, %v2508
    %v2537 = vpack.c.bf16 %v2511, %v2510
    %v2538 = vpack.c.bf16 %v2513, %v2512
    %2539 = vset.pattern.permute.xlu0 1
    %2540 = vperm.xlu0 %2539, %v53
    %v2541 = vpop.permute.xlu0 %2540
    %2543 = vset.pattern.permute.xlu0 1
    %2544 = vperm.xlu0 %2543, %v54
    %v2545 = vpop.permute.xlu0 %2544
    %2547 = vset.pattern.permute.xlu0 1
    %2548 = vperm.xlu0 %2547, %v55
    %v2549 = vpop.permute.xlu0 %2548
    %2551 = vset.pattern.permute.xlu0 1
    %2552 = vperm.xlu0 %2551, %v56
    %v2553 = vpop.permute.xlu0 %2552
    %2555 = vset.pattern.permute.xlu0 1
    %2556 = vperm.xlu0 %2555, %v57
    %v2557 = vpop.permute.xlu0 %2556
    %2559 = vset.pattern.permute.xlu0 1
    %2560 = vperm.xlu0 %2559, %v58
    %v2561 = vpop.permute.xlu0 %2560
    %2563 = vset.pattern.permute.xlu0 1
    %2564 = vperm.xlu0 %2563, %v59
    %v2565 = vpop.permute.xlu0 %2564
    %2567 = vset.pattern.permute.xlu0 1
    %2568 = vperm.xlu0 %2567, %v60
    %v2569 = vpop.permute.xlu0 %2568
    %2571 = vset.pattern.permute.xlu0 1
    %2572 = vperm.xlu0 %2571, %v61
    %v2573 = vpop.permute.xlu0 %2572
    %2575 = vset.pattern.permute.xlu0 1
    %2576 = vperm.xlu0 %2575, %v62
    %v2577 = vpop.permute.xlu0 %2576
    %2579 = vset.pattern.permute.xlu0 1
    %2580 = vperm.xlu0 %2579, %v63
    %v2581 = vpop.permute.xlu0 %2580
    %2583 = vset.pattern.permute.xlu0 1
    %2584 = vperm.xlu0 %2583, %v64
    %v2585 = vpop.permute.xlu0 %2584
    %2587 = vset.pattern.permute.xlu0 1
    %2588 = vperm.xlu0 %2587, %v65
    %v2589 = vpop.permute.xlu0 %2588
    %2591 = vset.pattern.permute.xlu0 1
    %2592 = vperm.xlu0 %2591, %v66
    %v2593 = vpop.permute.xlu0 %2592
    %2595 = vset.pattern.permute.xlu0 1
    %2596 = vperm.xlu0 %2595, %v67
    %v2597 = vpop.permute.xlu0 %2596
    %2599 = vset.pattern.permute.xlu0 1
    %2600 = vperm.xlu0 %2599, %v68
    %v2601 = vpop.permute.xlu0 %2600
    %v2619 = vunpack.c.l.b16 %v2515
    %v2620 = vunpack.c.l.b16 %v2516
    %v2621 = vunpack.c.l.b16 %v2517
    %v2622 = vunpack.c.l.b16 %v2518
    %v2623 = vunpack.c.l.b16 %v2519
    %v2624 = vunpack.c.l.b16 %v2520
    %v2625 = vunpack.c.l.b16 %v2521
    %v2626 = vunpack.c.l.b16 %v2522
    %v2627 = vunpack.c.l.b16 %v2523
    %v2628 = vunpack.c.l.b16 %v2524
    %v2629 = vunpack.c.l.b16 %v2525
    %v2630 = vunpack.c.l.b16 %v2526
    %v2631 = vunpack.c.l.b16 %v2527
    %v2632 = vunpack.c.l.b16 %v2528
    %v2633 = vunpack.c.l.b16 %v2529
    %v2634 = vunpack.c.l.b16 %v2530
    %v2635 = vpack.c.b16 %v2620, %v2619
    %v2636 = vpack.c.b16 %v2622, %v2621
    %v2637 = vpack.c.b16 %v2624, %v2623
    %v2638 = vpack.c.b16 %v2626, %v2625
    %v2639 = vpack.c.b16 %v2628, %v2627
    %v2640 = vpack.c.b16 %v2630, %v2629
    %v2641 = vpack.c.b16 %v2632, %v2631
    %v2642 = vpack.c.b16 %v2634, %v2633
    %2651 = vmatprep.subr.bf16.mxu0 0
    %2652 = vmatpush1.bf16.msra.mxu0 %v2531
    %2653 = vmatprep.subr.bf16.mxu0 0
    %2654 = vmatpush1.bf16.msra.mxu0 %v2532
    %2655 = vmatprep.subr.bf16.mxu0 0
    %2656 = vmatpush1.bf16.msra.mxu0 %v2533
    %2657 = vmatprep.subr.bf16.mxu0 0
    %2658 = vmatpush1.bf16.msra.mxu0 %v2534
    %2659 = vmatprep.subr.bf16.mxu0 0
    %2660 = vmatpush1.bf16.msra.mxu0 %v2535
    %2661 = vmatprep.subr.bf16.mxu0 0
    %2662 = vmatpush1.bf16.msra.mxu0 %v2536
    %2663 = vmatprep.subr.bf16.mxu0 0
    %2664 = vmatpush1.bf16.msra.mxu0 %v2537
    %2665 = vmatprep.subr.bf16.mxu0 0
    %2666 = vmatpush1.bf16.msra.mxu0 %v2538
    %2667 = vmatprep.subr.bf16.mxu0 0
    %2668 = vmatpush1.bf16.msra.mxu0 0
    %2669 = vmatprep.subr.bf16.mxu0 0
    %2670 = vmatpush1.bf16.msra.mxu0 0
    %2671 = vmatprep.subr.bf16.mxu0 0
    %2672 = vmatpush1.bf16.msra.mxu0 0
    %2673 = vmatprep.subr.bf16.mxu0 0
    %2674 = vmatpush1.bf16.msra.mxu0 0
    %2675 = vmatprep.subr.bf16.mxu0 0
    %2676 = vmatpush1.bf16.msra.mxu0 0
    %2677 = vmatprep.subr.bf16.mxu0 0
    %2678 = vmatpush1.bf16.msra.mxu0 0
    %2679 = vmatprep.subr.bf16.mxu0 0
    %2680 = vmatpush1.bf16.msra.mxu0 0
    %2681 = vmatprep.subr.bf16.mxu0 0
    %2682 = vmatpush1.bf16.msra.mxu0 0
    %2683 = vmatprep.mubr.bf16.mxu0 0
    %2684 = vmatmul.mubr.bf16.gmra.mrb[0].mxu0 %v2635
    %v2685 = vpop.f32.mrb[0].mxu0
    %v2686 = vadd.f32 %v2541, %v2685
    %v2687 = vpop.f32.mrb[0].mxu0
    %v2688 = vpop.f32.mrb[0].mxu0
    %v2689 = vadd.f32 %v2545, %v2688
    %v2690 = vpop.f32.mrb[0].mxu0
    %2691 = vmatprep.mubr.bf16.mxu0 0
    %2692 = vmatmul.mubr.bf16.gmra.mrb[0].mxu0 %v2636
    %v2693 = vpop.f32.mrb[0].mxu0
    %v2694 = vadd.f32 %v2549, %v2693
    %v2695 = vpop.f32.mrb[0].mxu0
    %v2696 = vpop.f32.mrb[0].mxu0
    %v2697 = vadd.f32 %v2553, %v2696
    %v2698 = vpop.f32.mrb[0].mxu0
    %2699 = vmatprep.mubr.bf16.mxu0 0
    %2700 = vmatmul.mubr.bf16.gmra.mrb[0].mxu0 %v2637
    %v2701 = vpop.f32.mrb[0].mxu0
    %v2702 = vadd.f32 %v2557, %v2701
    %v2703 = vpop.f32.mrb[0].mxu0
    %v2704 = vpop.f32.mrb[0].mxu0
    %v2705 = vadd.f32 %v2561, %v2704
    %v2706 = vpop.f32.mrb[0].mxu0
    %2707 = vmatprep.mubr.bf16.mxu0 0
    %2708 = vmatmul.mubr.bf16.gmra.mrb[0].mxu0 %v2638
    %v2709 = vpop.f32.mrb[0].mxu0
    %v2710 = vadd.f32 %v2565, %v2709
    %v2711 = vpop.f32.mrb[0].mxu0
    %v2712 = vpop.f32.mrb[0].mxu0
    %v2713 = vadd.f32 %v2569, %v2712
    %v2714 = vpop.f32.mrb[0].mxu0
    %2715 = vmatprep.mubr.bf16.mxu0 0
    %2716 = vmatmul.mubr.bf16.gmra.mrb[0].mxu0 %v2639
    %v2717 = vpop.f32.mrb[0].mxu0
    %v2718 = vadd.f32 %v2573, %v2717
    %v2719 = vpop.f32.mrb[0].mxu0
    %v2720 = vpop.f32.mrb[0].mxu0
    %v2721 = vadd.f32 %v2577, %v2720
    %v2722 = vpop.f32.mrb[0].mxu0
    %2723 = vmatprep.mubr.bf16.mxu0 0
    %2724 = vmatmul.mubr.bf16.gmra.mrb[0].mxu0 %v2640
    %v2725 = vpop.f32.mrb[0].mxu0
    %v2726 = vadd.f32 %v2581, %v2725
    %v2727 = vpop.f32.mrb[0].mxu0
    %v2728 = vpop.f32.mrb[0].mxu0
    %v2729 = vadd.f32 %v2585, %v2728
    %v2730 = vpop.f32.mrb[0].mxu0
    %2731 = vmatprep.mubr.bf16.mxu0 0
    %2732 = vmatmul.mubr.bf16.gmra.mrb[0].mxu0 %v2641
    %v2733 = vpop.f32.mrb[0].mxu0
    %v2734 = vadd.f32 %v2589, %v2733
    %v2735 = vpop.f32.mrb[0].mxu0
    %v2736 = vpop.f32.mrb[0].mxu0
    %v2737 = vadd.f32 %v2593, %v2736
    %v2738 = vpop.f32.mrb[0].mxu0
    %2739 = vmatprep.mubr.bf16.mxu0 0
    %2740 = vmatmul.mubr.bf16.gmra.mrb[0].mxu0 %v2642
    %v2741 = vpop.f32.mrb[0].mxu0
    %v2742 = vadd.f32 %v2597, %v2741
    %v2743 = vpop.f32.mrb[0].mxu0
    %v2744 = vpop.f32.mrb[0].mxu0
    %v2745 = vadd.f32 %v2601, %v2744
    %v2746 = vpop.f32.mrb[0].mxu0
    %2747 = vdwg.mxu0
    %v2748 = vadd.f32 %v1740, %v2686
    %v2749 = vadd.f32 %v1741, %v2689
    %v2750 = vadd.f32 %v1742, %v2694
    %v2751 = vadd.f32 %v1743, %v2697
    %v2752 = vadd.f32 %v1744, %v2702
    %v2753 = vadd.f32 %v1745, %v2705
    %v2754 = vadd.f32 %v1746, %v2710
    %v2755 = vadd.f32 %v1747, %v2713
    %v2756 = vadd.f32 %v1748, %v2718
    %v2757 = vadd.f32 %v1749, %v2721
    %v2758 = vadd.f32 %v1750, %v2726
    %v2759 = vadd.f32 %v1751, %v2729
    %v2760 = vadd.f32 %v1752, %v2734
    %v2761 = vadd.f32 %v1753, %v2737
    %v2762 = vadd.f32 %v1754, %v2742
    %v2763 = vadd.f32 %v1755, %v2745
    %v2764 = vmax.f32 %v2748, 0.0
    %v2765 = vmax.f32 %v2749, 0.0
    %v2766 = vmax.f32 %v2750, 0.0
    %v2767 = vmax.f32 %v2751, 0.0
    %v2768 = vmax.f32 %v2752, 0.0
    %v2769 = vmax.f32 %v2753, 0.0
    %v2770 = vmax.f32 %v2754, 0.0
    %v2771 = vmax.f32 %v2755, 0.0
    %v2772 = vmax.f32 %v2756, 0.0
    %v2773 = vmax.f32 %v2757, 0.0
    %v2774 = vmax.f32 %v2758, 0.0
    %v2775 = vmax.f32 %v2759, 0.0
    %v2776 = vmax.f32 %v2760, 0.0
    %v2777 = vmax.f32 %v2761, 0.0
    %v2778 = vmax.f32 %v2762, 0.0
    %v2779 = vmax.f32 %v2763, 0.0
    %v2780 = vpack.c.bf16 %v2765, %v2764
    %v2781 = vpack.c.bf16 %v2767, %v2766
    %v2782 = vpack.c.bf16 %v2769, %v2768
    %v2783 = vpack.c.bf16 %v2771, %v2770
    %v2784 = vpack.c.bf16 %v2773, %v2772
    %v2785 = vpack.c.bf16 %v2775, %v2774
    %v2786 = vpack.c.bf16 %v2777, %v2776
    %v2787 = vpack.c.bf16 %v2779, %v2778
    %2796 = vrot.lane.b32.xlu0 %v2780, 1
    %v2797 = vpop.permute.xlu0 %2796
    %2798 = vrot.lane.b32.xlu0 %v2781, 1
    %v2799 = vpop.permute.xlu0 %2798
    %2800 = vrot.lane.b32.xlu0 %v2782, 1
    %v2801 = vpop.permute.xlu0 %2800
    %2802 = vrot.lane.b32.xlu0 %v2783, 1
    %v2803 = vpop.permute.xlu0 %2802
    %2804 = vrot.lane.b32.xlu0 %v2784, 1
    %v2805 = vpop.permute.xlu0 %2804
    %2806 = vrot.lane.b32.xlu0 %v2785, 1
    %v2807 = vpop.permute.xlu0 %2806
    %2808 = vrot.lane.b32.xlu0 %v2786, 1
    %v2809 = vpop.permute.xlu0 %2808
    %2810 = vrot.lane.b32.xlu0 %v2787, 1
    %v2811 = vpop.permute.xlu0 %2810
    %v2813 = vsel %vm78, 0, %v2797
    %v2815 = vsel %vm78, 0, %v2799
    %v2817 = vsel %vm78, 0, %v2801
    %v2819 = vsel %vm78, 0, %v2803
    %v2821 = vsel %vm78, 0, %v2805
    %v2823 = vsel %vm78, 0, %v2807
    %v2825 = vsel %vm78, 0, %v2809
    %v2827 = vsel %vm78, 0, %v2811
    %v2828 = vsel %vm84, %v2813, 0
    %v2830 = vsel %vm84, %v2815, 0
    %v2832 = vsel %vm84, %v2817, 0
    %v2834 = vsel %vm84, %v2819, 0
    %v2836 = vsel %vm84, %v2821, 0
    %v2838 = vsel %vm84, %v2823, 0
    %v2840 = vsel %vm84, %v2825, 0
    %v2842 = vsel %vm84, %v2827, 0
    %v2844 = vsel %vm106, %v2828, 0
    %v2845 = vsel %vm106, %v2830, 0
    %v2846 = vsel %vm106, %v2832, 0
    %v2847 = vsel %vm106, %v2834, 0
    %v2848 = vsel %vm106, %v2836, 0
    %v2849 = vsel %vm106, %v2838, 0
    %v2850 = vsel %vm106, %v2840, 0
    %v2851 = vsel %vm106, %v2842, 0
    %s2852 = scalar_lea.vmem [#allocation2], 576
    %v2853 = vld [vmem:[%s2852] sm:$0xf]
    %v2854 = vld [vmem:[%s2852 + $0x4] sm:$0xf]
    %v2855 = vld [vmem:[%s2852 + $0x8] sm:$0xf]
    %v2856 = vld [vmem:[%s2852 + $0xc] sm:$0xf]
    %v2857 = vld [vmem:[%s2852 + $0x10] sm:$0xf]
    %v2858 = vld [vmem:[%s2852 + $0x14] sm:$0xf]
    %v2859 = vld [vmem:[%s2852 + $0x18] sm:$0xf]
    %v2860 = vld [vmem:[%s2852 + $0x1c] sm:$0xf]
    %v2861 = vld [vmem:[%s2852 + $0x20] sm:$0xf]
    %v2862 = vld [vmem:[%s2852 + $0x24] sm:$0xf]
    %v2863 = vld [vmem:[%s2852 + $0x28] sm:$0xf]
    %v2864 = vld [vmem:[%s2852 + $0x2c] sm:$0xf]
    %v2865 = vld [vmem:[%s2852 + $0x30] sm:$0xf]
    %v2866 = vld [vmem:[%s2852 + $0x34] sm:$0xf]
    %v2867 = vld [vmem:[%s2852 + $0x38] sm:$0xf]
    %v2868 = vld [vmem:[%s2852 + $0x3c] sm:$0xf]
    %s2869 = scalar_lea.vmem [#allocation2], 640
    %v2870 = vld [vmem:[%s2869] sm:$0xf]
    %v2871 = vld [vmem:[%s2869 + $0x4] sm:$0xf]
    %v2872 = vld [vmem:[%s2869 + $0x8] sm:$0xf]
    %v2873 = vld [vmem:[%s2869 + $0xc] sm:$0xf]
    %v2874 = vld [vmem:[%s2869 + $0x10] sm:$0xf]
    %v2875 = vld [vmem:[%s2869 + $0x14] sm:$0xf]
    %v2876 = vld [vmem:[%s2869 + $0x18] sm:$0xf]
    %v2877 = vld [vmem:[%s2869 + $0x1c] sm:$0xf]
    %v2878 = vld [vmem:[%s2869 + $0x20] sm:$0xf]
    %v2879 = vld [vmem:[%s2869 + $0x24] sm:$0xf]
    %v2880 = vld [vmem:[%s2869 + $0x28] sm:$0xf]
    %v2881 = vld [vmem:[%s2869 + $0x2c] sm:$0xf]
    %v2882 = vld [vmem:[%s2869 + $0x30] sm:$0xf]
    %v2883 = vld [vmem:[%s2869 + $0x34] sm:$0xf]
    %v2884 = vld [vmem:[%s2869 + $0x38] sm:$0xf]
    %v2885 = vld [vmem:[%s2869 + $0x3c] sm:$0xf]
    %v2902 = vunpack.c.l.b16 %v2870
    %v2903 = vunpack.c.l.b16 %v2871
    %v2904 = vunpack.c.l.b16 %v2872
    %v2905 = vunpack.c.l.b16 %v2873
    %v2906 = vunpack.c.l.b16 %v2874
    %v2907 = vunpack.c.l.b16 %v2875
    %v2908 = vunpack.c.l.b16 %v2876
    %v2909 = vunpack.c.l.b16 %v2877
    %v2910 = vunpack.c.l.b16 %v2878
    %v2911 = vunpack.c.l.b16 %v2879
    %v2912 = vunpack.c.l.b16 %v2880
    %v2913 = vunpack.c.l.b16 %v2881
    %v2914 = vunpack.c.l.b16 %v2882
    %v2915 = vunpack.c.l.b16 %v2883
    %v2916 = vunpack.c.l.b16 %v2884
    %v2917 = vunpack.c.l.b16 %v2885
    %v2918 = vpack.c.b16 %v2903, %v2902
    %v2919 = vpack.c.b16 %v2905, %v2904
    %v2920 = vpack.c.b16 %v2907, %v2906
    %v2921 = vpack.c.b16 %v2909, %v2908
    %v2922 = vpack.c.b16 %v2911, %v2910
    %v2923 = vpack.c.b16 %v2913, %v2912
    %v2924 = vpack.c.b16 %v2915, %v2914
    %v2925 = vpack.c.b16 %v2917, %v2916
    %2942 = vrot.lane.b32.xlu0 %v2828, 127
    %v2943 = vpop.permute.xlu0 %2942
    %2944 = vrot.lane.b32.xlu0 %v2830, 127
    %v2945 = vpop.permute.xlu0 %2944
    %2946 = vrot.lane.b32.xlu0 %v2832, 127
    %v2947 = vpop.permute.xlu0 %2946
    %2948 = vrot.lane.b32.xlu0 %v2834, 127
    %v2949 = vpop.permute.xlu0 %2948
    %2950 = vrot.lane.b32.xlu0 %v2836, 127
    %v2951 = vpop.permute.xlu0 %2950
    %2952 = vrot.lane.b32.xlu0 %v2838, 127
    %v2953 = vpop.permute.xlu0 %2952
    %2954 = vrot.lane.b32.xlu0 %v2840, 127
    %v2955 = vpop.permute.xlu0 %2954
    %2956 = vrot.lane.b32.xlu0 %v2842, 127
    %v2957 = vpop.permute.xlu0 %2956
    %2966 = vmatprep.subr.bf16.mxu0 0
    %2967 = vmatpush1.bf16.msra.mxu0 %v2943
    %2968 = vmatprep.subr.bf16.mxu0 0
    %2969 = vmatpush1.bf16.msra.mxu0 %v2945
    %2970 = vmatprep.subr.bf16.mxu0 0
    %2971 = vmatpush1.bf16.msra.mxu0 %v2947
    %2972 = vmatprep.subr.bf16.mxu0 0
    %2973 = vmatpush1.bf16.msra.mxu0 %v2949
    %2974 = vmatprep.subr.bf16.mxu0 0
    %2975 = vmatpush1.bf16.msra.mxu0 %v2951
    %2976 = vmatprep.subr.bf16.mxu0 0
    %2977 = vmatpush1.bf16.msra.mxu0 %v2953
    %2978 = vmatprep.subr.bf16.mxu0 0
    %2979 = vmatpush1.bf16.msra.mxu0 %v2955
    %2980 = vmatprep.subr.bf16.mxu0 0
    %2981 = vmatpush1.bf16.msra.mxu0 %v2957
    %2982 = vmatprep.subr.bf16.mxu0 0
    %2983 = vmatpush1.bf16.msra.mxu0 0
    %2984 = vmatprep.subr.bf16.mxu0 0
    %2985 = vmatpush1.bf16.msra.mxu0 0
    %2986 = vmatprep.subr.bf16.mxu0 0
    %2987 = vmatpush1.bf16.msra.mxu0 0
    %2988 = vmatprep.subr.bf16.mxu0 0
    %2989 = vmatpush1.bf16.msra.mxu0 0
    %2990 = vmatprep.subr.bf16.mxu0 0
    %2991 = vmatpush1.bf16.msra.mxu0 0
    %2992 = vmatprep.subr.bf16.mxu0 0
    %2993 = vmatpush1.bf16.msra.mxu0 0
    %2994 = vmatprep.subr.bf16.mxu0 0
    %2995 = vmatpush1.bf16.msra.mxu0 0
    %2996 = vmatprep.subr.bf16.mxu0 0
    %2997 = vmatpush1.bf16.msra.mxu0 0
    %2998 = vmatprep.mubr.bf16.mxu0 0
    %2999 = vmatmul.mubr.bf16.gmra.mrb[0].mxu0 %v2918
    %v3000 = vpop.f32.mrb[0].mxu0
    %v3001 = vadd.f32 0.0, %v3000
    %v3002 = vpop.f32.mrb[0].mxu0
    %v3003 = vpop.f32.mrb[0].mxu0
    %v3004 = vadd.f32 0.0, %v3003
    %v3005 = vpop.f32.mrb[0].mxu0
    %3006 = vmatprep.mubr.bf16.mxu0 0
    %3007 = vmatmul.mubr.bf16.gmra.mrb[0].mxu0 %v2919
    %v3008 = vpop.f32.mrb[0].mxu0
    %v3009 = vadd.f32 0.0, %v3008
    %v3010 = vpop.f32.mrb[0].mxu0
    %v3011 = vpop.f32.mrb[0].mxu0
    %v3012 = vadd.f32 0.0, %v3011
    %v3013 = vpop.f32.mrb[0].mxu0
    %3014 = vmatprep.mubr.bf16.mxu0 0
    %3015 = vmatmul.mubr.bf16.gmra.mrb[0].mxu0 %v2920
    %v3016 = vpop.f32.mrb[0].mxu0
    %v3017 = vadd.f32 0.0, %v3016
    %v3018 = vpop.f32.mrb[0].mxu0
    %v3019 = vpop.f32.mrb[0].mxu0
    %v3020 = vadd.f32 0.0, %v3019
    %v3021 = vpop.f32.mrb[0].mxu0
    %3022 = vmatprep.mubr.bf16.mxu0 0
    %3023 = vmatmul.mubr.bf16.gmra.mrb[0].mxu0 %v2921
    %v3024 = vpop.f32.mrb[0].mxu0
    %v3025 = vadd.f32 0.0, %v3024
    %v3026 = vpop.f32.mrb[0].mxu0
    %v3027 = vpop.f32.mrb[0].mxu0
    %v3028 = vadd.f32 0.0, %v3027
    %v3029 = vpop.f32.mrb[0].mxu0
    %3030 = vmatprep.mubr.bf16.mxu0 0
    %3031 = vmatmul.mubr.bf16.gmra.mrb[0].mxu0 %v2922
    %v3032 = vpop.f32.mrb[0].mxu0
    %v3033 = vadd.f32 0.0, %v3032
    %v3034 = vpop.f32.mrb[0].mxu0
    %v3035 = vpop.f32.mrb[0].mxu0
    %v3036 = vadd.f32 0.0, %v3035
    %v3037 = vpop.f32.mrb[0].mxu0
    %3038 = vmatprep.mubr.bf16.mxu0 0
    %3039 = vmatmul.mubr.bf16.gmra.mrb[0].mxu0 %v2923
    %v3040 = vpop.f32.mrb[0].mxu0
    %v3041 = vadd.f32 0.0, %v3040
    %v3042 = vpop.f32.mrb[0].mxu0
    %v3043 = vpop.f32.mrb[0].mxu0
    %v3044 = vadd.f32 0.0, %v3043
    %v3045 = vpop.f32.mrb[0].mxu0
    %3046 = vmatprep.mubr.bf16.mxu0 0
    %3047 = vmatmul.mubr.bf16.gmra.mrb[0].mxu0 %v2924
    %v3048 = vpop.f32.mrb[0].mxu0
    %v3049 = vadd.f32 0.0, %v3048
    %v3050 = vpop.f32.mrb[0].mxu0
    %v3051 = vpop.f32.mrb[0].mxu0
    %v3052 = vadd.f32 0.0, %v3051
    %v3053 = vpop.f32.mrb[0].mxu0
    %3054 = vmatprep.mubr.bf16.mxu0 0
    %3055 = vmatmul.mubr.bf16.gmra.mrb[0].mxu0 %v2925
    %v3056 = vpop.f32.mrb[0].mxu0
    %v3057 = vadd.f32 0.0, %v3056
    %v3058 = vpop.f32.mrb[0].mxu0
    %v3059 = vpop.f32.mrb[0].mxu0
    %v3060 = vadd.f32 0.0, %v3059
    %v3061 = vpop.f32.mrb[0].mxu0
    %3062 = vdwg.mxu0
    %v3079 = vunpack.c.l.b16 %v2853
    %v3080 = vunpack.c.l.b16 %v2854
    %v3081 = vunpack.c.l.b16 %v2855
    %v3082 = vunpack.c.l.b16 %v2856
    %v3083 = vunpack.c.l.b16 %v2857
    %v3084 = vunpack.c.l.b16 %v2858
    %v3085 = vunpack.c.l.b16 %v2859
    %v3086 = vunpack.c.l.b16 %v2860
    %v3087 = vunpack.c.l.b16 %v2861
    %v3088 = vunpack.c.l.b16 %v2862
    %v3089 = vunpack.c.l.b16 %v2863
    %v3090 = vunpack.c.l.b16 %v2864
    %v3091 = vunpack.c.l.b16 %v2865
    %v3092 = vunpack.c.l.b16 %v2866
    %v3093 = vunpack.c.l.b16 %v2867
    %v3094 = vunpack.c.l.b16 %v2868
    %v3095 = vpack.c.b16 %v3080, %v3079
    %v3096 = vpack.c.b16 %v3082, %v3081
    %v3097 = vpack.c.b16 %v3084, %v3083
    %v3098 = vpack.c.b16 %v3086, %v3085
    %v3099 = vpack.c.b16 %v3088, %v3087
    %v3100 = vpack.c.b16 %v3090, %v3089
    %v3101 = vpack.c.b16 %v3092, %v3091
    %v3102 = vpack.c.b16 %v3094, %v3093
    %3111 = vmatprep.subr.bf16.mxu0 0
    %3112 = vmatpush1.bf16.msra.mxu0 %v2844
    %3113 = vmatprep.subr.bf16.mxu0 0
    %3114 = vmatpush1.bf16.msra.mxu0 %v2845
    %3115 = vmatprep.subr.bf16.mxu0 0
    %3116 = vmatpush1.bf16.msra.mxu0 %v2846
    %3117 = vmatprep.subr.bf16.mxu0 0
    %3118 = vmatpush1.bf16.msra.mxu0 %v2847
    %3119 = vmatprep.subr.bf16.mxu0 0
    %3120 = vmatpush1.bf16.msra.mxu0 %v2848
    %3121 = vmatprep.subr.bf16.mxu0 0
    %3122 = vmatpush1.bf16.msra.mxu0 %v2849
    %3123 = vmatprep.subr.bf16.mxu0 0
    %3124 = vmatpush1.bf16.msra.mxu0 %v2850
    %3125 = vmatprep.subr.bf16.mxu0 0
    %3126 = vmatpush1.bf16.msra.mxu0 %v2851
    %3127 = vmatprep.subr.bf16.mxu0 0
    %3128 = vmatpush1.bf16.msra.mxu0 0
    %3129 = vmatprep.subr.bf16.mxu0 0
    %3130 = vmatpush1.bf16.msra.mxu0 0
    %3131 = vmatprep.subr.bf16.mxu0 0
    %3132 = vmatpush1.bf16.msra.mxu0 0
    %3133 = vmatprep.subr.bf16.mxu0 0
    %3134 = vmatpush1.bf16.msra.mxu0 0
    %3135 = vmatprep.subr.bf16.mxu0 0
    %3136 = vmatpush1.bf16.msra.mxu0 0
    %3137 = vmatprep.subr.bf16.mxu0 0
    %3138 = vmatpush1.bf16.msra.mxu0 0
    %3139 = vmatprep.subr.bf16.mxu0 0
    %3140 = vmatpush1.bf16.msra.mxu0 0
    %3141 = vmatprep.subr.bf16.mxu0 0
    %3142 = vmatpush1.bf16.msra.mxu0 0
    %3143 = vmatprep.mubr.bf16.mxu0 0
    %3144 = vmatmul.mubr.bf16.gmra.mrb[0].mxu0 %v3095
    %v3145 = vpop.f32.mrb[0].mxu0
    %v3146 = vadd.f32 %v3001, %v3145
    %v3147 = vpop.f32.mrb[0].mxu0
    %v3148 = vpop.f32.mrb[0].mxu0
    %v3149 = vadd.f32 %v3004, %v3148
    %v3150 = vpop.f32.mrb[0].mxu0
    %3151 = vmatprep.mubr.bf16.mxu0 0
    %3152 = vmatmul.mubr.bf16.gmra.mrb[0].mxu0 %v3096
    %v3153 = vpop.f32.mrb[0].mxu0
    %v3154 = vadd.f32 %v3009, %v3153
    %v3155 = vpop.f32.mrb[0].mxu0
    %v3156 = vpop.f32.mrb[0].mxu0
    %v3157 = vadd.f32 %v3012, %v3156
    %v3158 = vpop.f32.mrb[0].mxu0
    %3159 = vmatprep.mubr.bf16.mxu0 0
    %3160 = vmatmul.mubr.bf16.gmra.mrb[0].mxu0 %v3097
    %v3161 = vpop.f32.mrb[0].mxu0
    %v3162 = vadd.f32 %v3017, %v3161
    %v3163 = vpop.f32.mrb[0].mxu0
    %v3164 = vpop.f32.mrb[0].mxu0
    %v3165 = vadd.f32 %v3020, %v3164
    %v3166 = vpop.f32.mrb[0].mxu0
    %3167 = vmatprep.mubr.bf16.mxu0 0
    %3168 = vmatmul.mubr.bf16.gmra.mrb[0].mxu0 %v3098
    %v3169 = vpop.f32.mrb[0].mxu0
    %v3170 = vadd.f32 %v3025, %v3169
    %v3171 = vpop.f32.mrb[0].mxu0
    %v3172 = vpop.f32.mrb[0].mxu0
    %v3173 = vadd.f32 %v3028, %v3172
    %v3174 = vpop.f32.mrb[0].mxu0
    %3175 = vmatprep.mubr.bf16.mxu0 0
    %3176 = vmatmul.mubr.bf16.gmra.mrb[0].mxu0 %v3099
    %v3177 = vpop.f32.mrb[0].mxu0
    %v3178 = vadd.f32 %v3033, %v3177
    %v3179 = vpop.f32.mrb[0].mxu0
    %v3180 = vpop.f32.mrb[0].mxu0
    %v3181 = vadd.f32 %v3036, %v3180
    %v3182 = vpop.f32.mrb[0].mxu0
    %3183 = vmatprep.mubr.bf16.mxu0 0
    %3184 = vmatmul.mubr.bf16.gmra.mrb[0].mxu0 %v3100
    %v3185 = vpop.f32.mrb[0].mxu0
    %v3186 = vadd.f32 %v3041, %v3185
    %v3187 = vpop.f32.mrb[0].mxu0
    %v3188 = vpop.f32.mrb[0].mxu0
    %v3189 = vadd.f32 %v3044, %v3188
    %v3190 = vpop.f32.mrb[0].mxu0
    %3191 = vmatprep.mubr.bf16.mxu0 0
    %3192 = vmatmul.mubr.bf16.gmra.mrb[0].mxu0 %v3101
    %v3193 = vpop.f32.mrb[0].mxu0
    %v3194 = vadd.f32 %v3049, %v3193
    %v3195 = vpop.f32.mrb[0].mxu0
    %v3196 = vpop.f32.mrb[0].mxu0
    %v3197 = vadd.f32 %v3052, %v3196
    %v3198 = vpop.f32.mrb[0].mxu0
    %3199 = vmatprep.mubr.bf16.mxu0 0
    %3200 = vmatmul.mubr.bf16.gmra.mrb[0].mxu0 %v3102
    %v3201 = vpop.f32.mrb[0].mxu0
    %v3202 = vadd.f32 %v3057, %v3201
    %v3203 = vpop.f32.mrb[0].mxu0
    %v3204 = vpop.f32.mrb[0].mxu0
    %v3205 = vadd.f32 %v3060, %v3204
    %v3206 = vpop.f32.mrb[0].mxu0
    %3207 = vdwg.mxu0
    %v3208 = vsel %vm448, %v2828, 0
    %v3209 = vsel %vm448, %v2830, 0
    %v3210 = vsel %vm448, %v2832, 0
    %v3211 = vsel %vm448, %v2834, 0
    %v3212 = vsel %vm448, %v2836, 0
    %v3213 = vsel %vm448, %v2838, 0
    %v3214 = vsel %vm448, %v2840, 0
    %v3215 = vsel %vm448, %v2842, 0
    %s3216 = scalar_lea.vmem [#allocation2], 704
    %v3217 = vld [vmem:[%s3216] sm:$0xf]
    %v3218 = vld [vmem:[%s3216 + $0x4] sm:$0xf]
    %v3219 = vld [vmem:[%s3216 + $0x8] sm:$0xf]
    %v3220 = vld [vmem:[%s3216 + $0xc] sm:$0xf]
    %v3221 = vld [vmem:[%s3216 + $0x10] sm:$0xf]
    %v3222 = vld [vmem:[%s3216 + $0x14] sm:$0xf]
    %v3223 = vld [vmem:[%s3216 + $0x18] sm:$0xf]
    %v3224 = vld [vmem:[%s3216 + $0x1c] sm:$0xf]
    %v3225 = vld [vmem:[%s3216 + $0x20] sm:$0xf]
    %v3226 = vld [vmem:[%s3216 + $0x24] sm:$0xf]
    %v3227 = vld [vmem:[%s3216 + $0x28] sm:$0xf]
    %v3228 = vld [vmem:[%s3216 + $0x2c] sm:$0xf]
    %v3229 = vld [vmem:[%s3216 + $0x30] sm:$0xf]
    %v3230 = vld [vmem:[%s3216 + $0x34] sm:$0xf]
    %v3231 = vld [vmem:[%s3216 + $0x38] sm:$0xf]
    %v3232 = vld [vmem:[%s3216 + $0x3c] sm:$0xf]
    %v3249 = vunpack.c.l.b16 %v3217
    %v3250 = vunpack.c.l.b16 %v3218
    %v3251 = vunpack.c.l.b16 %v3219
    %v3252 = vunpack.c.l.b16 %v3220
    %v3253 = vunpack.c.l.b16 %v3221
    %v3254 = vunpack.c.l.b16 %v3222
    %v3255 = vunpack.c.l.b16 %v3223
    %v3256 = vunpack.c.l.b16 %v3224
    %v3257 = vunpack.c.l.b16 %v3225
    %v3258 = vunpack.c.l.b16 %v3226
    %v3259 = vunpack.c.l.b16 %v3227
    %v3260 = vunpack.c.l.b16 %v3228
    %v3261 = vunpack.c.l.b16 %v3229
    %v3262 = vunpack.c.l.b16 %v3230
    %v3263 = vunpack.c.l.b16 %v3231
    %v3264 = vunpack.c.l.b16 %v3232
    %v3265 = vpack.c.b16 %v3250, %v3249
    %v3266 = vpack.c.b16 %v3252, %v3251
    %v3267 = vpack.c.b16 %v3254, %v3253
    %v3268 = vpack.c.b16 %v3256, %v3255
    %v3269 = vpack.c.b16 %v3258, %v3257
    %v3270 = vpack.c.b16 %v3260, %v3259
    %v3271 = vpack.c.b16 %v3262, %v3261
    %v3272 = vpack.c.b16 %v3264, %v3263
    %3289 = vrot.lane.b32.xlu0 %v3208, 126
    %v3290 = vpop.permute.xlu0 %3289
    %3291 = vrot.lane.b32.xlu0 %v3209, 126
    %v3292 = vpop.permute.xlu0 %3291
    %3293 = vrot.lane.b32.xlu0 %v3210, 126
    %v3294 = vpop.permute.xlu0 %3293
    %3295 = vrot.lane.b32.xlu0 %v3211, 126
    %v3296 = vpop.permute.xlu0 %3295
    %3297 = vrot.lane.b32.xlu0 %v3212, 126
    %v3298 = vpop.permute.xlu0 %3297
    %3299 = vrot.lane.b32.xlu0 %v3213, 126
    %v3300 = vpop.permute.xlu0 %3299
    %3301 = vrot.lane.b32.xlu0 %v3214, 126
    %v3302 = vpop.permute.xlu0 %3301
    %3303 = vrot.lane.b32.xlu0 %v3215, 126
    %v3304 = vpop.permute.xlu0 %3303
    %3313 = vmatprep.subr.bf16.mxu0 0
    %3314 = vmatpush1.bf16.msra.mxu0 %v3290
    %3315 = vmatprep.subr.bf16.mxu0 0
    %3316 = vmatpush1.bf16.msra.mxu0 %v3292
    %3317 = vmatprep.subr.bf16.mxu0 0
    %3318 = vmatpush1.bf16.msra.mxu0 %v3294
    %3319 = vmatprep.subr.bf16.mxu0 0
    %3320 = vmatpush1.bf16.msra.mxu0 %v3296
    %3321 = vmatprep.subr.bf16.mxu0 0
    %3322 = vmatpush1.bf16.msra.mxu0 %v3298
    %3323 = vmatprep.subr.bf16.mxu0 0
    %3324 = vmatpush1.bf16.msra.mxu0 %v3300
    %3325 = vmatprep.subr.bf16.mxu0 0
    %3326 = vmatpush1.bf16.msra.mxu0 %v3302
    %3327 = vmatprep.subr.bf16.mxu0 0
    %3328 = vmatpush1.bf16.msra.mxu0 %v3304
    %3329 = vmatprep.subr.bf16.mxu0 0
    %3330 = vmatpush1.bf16.msra.mxu0 0
    %3331 = vmatprep.subr.bf16.mxu0 0
    %3332 = vmatpush1.bf16.msra.mxu0 0
    %3333 = vmatprep.subr.bf16.mxu0 0
    %3334 = vmatpush1.bf16.msra.mxu0 0
    %3335 = vmatprep.subr.bf16.mxu0 0
    %3336 = vmatpush1.bf16.msra.mxu0 0
    %3337 = vmatprep.subr.bf16.mxu0 0
    %3338 = vmatpush1.bf16.msra.mxu0 0
    %3339 = vmatprep.subr.bf16.mxu0 0
    %3340 = vmatpush1.bf16.msra.mxu0 0
    %3341 = vmatprep.subr.bf16.mxu0 0
    %3342 = vmatpush1.bf16.msra.mxu0 0
    %3343 = vmatprep.subr.bf16.mxu0 0
    %3344 = vmatpush1.bf16.msra.mxu0 0
    %3345 = vmatprep.mubr.bf16.mxu0 0
    %3346 = vmatmul.mubr.bf16.gmra.mrb[0].mxu0 %v3265
    %v3347 = vpop.f32.mrb[0].mxu0
    %v3348 = vadd.f32 0.0, %v3347
    %v3349 = vpop.f32.mrb[0].mxu0
    %v3350 = vpop.f32.mrb[0].mxu0
    %v3351 = vadd.f32 0.0, %v3350
    %v3352 = vpop.f32.mrb[0].mxu0
    %3353 = vmatprep.mubr.bf16.mxu0 0
    %3354 = vmatmul.mubr.bf16.gmra.mrb[0].mxu0 %v3266
    %v3355 = vpop.f32.mrb[0].mxu0
    %v3356 = vadd.f32 0.0, %v3355
    %v3357 = vpop.f32.mrb[0].mxu0
    %v3358 = vpop.f32.mrb[0].mxu0
    %v3359 = vadd.f32 0.0, %v3358
    %v3360 = vpop.f32.mrb[0].mxu0
    %3361 = vmatprep.mubr.bf16.mxu0 0
    %3362 = vmatmul.mubr.bf16.gmra.mrb[0].mxu0 %v3267
    %v3363 = vpop.f32.mrb[0].mxu0
    %v3364 = vadd.f32 0.0, %v3363
    %v3365 = vpop.f32.mrb[0].mxu0
    %v3366 = vpop.f32.mrb[0].mxu0
    %v3367 = vadd.f32 0.0, %v3366
    %v3368 = vpop.f32.mrb[0].mxu0
    %3369 = vmatprep.mubr.bf16.mxu0 0
    %3370 = vmatmul.mubr.bf16.gmra.mrb[0].mxu0 %v3268
    %v3371 = vpop.f32.mrb[0].mxu0
    %v3372 = vadd.f32 0.0, %v3371
    %v3373 = vpop.f32.mrb[0].mxu0
    %v3374 = vpop.f32.mrb[0].mxu0
    %v3375 = vadd.f32 0.0, %v3374
    %v3376 = vpop.f32.mrb[0].mxu0
    %3377 = vmatprep.mubr.bf16.mxu0 0
    %3378 = vmatmul.mubr.bf16.gmra.mrb[0].mxu0 %v3269
    %v3379 = vpop.f32.mrb[0].mxu0
    %v3380 = vadd.f32 0.0, %v3379
    %v3381 = vpop.f32.mrb[0].mxu0
    %v3382 = vpop.f32.mrb[0].mxu0
    %v3383 = vadd.f32 0.0, %v3382
    %v3384 = vpop.f32.mrb[0].mxu0
    %3385 = vmatprep.mubr.bf16.mxu0 0
    %3386 = vmatmul.mubr.bf16.gmra.mrb[0].mxu0 %v3270
    %v3387 = vpop.f32.mrb[0].mxu0
    %v3388 = vadd.f32 0.0, %v3387
    %v3389 = vpop.f32.mrb[0].mxu0
    %v3390 = vpop.f32.mrb[0].mxu0
    %v3391 = vadd.f32 0.0, %v3390
    %v3392 = vpop.f32.mrb[0].mxu0
    %3393 = vmatprep.mubr.bf16.mxu0 0
    %3394 = vmatmul.mubr.bf16.gmra.mrb[0].mxu0 %v3271
    %v3395 = vpop.f32.mrb[0].mxu0
    %v3396 = vadd.f32 0.0, %v3395
    %v3397 = vpop.f32.mrb[0].mxu0
    %v3398 = vpop.f32.mrb[0].mxu0
    %v3399 = vadd.f32 0.0, %v3398
    %v3400 = vpop.f32.mrb[0].mxu0
    %3401 = vmatprep.mubr.bf16.mxu0 0
    %3402 = vmatmul.mubr.bf16.gmra.mrb[0].mxu0 %v3272
    %v3403 = vpop.f32.mrb[0].mxu0
    %v3404 = vadd.f32 0.0, %v3403
    %v3405 = vpop.f32.mrb[0].mxu0
    %v3406 = vpop.f32.mrb[0].mxu0
    %v3407 = vadd.f32 0.0, %v3406
    %v3408 = vpop.f32.mrb[0].mxu0
    %3409 = vdwg.mxu0
    %v3410 = vadd.f32 %v3146, %v3348
    %v3411 = vadd.f32 %v3149, %v3351
    %v3412 = vadd.f32 %v3154, %v3356
    %v3413 = vadd.f32 %v3157, %v3359
    %v3414 = vadd.f32 %v3162, %v3364
    %v3415 = vadd.f32 %v3165, %v3367
    %v3416 = vadd.f32 %v3170, %v3372
    %v3417 = vadd.f32 %v3173, %v3375
    %v3418 = vadd.f32 %v3178, %v3380
    %v3419 = vadd.f32 %v3181, %v3383
    %v3420 = vadd.f32 %v3186, %v3388
    %v3421 = vadd.f32 %v3189, %v3391
    %v3422 = vadd.f32 %v3194, %v3396
    %v3423 = vadd.f32 %v3197, %v3399
    %v3424 = vadd.f32 %v3202, %v3404
    %v3425 = vadd.f32 %v3205, %v3407
    %3426 = vset.pattern.permute.xlu0 3
    %3427 = vperm.xlu0 %3426, %v37
    %v3428 = vpop.permute.xlu0 %3427
    %3430 = vset.pattern.permute.xlu0 3
    %3431 = vperm.xlu0 %3430, %v38
    %v3432 = vpop.permute.xlu0 %3431
    %3434 = vset.pattern.permute.xlu0 3
    %3435 = vperm.xlu0 %3434, %v39
    %v3436 = vpop.permute.xlu0 %3435
    %3438 = vset.pattern.permute.xlu0 3
    %3439 = vperm.xlu0 %3438, %v40
    %v3440 = vpop.permute.xlu0 %3439
    %3442 = vset.pattern.permute.xlu0 3
    %3443 = vperm.xlu0 %3442, %v41
    %v3444 = vpop.permute.xlu0 %3443
    %3446 = vset.pattern.permute.xlu0 3
    %3447 = vperm.xlu0 %3446, %v42
    %v3448 = vpop.permute.xlu0 %3447
    %3450 = vset.pattern.permute.xlu0 3
    %3451 = vperm.xlu0 %3450, %v43
    %v3452 = vpop.permute.xlu0 %3451
    %3454 = vset.pattern.permute.xlu0 3
    %3455 = vperm.xlu0 %3454, %v44
    %v3456 = vpop.permute.xlu0 %3455
    %3458 = vset.pattern.permute.xlu0 3
    %3459 = vperm.xlu0 %3458, %v45
    %v3460 = vpop.permute.xlu0 %3459
    %3462 = vset.pattern.permute.xlu0 3
    %3463 = vperm.xlu0 %3462, %v46
    %v3464 = vpop.permute.xlu0 %3463
    %3466 = vset.pattern.permute.xlu0 3
    %3467 = vperm.xlu0 %3466, %v47
    %v3468 = vpop.permute.xlu0 %3467
    %3470 = vset.pattern.permute.xlu0 3
    %3471 = vperm.xlu0 %3470, %v48
    %v3472 = vpop.permute.xlu0 %3471
    %3474 = vset.pattern.permute.xlu0 3
    %3475 = vperm.xlu0 %3474, %v49
    %v3476 = vpop.permute.xlu0 %3475
    %3478 = vset.pattern.permute.xlu0 3
    %3479 = vperm.xlu0 %3478, %v50
    %v3480 = vpop.permute.xlu0 %3479
    %3482 = vset.pattern.permute.xlu0 3
    %3483 = vperm.xlu0 %3482, %v51
    %v3484 = vpop.permute.xlu0 %3483
    %3486 = vset.pattern.permute.xlu0 3
    %3487 = vperm.xlu0 %3486, %v52
    %v3488 = vpop.permute.xlu0 %3487
    %v3490 = vadd.f32 %v3410, %v3428
    %v3491 = vadd.f32 %v3411, %v3432
    %v3492 = vadd.f32 %v3412, %v3436
    %v3493 = vadd.f32 %v3413, %v3440
    %v3494 = vadd.f32 %v3414, %v3444
    %v3495 = vadd.f32 %v3415, %v3448
    %v3496 = vadd.f32 %v3416, %v3452
    %v3497 = vadd.f32 %v3417, %v3456
    %v3498 = vadd.f32 %v3418, %v3460
    %v3499 = vadd.f32 %v3419, %v3464
    %v3500 = vadd.f32 %v3420, %v3468
    %v3501 = vadd.f32 %v3421, %v3472
    %v3502 = vadd.f32 %v3422, %v3476
    %v3503 = vadd.f32 %v3423, %v3480
    %v3504 = vadd.f32 %v3424, %v3484
    %v3505 = vadd.f32 %v3425, %v3488
    %v3506 = vmax.f32 %v3490, 0.0
    %v3507 = vmax.f32 %v3491, 0.0
    %v3508 = vmax.f32 %v3492, 0.0
    %v3509 = vmax.f32 %v3493, 0.0
    %v3510 = vmax.f32 %v3494, 0.0
    %v3511 = vmax.f32 %v3495, 0.0
    %v3512 = vmax.f32 %v3496, 0.0
    %v3513 = vmax.f32 %v3497, 0.0
    %v3514 = vmax.f32 %v3498, 0.0
    %v3515 = vmax.f32 %v3499, 0.0
    %v3516 = vmax.f32 %v3500, 0.0
    %v3517 = vmax.f32 %v3501, 0.0
    %v3518 = vmax.f32 %v3502, 0.0
    %v3519 = vmax.f32 %v3503, 0.0
    %v3520 = vmax.f32 %v3504, 0.0
    %v3521 = vmax.f32 %v3505, 0.0
    %s3522 = scalar_lea.vmem %s3, 128
    %v3523 = vld [vmem:[%s3522] sm:$0xf]
    %v3524 = vld [vmem:[%s3522 + $0x4] sm:$0xf]
    %v3525 = vld [vmem:[%s3522 + $0x8] sm:$0xf]
    %v3526 = vld [vmem:[%s3522 + $0xc] sm:$0xf]
    %v3527 = vld [vmem:[%s3522 + $0x10] sm:$0xf]
    %v3528 = vld [vmem:[%s3522 + $0x14] sm:$0xf]
    %v3529 = vld [vmem:[%s3522 + $0x18] sm:$0xf]
    %v3530 = vld [vmem:[%s3522 + $0x1c] sm:$0xf]
    %v3531 = vld [vmem:[%s3522 + $0x20] sm:$0xf]
    %v3532 = vld [vmem:[%s3522 + $0x24] sm:$0xf]
    %v3533 = vld [vmem:[%s3522 + $0x28] sm:$0xf]
    %v3534 = vld [vmem:[%s3522 + $0x2c] sm:$0xf]
    %v3535 = vld [vmem:[%s3522 + $0x30] sm:$0xf]
    %v3536 = vld [vmem:[%s3522 + $0x34] sm:$0xf]
    %v3537 = vld [vmem:[%s3522 + $0x38] sm:$0xf]
    %v3538 = vld [vmem:[%s3522 + $0x3c] sm:$0xf]
    %v3539 = vpack.c.bf16 %v3507, %v3506
    %v3540 = vpack.c.bf16 %v3509, %v3508
    %v3541 = vpack.c.bf16 %v3511, %v3510
    %v3542 = vpack.c.bf16 %v3513, %v3512
    %v3543 = vpack.c.bf16 %v3515, %v3514
    %v3544 = vpack.c.bf16 %v3517, %v3516
    %v3545 = vpack.c.bf16 %v3519, %v3518
    %v3546 = vpack.c.bf16 %v3521, %v3520
    %3547 = vset.pattern.permute.xlu0 2
    %3548 = vperm.xlu0 %3547, %v53
    %v3549 = vpop.permute.xlu0 %3548
    %3551 = vset.pattern.permute.xlu0 2
    %3552 = vperm.xlu0 %3551, %v54
    %v3553 = vpop.permute.xlu0 %3552
    %3555 = vset.pattern.permute.xlu0 2
    %3556 = vperm.xlu0 %3555, %v55
    %v3557 = vpop.permute.xlu0 %3556
    %3559 = vset.pattern.permute.xlu0 2
    %3560 = vperm.xlu0 %3559, %v56
    %v3561 = vpop.permute.xlu0 %3560
    %3563 = vset.pattern.permute.xlu0 2
    %3564 = vperm.xlu0 %3563, %v57
    %v3565 = vpop.permute.xlu0 %3564
    %3567 = vset.pattern.permute.xlu0 2
    %3568 = vperm.xlu0 %3567, %v58
    %v3569 = vpop.permute.xlu0 %3568
    %3571 = vset.pattern.permute.xlu0 2
    %3572 = vperm.xlu0 %3571, %v59
    %v3573 = vpop.permute.xlu0 %3572
    %3575 = vset.pattern.permute.xlu0 2
    %3576 = vperm.xlu0 %3575, %v60
    %v3577 = vpop.permute.xlu0 %3576
    %3579 = vset.pattern.permute.xlu0 2
    %3580 = vperm.xlu0 %3579, %v61
    %v3581 = vpop.permute.xlu0 %3580
    %3583 = vset.pattern.permute.xlu0 2
    %3584 = vperm.xlu0 %3583, %v62
    %v3585 = vpop.permute.xlu0 %3584
    %3587 = vset.pattern.permute.xlu0 2
    %3588 = vperm.xlu0 %3587, %v63
    %v3589 = vpop.permute.xlu0 %3588
    %3591 = vset.pattern.permute.xlu0 2
    %3592 = vperm.xlu0 %3591, %v64
    %v3593 = vpop.permute.xlu0 %3592
    %3595 = vset.pattern.permute.xlu0 2
    %3596 = vperm.xlu0 %3595, %v65
    %v3597 = vpop.permute.xlu0 %3596
    %3599 = vset.pattern.permute.xlu0 2
    %3600 = vperm.xlu0 %3599, %v66
    %v3601 = vpop.permute.xlu0 %3600
    %3603 = vset.pattern.permute.xlu0 2
    %3604 = vperm.xlu0 %3603, %v67
    %v3605 = vpop.permute.xlu0 %3604
    %3607 = vset.pattern.permute.xlu0 2
    %3608 = vperm.xlu0 %3607, %v68
    %v3609 = vpop.permute.xlu0 %3608
    %v3627 = vunpack.c.l.b16 %v3523
    %v3628 = vunpack.c.l.b16 %v3524
    %v3629 = vunpack.c.l.b16 %v3525
    %v3630 = vunpack.c.l.b16 %v3526
    %v3631 = vunpack.c.l.b16 %v3527
    %v3632 = vunpack.c.l.b16 %v3528
    %v3633 = vunpack.c.l.b16 %v3529
    %v3634 = vunpack.c.l.b16 %v3530
    %v3635 = vunpack.c.l.b16 %v3531
    %v3636 = vunpack.c.l.b16 %v3532
    %v3637 = vunpack.c.l.b16 %v3533
    %v3638 = vunpack.c.l.b16 %v3534
    %v3639 = vunpack.c.l.b16 %v3535
    %v3640 = vunpack.c.l.b16 %v3536
    %v3641 = vunpack.c.l.b16 %v3537
    %v3642 = vunpack.c.l.b16 %v3538
    %v3643 = vpack.c.b16 %v3628, %v3627
    %v3644 = vpack.c.b16 %v3630, %v3629
    %v3645 = vpack.c.b16 %v3632, %v3631
    %v3646 = vpack.c.b16 %v3634, %v3633
    %v3647 = vpack.c.b16 %v3636, %v3635
    %v3648 = vpack.c.b16 %v3638, %v3637
    %v3649 = vpack.c.b16 %v3640, %v3639
    %v3650 = vpack.c.b16 %v3642, %v3641
    %3659 = vmatprep.subr.bf16.mxu0 0
    %3660 = vmatpush1.bf16.msra.mxu0 %v3539
    %3661 = vmatprep.subr.bf16.mxu0 0
    %3662 = vmatpush1.bf16.msra.mxu0 %v3540
    %3663 = vmatprep.subr.bf16.mxu0 0
    %3664 = vmatpush1.bf16.msra.mxu0 %v3541
    %3665 = vmatprep.subr.bf16.mxu0 0
    %3666 = vmatpush1.bf16.msra.mxu0 %v3542
    %3667 = vmatprep.subr.bf16.mxu0 0
    %3668 = vmatpush1.bf16.msra.mxu0 %v3543
    %3669 = vmatprep.subr.bf16.mxu0 0
    %3670 = vmatpush1.bf16.msra.mxu0 %v3544
    %3671 = vmatprep.subr.bf16.mxu0 0
    %3672 = vmatpush1.bf16.msra.mxu0 %v3545
    %3673 = vmatprep.subr.bf16.mxu0 0
    %3674 = vmatpush1.bf16.msra.mxu0 %v3546
    %3675 = vmatprep.subr.bf16.mxu0 0
    %3676 = vmatpush1.bf16.msra.mxu0 0
    %3677 = vmatprep.subr.bf16.mxu0 0
    %3678 = vmatpush1.bf16.msra.mxu0 0
    %3679 = vmatprep.subr.bf16.mxu0 0
    %3680 = vmatpush1.bf16.msra.mxu0 0
    %3681 = vmatprep.subr.bf16.mxu0 0
    %3682 = vmatpush1.bf16.msra.mxu0 0
    %3683 = vmatprep.subr.bf16.mxu0 0
    %3684 = vmatpush1.bf16.msra.mxu0 0
    %3685 = vmatprep.subr.bf16.mxu0 0
    %3686 = vmatpush1.bf16.msra.mxu0 0
    %3687 = vmatprep.subr.bf16.mxu0 0
    %3688 = vmatpush1.bf16.msra.mxu0 0
    %3689 = vmatprep.subr.bf16.mxu0 0
    %3690 = vmatpush1.bf16.msra.mxu0 0
    %3691 = vmatprep.mubr.bf16.mxu0 0
    %3692 = vmatmul.mubr.bf16.gmra.mrb[0].mxu0 %v3643
    %v3693 = vpop.f32.mrb[0].mxu0
    %v3694 = vadd.f32 %v3549, %v3693
    %v3695 = vpop.f32.mrb[0].mxu0
    %v3696 = vpop.f32.mrb[0].mxu0
    %v3697 = vadd.f32 %v3553, %v3696
    %v3698 = vpop.f32.mrb[0].mxu0
    %3699 = vmatprep.mubr.bf16.mxu0 0
    %3700 = vmatmul.mubr.bf16.gmra.mrb[0].mxu0 %v3644
    %v3701 = vpop.f32.mrb[0].mxu0
    %v3702 = vadd.f32 %v3557, %v3701
    %v3703 = vpop.f32.mrb[0].mxu0
    %v3704 = vpop.f32.mrb[0].mxu0
    %v3705 = vadd.f32 %v3561, %v3704
    %v3706 = vpop.f32.mrb[0].mxu0
    %3707 = vmatprep.mubr.bf16.mxu0 0
    %3708 = vmatmul.mubr.bf16.gmra.mrb[0].mxu0 %v3645
    %v3709 = vpop.f32.mrb[0].mxu0
    %v3710 = vadd.f32 %v3565, %v3709
    %v3711 = vpop.f32.mrb[0].mxu0
    %v3712 = vpop.f32.mrb[0].mxu0
    %v3713 = vadd.f32 %v3569, %v3712
    %v3714 = vpop.f32.mrb[0].mxu0
    %3715 = vmatprep.mubr.bf16.mxu0 0
    %3716 = vmatmul.mubr.bf16.gmra.mrb[0].mxu0 %v3646
    %v3717 = vpop.f32.mrb[0].mxu0
    %v3718 = vadd.f32 %v3573, %v3717
    %v3719 = vpop.f32.mrb[0].mxu0
    %v3720 = vpop.f32.mrb[0].mxu0
    %v3721 = vadd.f32 %v3577, %v3720
    %v3722 = vpop.f32.mrb[0].mxu0
    %3723 = vmatprep.mubr.bf16.mxu0 0
    %3724 = vmatmul.mubr.bf16.gmra.mrb[0].mxu0 %v3647
    %v3725 = vpop.f32.mrb[0].mxu0
    %v3726 = vadd.f32 %v3581, %v3725
    %v3727 = vpop.f32.mrb[0].mxu0
    %v3728 = vpop.f32.mrb[0].mxu0
    %v3729 = vadd.f32 %v3585, %v3728
    %v3730 = vpop.f32.mrb[0].mxu0
    %3731 = vmatprep.mubr.bf16.mxu0 0
    %3732 = vmatmul.mubr.bf16.gmra.mrb[0].mxu0 %v3648
    %v3733 = vpop.f32.mrb[0].mxu0
    %v3734 = vadd.f32 %v3589, %v3733
    %v3735 = vpop.f32.mrb[0].mxu0
    %v3736 = vpop.f32.mrb[0].mxu0
    %v3737 = vadd.f32 %v3593, %v3736
    %v3738 = vpop.f32.mrb[0].mxu0
    %3739 = vmatprep.mubr.bf16.mxu0 0
    %3740 = vmatmul.mubr.bf16.gmra.mrb[0].mxu0 %v3649
    %v3741 = vpop.f32.mrb[0].mxu0
    %v3742 = vadd.f32 %v3597, %v3741
    %v3743 = vpop.f32.mrb[0].mxu0
    %v3744 = vpop.f32.mrb[0].mxu0
    %v3745 = vadd.f32 %v3601, %v3744
    %v3746 = vpop.f32.mrb[0].mxu0
    %3747 = vmatprep.mubr.bf16.mxu0 0
    %3748 = vmatmul.mubr.bf16.gmra.mrb[0].mxu0 %v3650
    %v3749 = vpop.f32.mrb[0].mxu0
    %v3750 = vadd.f32 %v3605, %v3749
    %v3751 = vpop.f32.mrb[0].mxu0
    %v3752 = vpop.f32.mrb[0].mxu0
    %v3753 = vadd.f32 %v3609, %v3752
    %v3754 = vpop.f32.mrb[0].mxu0
    %3755 = vdwg.mxu0
    %v3756 = vadd.f32 %v2748, %v3694
    %v3757 = vadd.f32 %v2749, %v3697
    %v3758 = vadd.f32 %v2750, %v3702
    %v3759 = vadd.f32 %v2751, %v3705
    %v3760 = vadd.f32 %v2752, %v3710
    %v3761 = vadd.f32 %v2753, %v3713
    %v3762 = vadd.f32 %v2754, %v3718
    %v3763 = vadd.f32 %v2755, %v3721
    %v3764 = vadd.f32 %v2756, %v3726
    %v3765 = vadd.f32 %v2757, %v3729
    %v3766 = vadd.f32 %v2758, %v3734
    %v3767 = vadd.f32 %v2759, %v3737
    %v3768 = vadd.f32 %v2760, %v3742
    %v3769 = vadd.f32 %v2761, %v3745
    %v3770 = vadd.f32 %v2762, %v3750
    %v3771 = vadd.f32 %v2763, %v3753
    %v3772 = vmax.f32 %v3756, 0.0
    %v3773 = vmax.f32 %v3757, 0.0
    %v3774 = vmax.f32 %v3758, 0.0
    %v3775 = vmax.f32 %v3759, 0.0
    %v3776 = vmax.f32 %v3760, 0.0
    %v3777 = vmax.f32 %v3761, 0.0
    %v3778 = vmax.f32 %v3762, 0.0
    %v3779 = vmax.f32 %v3763, 0.0
    %v3780 = vmax.f32 %v3764, 0.0
    %v3781 = vmax.f32 %v3765, 0.0
    %v3782 = vmax.f32 %v3766, 0.0
    %v3783 = vmax.f32 %v3767, 0.0
    %v3784 = vmax.f32 %v3768, 0.0
    %v3785 = vmax.f32 %v3769, 0.0
    %v3786 = vmax.f32 %v3770, 0.0
    %v3787 = vmax.f32 %v3771, 0.0
    %v3788 = vpack.c.bf16 %v3773, %v3772
    %v3789 = vpack.c.bf16 %v3775, %v3774
    %v3790 = vpack.c.bf16 %v3777, %v3776
    %v3791 = vpack.c.bf16 %v3779, %v3778
    %v3792 = vpack.c.bf16 %v3781, %v3780
    %v3793 = vpack.c.bf16 %v3783, %v3782
    %v3794 = vpack.c.bf16 %v3785, %v3784
    %v3795 = vpack.c.bf16 %v3787, %v3786
    %3804 = vrot.lane.b32.xlu0 %v3788, 1
    %v3805 = vpop.permute.xlu0 %3804
    %3806 = vrot.lane.b32.xlu0 %v3789, 1
    %v3807 = vpop.permute.xlu0 %3806
    %3808 = vrot.lane.b32.xlu0 %v3790, 1
    %v3809 = vpop.permute.xlu0 %3808
    %3810 = vrot.lane.b32.xlu0 %v3791, 1
    %v3811 = vpop.permute.xlu0 %3810
    %3812 = vrot.lane.b32.xlu0 %v3792, 1
    %v3813 = vpop.permute.xlu0 %3812
    %3814 = vrot.lane.b32.xlu0 %v3793, 1
    %v3815 = vpop.permute.xlu0 %3814
    %3816 = vrot.lane.b32.xlu0 %v3794, 1
    %v3817 = vpop.permute.xlu0 %3816
    %3818 = vrot.lane.b32.xlu0 %v3795, 1
    %v3819 = vpop.permute.xlu0 %3818
    %v3821 = vsel %vm78, 0, %v3805
    %v3823 = vsel %vm78, 0, %v3807
    %v3825 = vsel %vm78, 0, %v3809
    %v3827 = vsel %vm78, 0, %v3811
    %v3829 = vsel %vm78, 0, %v3813
    %v3831 = vsel %vm78, 0, %v3815
    %v3833 = vsel %vm78, 0, %v3817
    %v3835 = vsel %vm78, 0, %v3819
    %v3836 = vsel %vm84, %v3821, 0
    %v3838 = vsel %vm84, %v3823, 0
    %v3840 = vsel %vm84, %v3825, 0
    %v3842 = vsel %vm84, %v3827, 0
    %v3844 = vsel %vm84, %v3829, 0
    %v3846 = vsel %vm84, %v3831, 0
    %v3848 = vsel %vm84, %v3833, 0
    %v3850 = vsel %vm84, %v3835, 0
    %v3852 = vsel %vm106, %v3836, 0
    %v3853 = vsel %vm106, %v3838, 0
    %v3854 = vsel %vm106, %v3840, 0
    %v3855 = vsel %vm106, %v3842, 0
    %v3856 = vsel %vm106, %v3844, 0
    %v3857 = vsel %vm106, %v3846, 0
    %v3858 = vsel %vm106, %v3848, 0
    %v3859 = vsel %vm106, %v3850, 0
    %s3860 = scalar_lea.vmem [#allocation2], 768
    %v3861 = vld [vmem:[%s3860] sm:$0xf]
    %v3862 = vld [vmem:[%s3860 + $0x4] sm:$0xf]
    %v3863 = vld [vmem:[%s3860 + $0x8] sm:$0xf]
    %v3864 = vld [vmem:[%s3860 + $0xc] sm:$0xf]
    %v3865 = vld [vmem:[%s3860 + $0x10] sm:$0xf]
    %v3866 = vld [vmem:[%s3860 + $0x14] sm:$0xf]
    %v3867 = vld [vmem:[%s3860 + $0x18] sm:$0xf]
    %v3868 = vld [vmem:[%s3860 + $0x1c] sm:$0xf]
    %v3869 = vld [vmem:[%s3860 + $0x20] sm:$0xf]
    %v3870 = vld [vmem:[%s3860 + $0x24] sm:$0xf]
    %v3871 = vld [vmem:[%s3860 + $0x28] sm:$0xf]
    %v3872 = vld [vmem:[%s3860 + $0x2c] sm:$0xf]
    %v3873 = vld [vmem:[%s3860 + $0x30] sm:$0xf]
    %v3874 = vld [vmem:[%s3860 + $0x34] sm:$0xf]
    %v3875 = vld [vmem:[%s3860 + $0x38] sm:$0xf]
    %v3876 = vld [vmem:[%s3860 + $0x3c] sm:$0xf]
    %s3877 = scalar_lea.vmem [#allocation2], 832
    %v3878 = vld [vmem:[%s3877] sm:$0xf]
    %v3879 = vld [vmem:[%s3877 + $0x4] sm:$0xf]
    %v3880 = vld [vmem:[%s3877 + $0x8] sm:$0xf]
    %v3881 = vld [vmem:[%s3877 + $0xc] sm:$0xf]
    %v3882 = vld [vmem:[%s3877 + $0x10] sm:$0xf]
    %v3883 = vld [vmem:[%s3877 + $0x14] sm:$0xf]
    %v3884 = vld [vmem:[%s3877 + $0x18] sm:$0xf]
    %v3885 = vld [vmem:[%s3877 + $0x1c] sm:$0xf]
    %v3886 = vld [vmem:[%s3877 + $0x20] sm:$0xf]
    %v3887 = vld [vmem:[%s3877 + $0x24] sm:$0xf]
    %v3888 = vld [vmem:[%s3877 + $0x28] sm:$0xf]
    %v3889 = vld [vmem:[%s3877 + $0x2c] sm:$0xf]
    %v3890 = vld [vmem:[%s3877 + $0x30] sm:$0xf]
    %v3891 = vld [vmem:[%s3877 + $0x34] sm:$0xf]
    %v3892 = vld [vmem:[%s3877 + $0x38] sm:$0xf]
    %v3893 = vld [vmem:[%s3877 + $0x3c] sm:$0xf]
    %v3910 = vunpack.c.l.b16 %v3878
    %v3911 = vunpack.c.l.b16 %v3879
    %v3912 = vunpack.c.l.b16 %v3880
    %v3913 = vunpack.c.l.b16 %v3881
    %v3914 = vunpack.c.l.b16 %v3882
    %v3915 = vunpack.c.l.b16 %v3883
    %v3916 = vunpack.c.l.b16 %v3884
    %v3917 = vunpack.c.l.b16 %v3885
    %v3918 = vunpack.c.l.b16 %v3886
    %v3919 = vunpack.c.l.b16 %v3887
    %v3920 = vunpack.c.l.b16 %v3888
    %v3921 = vunpack.c.l.b16 %v3889
    %v3922 = vunpack.c.l.b16 %v3890
    %v3923 = vunpack.c.l.b16 %v3891
    %v3924 = vunpack.c.l.b16 %v3892
    %v3925 = vunpack.c.l.b16 %v3893
    %v3926 = vpack.c.b16 %v3911, %v3910
    %v3927 = vpack.c.b16 %v3913, %v3912
    %v3928 = vpack.c.b16 %v3915, %v3914
    %v3929 = vpack.c.b16 %v3917, %v3916
    %v3930 = vpack.c.b16 %v3919, %v3918
    %v3931 = vpack.c.b16 %v3921, %v3920
    %v3932 = vpack.c.b16 %v3923, %v3922
    %v3933 = vpack.c.b16 %v3925, %v3924
    %3950 = vrot.lane.b32.xlu0 %v3836, 127
    %v3951 = vpop.permute.xlu0 %3950
    %3952 = vrot.lane.b32.xlu0 %v3838, 127
    %v3953 = vpop.permute.xlu0 %3952
    %3954 = vrot.lane.b32.xlu0 %v3840, 127
    %v3955 = vpop.permute.xlu0 %3954
    %3956 = vrot.lane.b32.xlu0 %v3842, 127
    %v3957 = vpop.permute.xlu0 %3956
    %3958 = vrot.lane.b32.xlu0 %v3844, 127
    %v3959 = vpop.permute.xlu0 %3958
    %3960 = vrot.lane.b32.xlu0 %v3846, 127
    %v3961 = vpop.permute.xlu0 %3960
    %3962 = vrot.lane.b32.xlu0 %v3848, 127
    %v3963 = vpop.permute.xlu0 %3962
    %3964 = vrot.lane.b32.xlu0 %v3850, 127
    %v3965 = vpop.permute.xlu0 %3964
    %3974 = vmatprep.subr.bf16.mxu0 0
    %3975 = vmatpush1.bf16.msra.mxu0 %v3951
    %3976 = vmatprep.subr.bf16.mxu0 0
    %3977 = vmatpush1.bf16.msra.mxu0 %v3953
    %3978 = vmatprep.subr.bf16.mxu0 0
    %3979 = vmatpush1.bf16.msra.mxu0 %v3955
    %3980 = vmatprep.subr.bf16.mxu0 0
    %3981 = vmatpush1.bf16.msra.mxu0 %v3957
    %3982 = vmatprep.subr.bf16.mxu0 0
    %3983 = vmatpush1.bf16.msra.mxu0 %v3959
    %3984 = vmatprep.subr.bf16.mxu0 0
    %3985 = vmatpush1.bf16.msra.mxu0 %v3961
    %3986 = vmatprep.subr.bf16.mxu0 0
    %3987 = vmatpush1.bf16.msra.mxu0 %v3963
    %3988 = vmatprep.subr.bf16.mxu0 0
    %3989 = vmatpush1.bf16.msra.mxu0 %v3965
    %3990 = vmatprep.subr.bf16.mxu0 0
    %3991 = vmatpush1.bf16.msra.mxu0 0
    %3992 = vmatprep.subr.bf16.mxu0 0
    %3993 = vmatpush1.bf16.msra.mxu0 0
    %3994 = vmatprep.subr.bf16.mxu0 0
    %3995 = vmatpush1.bf16.msra.mxu0 0
    %3996 = vmatprep.subr.bf16.mxu0 0
    %3997 = vmatpush1.bf16.msra.mxu0 0
    %3998 = vmatprep.subr.bf16.mxu0 0
    %3999 = vmatpush1.bf16.msra.mxu0 0
    %4000 = vmatprep.subr.bf16.mxu0 0
    %4001 = vmatpush1.bf16.msra.mxu0 0
    %4002 = vmatprep.subr.bf16.mxu0 0
    %4003 = vmatpush1.bf16.msra.mxu0 0
    %4004 = vmatprep.subr.bf16.mxu0 0
    %4005 = vmatpush1.bf16.msra.mxu0 0
    %4006 = vmatprep.mubr.bf16.mxu0 0
    %4007 = vmatmul.mubr.bf16.gmra.mrb[0].mxu0 %v3926
    %v4008 = vpop.f32.mrb[0].mxu0
    %v4009 = vadd.f32 0.0, %v4008
    %v4010 = vpop.f32.mrb[0].mxu0
    %v4011 = vpop.f32.mrb[0].mxu0
    %v4012 = vadd.f32 0.0, %v4011
    %v4013 = vpop.f32.mrb[0].mxu0
    %4014 = vmatprep.mubr.bf16.mxu0 0
    %4015 = vmatmul.mubr.bf16.gmra.mrb[0].mxu0 %v3927
    %v4016 = vpop.f32.mrb[0].mxu0
    %v4017 = vadd.f32 0.0, %v4016
    %v4018 = vpop.f32.mrb[0].mxu0
    %v4019 = vpop.f32.mrb[0].mxu0
    %v4020 = vadd.f32 0.0, %v4019
    %v4021 = vpop.f32.mrb[0].mxu0
    %4022 = vmatprep.mubr.bf16.mxu0 0
    %4023 = vmatmul.mubr.bf16.gmra.mrb[0].mxu0 %v3928
    %v4024 = vpop.f32.mrb[0].mxu0
    %v4025 = vadd.f32 0.0, %v4024
    %v4026 = vpop.f32.mrb[0].mxu0
    %v4027 = vpop.f32.mrb[0].mxu0
    %v4028 = vadd.f32 0.0, %v4027
    %v4029 = vpop.f32.mrb[0].mxu0
    %4030 = vmatprep.mubr.bf16.mxu0 0
    %4031 = vmatmul.mubr.bf16.gmra.mrb[0].mxu0 %v3929
    %v4032 = vpop.f32.mrb[0].mxu0
    %v4033 = vadd.f32 0.0, %v4032
    %v4034 = vpop.f32.mrb[0].mxu0
    %v4035 = vpop.f32.mrb[0].mxu0
    %v4036 = vadd.f32 0.0, %v4035
    %v4037 = vpop.f32.mrb[0].mxu0
    %4038 = vmatprep.mubr.bf16.mxu0 0
    %4039 = vmatmul.mubr.bf16.gmra.mrb[0].mxu0 %v3930
    %v4040 = vpop.f32.mrb[0].mxu0
    %v4041 = vadd.f32 0.0, %v4040
    %v4042 = vpop.f32.mrb[0].mxu0
    %v4043 = vpop.f32.mrb[0].mxu0
    %v4044 = vadd.f32 0.0, %v4043
    %v4045 = vpop.f32.mrb[0].mxu0
    %4046 = vmatprep.mubr.bf16.mxu0 0
    %4047 = vmatmul.mubr.bf16.gmra.mrb[0].mxu0 %v3931
    %v4048 = vpop.f32.mrb[0].mxu0
    %v4049 = vadd.f32 0.0, %v4048
    %v4050 = vpop.f32.mrb[0].mxu0
    %v4051 = vpop.f32.mrb[0].mxu0
    %v4052 = vadd.f32 0.0, %v4051
    %v4053 = vpop.f32.mrb[0].mxu0
    %4054 = vmatprep.mubr.bf16.mxu0 0
    %4055 = vmatmul.mubr.bf16.gmra.mrb[0].mxu0 %v3932
    %v4056 = vpop.f32.mrb[0].mxu0
    %v4057 = vadd.f32 0.0, %v4056
    %v4058 = vpop.f32.mrb[0].mxu0
    %v4059 = vpop.f32.mrb[0].mxu0
    %v4060 = vadd.f32 0.0, %v4059
    %v4061 = vpop.f32.mrb[0].mxu0
    %4062 = vmatprep.mubr.bf16.mxu0 0
    %4063 = vmatmul.mubr.bf16.gmra.mrb[0].mxu0 %v3933
    %v4064 = vpop.f32.mrb[0].mxu0
    %v4065 = vadd.f32 0.0, %v4064
    %v4066 = vpop.f32.mrb[0].mxu0
    %v4067 = vpop.f32.mrb[0].mxu0
    %v4068 = vadd.f32 0.0, %v4067
    %v4069 = vpop.f32.mrb[0].mxu0
    %4070 = vdwg.mxu0
    %v4087 = vunpack.c.l.b16 %v3861
    %v4088 = vunpack.c.l.b16 %v3862
    %v4089 = vunpack.c.l.b16 %v3863
    %v4090 = vunpack.c.l.b16 %v3864
    %v4091 = vunpack.c.l.b16 %v3865
    %v4092 = vunpack.c.l.b16 %v3866
    %v4093 = vunpack.c.l.b16 %v3867
    %v4094 = vunpack.c.l.b16 %v3868
    %v4095 = vunpack.c.l.b16 %v3869
    %v4096 = vunpack.c.l.b16 %v3870
    %v4097 = vunpack.c.l.b16 %v3871
    %v4098 = vunpack.c.l.b16 %v3872
    %v4099 = vunpack.c.l.b16 %v3873
    %v4100 = vunpack.c.l.b16 %v3874
    %v4101 = vunpack.c.l.b16 %v3875
    %v4102 = vunpack.c.l.b16 %v3876
    %v4103 = vpack.c.b16 %v4088, %v4087
    %v4104 = vpack.c.b16 %v4090, %v4089
    %v4105 = vpack.c.b16 %v4092, %v4091
    %v4106 = vpack.c.b16 %v4094, %v4093
    %v4107 = vpack.c.b16 %v4096, %v4095
    %v4108 = vpack.c.b16 %v4098, %v4097
    %v4109 = vpack.c.b16 %v4100, %v4099
    %v4110 = vpack.c.b16 %v4102, %v4101
    %4119 = vmatprep.subr.bf16.mxu0 0
    %4120 = vmatpush1.bf16.msra.mxu0 %v3852
    %4121 = vmatprep.subr.bf16.mxu0 0
    %4122 = vmatpush1.bf16.msra.mxu0 %v3853
    %4123 = vmatprep.subr.bf16.mxu0 0
    %4124 = vmatpush1.bf16.msra.mxu0 %v3854
    %4125 = vmatprep.subr.bf16.mxu0 0
    %4126 = vmatpush1.bf16.msra.mxu0 %v3855
    %4127 = vmatprep.subr.bf16.mxu0 0
    %4128 = vmatpush1.bf16.msra.mxu0 %v3856
    %4129 = vmatprep.subr.bf16.mxu0 0
    %4130 = vmatpush1.bf16.msra.mxu0 %v3857
    %4131 = vmatprep.subr.bf16.mxu0 0
    %4132 = vmatpush1.bf16.msra.mxu0 %v3858
    %4133 = vmatprep.subr.bf16.mxu0 0
    %4134 = vmatpush1.bf16.msra.mxu0 %v3859
    %4135 = vmatprep.subr.bf16.mxu0 0
    %4136 = vmatpush1.bf16.msra.mxu0 0
    %4137 = vmatprep.subr.bf16.mxu0 0
    %4138 = vmatpush1.bf16.msra.mxu0 0
    %4139 = vmatprep.subr.bf16.mxu0 0
    %4140 = vmatpush1.bf16.msra.mxu0 0
    %4141 = vmatprep.subr.bf16.mxu0 0
    %4142 = vmatpush1.bf16.msra.mxu0 0
    %4143 = vmatprep.subr.bf16.mxu0 0
    %4144 = vmatpush1.bf16.msra.mxu0 0
    %4145 = vmatprep.subr.bf16.mxu0 0
    %4146 = vmatpush1.bf16.msra.mxu0 0
    %4147 = vmatprep.subr.bf16.mxu0 0
    %4148 = vmatpush1.bf16.msra.mxu0 0
    %4149 = vmatprep.subr.bf16.mxu0 0
    %4150 = vmatpush1.bf16.msra.mxu0 0
    %4151 = vmatprep.mubr.bf16.mxu0 0
    %4152 = vmatmul.mubr.bf16.gmra.mrb[0].mxu0 %v4103
    %v4153 = vpop.f32.mrb[0].mxu0
    %v4154 = vadd.f32 %v4009, %v4153
    %v4155 = vpop.f32.mrb[0].mxu0
    %v4156 = vpop.f32.mrb[0].mxu0
    %v4157 = vadd.f32 %v4012, %v4156
    %v4158 = vpop.f32.mrb[0].mxu0
    %4159 = vmatprep.mubr.bf16.mxu0 0
    %4160 = vmatmul.mubr.bf16.gmra.mrb[0].mxu0 %v4104
    %v4161 = vpop.f32.mrb[0].mxu0
    %v4162 = vadd.f32 %v4017, %v4161
    %v4163 = vpop.f32.mrb[0].mxu0
    %v4164 = vpop.f32.mrb[0].mxu0
    %v4165 = vadd.f32 %v4020, %v4164
    %v4166 = vpop.f32.mrb[0].mxu0
    %4167 = vmatprep.mubr.bf16.mxu0 0
    %4168 = vmatmul.mubr.bf16.gmra.mrb[0].mxu0 %v4105
    %v4169 = vpop.f32.mrb[0].mxu0
    %v4170 = vadd.f32 %v4025, %v4169
    %v4171 = vpop.f32.mrb[0].mxu0
    %v4172 = vpop.f32.mrb[0].mxu0
    %v4173 = vadd.f32 %v4028, %v4172
    %v4174 = vpop.f32.mrb[0].mxu0
    %4175 = vmatprep.mubr.bf16.mxu0 0
    %4176 = vmatmul.mubr.bf16.gmra.mrb[0].mxu0 %v4106
    %v4177 = vpop.f32.mrb[0].mxu0
    %v4178 = vadd.f32 %v4033, %v4177
    %v4179 = vpop.f32.mrb[0].mxu0
    %v4180 = vpop.f32.mrb[0].mxu0
    %v4181 = vadd.f32 %v4036, %v4180
    %v4182 = vpop.f32.mrb[0].mxu0
    %4183 = vmatprep.mubr.bf16.mxu0 0
    %4184 = vmatmul.mubr.bf16.gmra.mrb[0].mxu0 %v4107
    %v4185 = vpop.f32.mrb[0].mxu0
    %v4186 = vadd.f32 %v4041, %v4185
    %v4187 = vpop.f32.mrb[0].mxu0
    %v4188 = vpop.f32.mrb[0].mxu0
    %v4189 = vadd.f32 %v4044, %v4188
    %v4190 = vpop.f32.mrb[0].mxu0
    %4191 = vmatprep.mubr.bf16.mxu0 0
    %4192 = vmatmul.mubr.bf16.gmra.mrb[0].mxu0 %v4108
    %v4193 = vpop.f32.mrb[0].mxu0
    %v4194 = vadd.f32 %v4049, %v4193
    %v4195 = vpop.f32.mrb[0].mxu0
    %v4196 = vpop.f32.mrb[0].mxu0
    %v4197 = vadd.f32 %v4052, %v4196
    %v4198 = vpop.f32.mrb[0].mxu0
    %4199 = vmatprep.mubr.bf16.mxu0 0
    %4200 = vmatmul.mubr.bf16.gmra.mrb[0].mxu0 %v4109
    %v4201 = vpop.f32.mrb[0].mxu0
    %v4202 = vadd.f32 %v4057, %v4201
    %v4203 = vpop.f32.mrb[0].mxu0
    %v4204 = vpop.f32.mrb[0].mxu0
    %v4205 = vadd.f32 %v4060, %v4204
    %v4206 = vpop.f32.mrb[0].mxu0
    %4207 = vmatprep.mubr.bf16.mxu0 0
    %4208 = vmatmul.mubr.bf16.gmra.mrb[0].mxu0 %v4110
    %v4209 = vpop.f32.mrb[0].mxu0
    %v4210 = vadd.f32 %v4065, %v4209
    %v4211 = vpop.f32.mrb[0].mxu0
    %v4212 = vpop.f32.mrb[0].mxu0
    %v4213 = vadd.f32 %v4068, %v4212
    %v4214 = vpop.f32.mrb[0].mxu0
    %4215 = vdwg.mxu0
    %v4216 = vsel %vm448, %v3836, 0
    %v4217 = vsel %vm448, %v3838, 0
    %v4218 = vsel %vm448, %v3840, 0
    %v4219 = vsel %vm448, %v3842, 0
    %v4220 = vsel %vm448, %v3844, 0
    %v4221 = vsel %vm448, %v3846, 0
    %v4222 = vsel %vm448, %v3848, 0
    %v4223 = vsel %vm448, %v3850, 0
    %s4224 = scalar_lea.vmem [#allocation2], 896
    %v4225 = vld [vmem:[%s4224] sm:$0xf]
    %v4226 = vld [vmem:[%s4224 + $0x4] sm:$0xf]
    %v4227 = vld [vmem:[%s4224 + $0x8] sm:$0xf]
    %v4228 = vld [vmem:[%s4224 + $0xc] sm:$0xf]
    %v4229 = vld [vmem:[%s4224 + $0x10] sm:$0xf]
    %v4230 = vld [vmem:[%s4224 + $0x14] sm:$0xf]
    %v4231 = vld [vmem:[%s4224 + $0x18] sm:$0xf]
    %v4232 = vld [vmem:[%s4224 + $0x1c] sm:$0xf]
    %v4233 = vld [vmem:[%s4224 + $0x20] sm:$0xf]
    %v4234 = vld [vmem:[%s4224 + $0x24] sm:$0xf]
    %v4235 = vld [vmem:[%s4224 + $0x28] sm:$0xf]
    %v4236 = vld [vmem:[%s4224 + $0x2c] sm:$0xf]
    %v4237 = vld [vmem:[%s4224 + $0x30] sm:$0xf]
    %v4238 = vld [vmem:[%s4224 + $0x34] sm:$0xf]
    %v4239 = vld [vmem:[%s4224 + $0x38] sm:$0xf]
    %v4240 = vld [vmem:[%s4224 + $0x3c] sm:$0xf]
    %v4257 = vunpack.c.l.b16 %v4225
    %v4258 = vunpack.c.l.b16 %v4226
    %v4259 = vunpack.c.l.b16 %v4227
    %v4260 = vunpack.c.l.b16 %v4228
    %v4261 = vunpack.c.l.b16 %v4229
    %v4262 = vunpack.c.l.b16 %v4230
    %v4263 = vunpack.c.l.b16 %v4231
    %v4264 = vunpack.c.l.b16 %v4232
    %v4265 = vunpack.c.l.b16 %v4233
    %v4266 = vunpack.c.l.b16 %v4234
    %v4267 = vunpack.c.l.b16 %v4235
    %v4268 = vunpack.c.l.b16 %v4236
    %v4269 = vunpack.c.l.b16 %v4237
    %v4270 = vunpack.c.l.b16 %v4238
    %v4271 = vunpack.c.l.b16 %v4239
    %v4272 = vunpack.c.l.b16 %v4240
    %v4273 = vpack.c.b16 %v4258, %v4257
    %v4274 = vpack.c.b16 %v4260, %v4259
    %v4275 = vpack.c.b16 %v4262, %v4261
    %v4276 = vpack.c.b16 %v4264, %v4263
    %v4277 = vpack.c.b16 %v4266, %v4265
    %v4278 = vpack.c.b16 %v4268, %v4267
    %v4279 = vpack.c.b16 %v4270, %v4269
    %v4280 = vpack.c.b16 %v4272, %v4271
    %4297 = vrot.lane.b32.xlu0 %v4216, 126
    %v4298 = vpop.permute.xlu0 %4297
    %4299 = vrot.lane.b32.xlu0 %v4217, 126
    %v4300 = vpop.permute.xlu0 %4299
    %4301 = vrot.lane.b32.xlu0 %v4218, 126
    %v4302 = vpop.permute.xlu0 %4301
    %4303 = vrot.lane.b32.xlu0 %v4219, 126
    %v4304 = vpop.permute.xlu0 %4303
    %4305 = vrot.lane.b32.xlu0 %v4220, 126
    %v4306 = vpop.permute.xlu0 %4305
    %4307 = vrot.lane.b32.xlu0 %v4221, 126
    %v4308 = vpop.permute.xlu0 %4307
    %4309 = vrot.lane.b32.xlu0 %v4222, 126
    %v4310 = vpop.permute.xlu0 %4309
    %4311 = vrot.lane.b32.xlu0 %v4223, 126
    %v4312 = vpop.permute.xlu0 %4311
    %4321 = vmatprep.subr.bf16.mxu0 0
    %4322 = vmatpush1.bf16.msra.mxu0 %v4298
    %4323 = vmatprep.subr.bf16.mxu0 0
    %4324 = vmatpush1.bf16.msra.mxu0 %v4300
    %4325 = vmatprep.subr.bf16.mxu0 0
    %4326 = vmatpush1.bf16.msra.mxu0 %v4302
    %4327 = vmatprep.subr.bf16.mxu0 0
    %4328 = vmatpush1.bf16.msra.mxu0 %v4304
    %4329 = vmatprep.subr.bf16.mxu0 0
    %4330 = vmatpush1.bf16.msra.mxu0 %v4306
    %4331 = vmatprep.subr.bf16.mxu0 0
    %4332 = vmatpush1.bf16.msra.mxu0 %v4308
    %4333 = vmatprep.subr.bf16.mxu0 0
    %4334 = vmatpush1.bf16.msra.mxu0 %v4310
    %4335 = vmatprep.subr.bf16.mxu0 0
    %4336 = vmatpush1.bf16.msra.mxu0 %v4312
    %4337 = vmatprep.subr.bf16.mxu0 0
    %4338 = vmatpush1.bf16.msra.mxu0 0
    %4339 = vmatprep.subr.bf16.mxu0 0
    %4340 = vmatpush1.bf16.msra.mxu0 0
    %4341 = vmatprep.subr.bf16.mxu0 0
    %4342 = vmatpush1.bf16.msra.mxu0 0
    %4343 = vmatprep.subr.bf16.mxu0 0
    %4344 = vmatpush1.bf16.msra.mxu0 0
    %4345 = vmatprep.subr.bf16.mxu0 0
    %4346 = vmatpush1.bf16.msra.mxu0 0
    %4347 = vmatprep.subr.bf16.mxu0 0
    %4348 = vmatpush1.bf16.msra.mxu0 0
    %4349 = vmatprep.subr.bf16.mxu0 0
    %4350 = vmatpush1.bf16.msra.mxu0 0
    %4351 = vmatprep.subr.bf16.mxu0 0
    %4352 = vmatpush1.bf16.msra.mxu0 0
    %4353 = vmatprep.mubr.bf16.mxu0 0
    %4354 = vmatmul.mubr.bf16.gmra.mrb[0].mxu0 %v4273
    %v4355 = vpop.f32.mrb[0].mxu0
    %v4356 = vadd.f32 0.0, %v4355
    %v4357 = vpop.f32.mrb[0].mxu0
    %v4358 = vpop.f32.mrb[0].mxu0
    %v4359 = vadd.f32 0.0, %v4358
    %v4360 = vpop.f32.mrb[0].mxu0
    %4361 = vmatprep.mubr.bf16.mxu0 0
    %4362 = vmatmul.mubr.bf16.gmra.mrb[0].mxu0 %v4274
    %v4363 = vpop.f32.mrb[0].mxu0
    %v4364 = vadd.f32 0.0, %v4363
    %v4365 = vpop.f32.mrb[0].mxu0
    %v4366 = vpop.f32.mrb[0].mxu0
    %v4367 = vadd.f32 0.0, %v4366
    %v4368 = vpop.f32.mrb[0].mxu0
    %4369 = vmatprep.mubr.bf16.mxu0 0
    %4370 = vmatmul.mubr.bf16.gmra.mrb[0].mxu0 %v4275
    %v4371 = vpop.f32.mrb[0].mxu0
    %v4372 = vadd.f32 0.0, %v4371
    %v4373 = vpop.f32.mrb[0].mxu0
    %v4374 = vpop.f32.mrb[0].mxu0
    %v4375 = vadd.f32 0.0, %v4374
    %v4376 = vpop.f32.mrb[0].mxu0
    %4377 = vmatprep.mubr.bf16.mxu0 0
    %4378 = vmatmul.mubr.bf16.gmra.mrb[0].mxu0 %v4276
    %v4379 = vpop.f32.mrb[0].mxu0
    %v4380 = vadd.f32 0.0, %v4379
    %v4381 = vpop.f32.mrb[0].mxu0
    %v4382 = vpop.f32.mrb[0].mxu0
    %v4383 = vadd.f32 0.0, %v4382
    %v4384 = vpop.f32.mrb[0].mxu0
    %4385 = vmatprep.mubr.bf16.mxu0 0
    %4386 = vmatmul.mubr.bf16.gmra.mrb[0].mxu0 %v4277
    %v4387 = vpop.f32.mrb[0].mxu0
    %v4388 = vadd.f32 0.0, %v4387
    %v4389 = vpop.f32.mrb[0].mxu0
    %v4390 = vpop.f32.mrb[0].mxu0
    %v4391 = vadd.f32 0.0, %v4390
    %v4392 = vpop.f32.mrb[0].mxu0
    %4393 = vmatprep.mubr.bf16.mxu0 0
    %4394 = vmatmul.mubr.bf16.gmra.mrb[0].mxu0 %v4278
    %v4395 = vpop.f32.mrb[0].mxu0
    %v4396 = vadd.f32 0.0, %v4395
    %v4397 = vpop.f32.mrb[0].mxu0
    %v4398 = vpop.f32.mrb[0].mxu0
    %v4399 = vadd.f32 0.0, %v4398
    %v4400 = vpop.f32.mrb[0].mxu0
    %4401 = vmatprep.mubr.bf16.mxu0 0
    %4402 = vmatmul.mubr.bf16.gmra.mrb[0].mxu0 %v4279
    %v4403 = vpop.f32.mrb[0].mxu0
    %v4404 = vadd.f32 0.0, %v4403
    %v4405 = vpop.f32.mrb[0].mxu0
    %v4406 = vpop.f32.mrb[0].mxu0
    %v4407 = vadd.f32 0.0, %v4406
    %v4408 = vpop.f32.mrb[0].mxu0
    %4409 = vmatprep.mubr.bf16.mxu0 0
    %4410 = vmatmul.mubr.bf16.gmra.mrb[0].mxu0 %v4280
    %v4411 = vpop.f32.mrb[0].mxu0
    %v4412 = vadd.f32 0.0, %v4411
    %v4413 = vpop.f32.mrb[0].mxu0
    %v4414 = vpop.f32.mrb[0].mxu0
    %v4415 = vadd.f32 0.0, %v4414
    %v4416 = vpop.f32.mrb[0].mxu0
    %4417 = vdwg.mxu0
    %v4418 = vadd.f32 %v4154, %v4356
    %v4419 = vadd.f32 %v4157, %v4359
    %v4420 = vadd.f32 %v4162, %v4364
    %v4421 = vadd.f32 %v4165, %v4367
    %v4422 = vadd.f32 %v4170, %v4372
    %v4423 = vadd.f32 %v4173, %v4375
    %v4424 = vadd.f32 %v4178, %v4380
    %v4425 = vadd.f32 %v4181, %v4383
    %v4426 = vadd.f32 %v4186, %v4388
    %v4427 = vadd.f32 %v4189, %v4391
    %v4428 = vadd.f32 %v4194, %v4396
    %v4429 = vadd.f32 %v4197, %v4399
    %v4430 = vadd.f32 %v4202, %v4404
    %v4431 = vadd.f32 %v4205, %v4407
    %v4432 = vadd.f32 %v4210, %v4412
    %v4433 = vadd.f32 %v4213, %v4415
    %4434 = vset.pattern.permute.xlu0 4
    %4435 = vperm.xlu0 %4434, %v37
    %v4436 = vpop.permute.xlu0 %4435
    %4438 = vset.pattern.permute.xlu0 4
    %4439 = vperm.xlu0 %4438, %v38
    %v4440 = vpop.permute.xlu0 %4439
    %4442 = vset.pattern.permute.xlu0 4
    %4443 = vperm.xlu0 %4442, %v39
    %v4444 = vpop.permute.xlu0 %4443
    %4446 = vset.pattern.permute.xlu0 4
    %4447 = vperm.xlu0 %4446, %v40
    %v4448 = vpop.permute.xlu0 %4447
    %4450 = vset.pattern.permute.xlu0 4
    %4451 = vperm.xlu0 %4450, %v41
    %v4452 = vpop.permute.xlu0 %4451
    %4454 = vset.pattern.permute.xlu0 4
    %4455 = vperm.xlu0 %4454, %v42
    %v4456 = vpop.permute.xlu0 %4455
    %4458 = vset.pattern.permute.xlu0 4
    %4459 = vperm.xlu0 %4458, %v43
    %v4460 = vpop.permute.xlu0 %4459
    %4462 = vset.pattern.permute.xlu0 4
    %4463 = vperm.xlu0 %4462, %v44
    %v4464 = vpop.permute.xlu0 %4463
    %4466 = vset.pattern.permute.xlu0 4
    %4467 = vperm.xlu0 %4466, %v45
    %v4468 = vpop.permute.xlu0 %4467
    %4470 = vset.pattern.permute.xlu0 4
    %4471 = vperm.xlu0 %4470, %v46
    %v4472 = vpop.permute.xlu0 %4471
    %4474 = vset.pattern.permute.xlu0 4
    %4475 = vperm.xlu0 %4474, %v47
    %v4476 = vpop.permute.xlu0 %4475
    %4478 = vset.pattern.permute.xlu0 4
    %4479 = vperm.xlu0 %4478, %v48
    %v4480 = vpop.permute.xlu0 %4479
    %4482 = vset.pattern.permute.xlu0 4
    %4483 = vperm.xlu0 %4482, %v49
    %v4484 = vpop.permute.xlu0 %4483
    %4486 = vset.pattern.permute.xlu0 4
    %4487 = vperm.xlu0 %4486, %v50
    %v4488 = vpop.permute.xlu0 %4487
    %4490 = vset.pattern.permute.xlu0 4
    %4491 = vperm.xlu0 %4490, %v51
    %v4492 = vpop.permute.xlu0 %4491
    %4494 = vset.pattern.permute.xlu0 4
    %4495 = vperm.xlu0 %4494, %v52
    %v4496 = vpop.permute.xlu0 %4495
    %v4498 = vadd.f32 %v4418, %v4436
    %v4499 = vadd.f32 %v4419, %v4440
    %v4500 = vadd.f32 %v4420, %v4444
    %v4501 = vadd.f32 %v4421, %v4448
    %v4502 = vadd.f32 %v4422, %v4452
    %v4503 = vadd.f32 %v4423, %v4456
    %v4504 = vadd.f32 %v4424, %v4460
    %v4505 = vadd.f32 %v4425, %v4464
    %v4506 = vadd.f32 %v4426, %v4468
    %v4507 = vadd.f32 %v4427, %v4472
    %v4508 = vadd.f32 %v4428, %v4476
    %v4509 = vadd.f32 %v4429, %v4480
    %v4510 = vadd.f32 %v4430, %v4484
    %v4511 = vadd.f32 %v4431, %v4488
    %v4512 = vadd.f32 %v4432, %v4492
    %v4513 = vadd.f32 %v4433, %v4496
    %vm4514 = vcmask 261120
    %4515 = vst.msk [vmem:[%s5] sm:$0xff] %vm4514, %v4498
    %4516 = vst.msk [vmem:[%s5 + $0x8] sm:$0xff] %vm4514, %v4499
    %4517 = vst.msk [vmem:[%s5 + $0x10] sm:$0xff] %vm4514, %v4500
    %4518 = vst.msk [vmem:[%s5 + $0x18] sm:$0xff] %vm4514, %v4501
    %4519 = vst.msk [vmem:[%s5 + $0x20] sm:$0xff] %vm4514, %v4502
    %4520 = vst.msk [vmem:[%s5 + $0x28] sm:$0xff] %vm4514, %v4503
    %4521 = vst.msk [vmem:[%s5 + $0x30] sm:$0xff] %vm4514, %v4504
    %4522 = vst.msk [vmem:[%s5 + $0x38] sm:$0xff] %vm4514, %v4505
    %4523 = vst.msk [vmem:[%s5 + $0x40] sm:$0xff] %vm4514, %v4506
    %4524 = vst.msk [vmem:[%s5 + $0x48] sm:$0xff] %vm4514, %v4507
    %4525 = vst.msk [vmem:[%s5 + $0x50] sm:$0xff] %vm4514, %v4508
    %4526 = vst.msk [vmem:[%s5 + $0x58] sm:$0xff] %vm4514, %v4509
    %4527 = vst.msk [vmem:[%s5 + $0x60] sm:$0xff] %vm4514, %v4510
    %4528 = vst.msk [vmem:[%s5 + $0x68] sm:$0xff] %vm4514, %v4511
    %4529 = vst.msk [vmem:[%s5 + $0x70] sm:$0xff] %vm4514, %v4512
    %4530 = vst.msk [vmem:[%s5 + $0x78] sm:$0xff] %vm4514, %v4513
    // Predicated region
    $region26: #{homi_decoder_forward.1} parent=1 // pred_check
      _
    $region27: #{homi_decoder_forward.1} parent=1 // pred_check_branch
      %4532 = sbr.rel (0) target = $region29
    $region28: #{homi_decoder_forward.1} parent=1 // pred_region
      _
    $region29: #{homi_decoder_forward.1} parent=1 // pred_fallthru
      _
    // Predicated region
    $region30: #{homi_decoder_forward.1} parent=1 // pred_check
      _
    $region31: #{homi_decoder_forward.1} parent=1 // pred_check_branch
      %4534 = sbr.rel (0) target = $region33
    $region32: #{homi_decoder_forward.1} parent=1 // pred_region
      _
    $region33: #{homi_decoder_forward.1} parent=1 // pred_fallthru
      _
    %4535 = vsyncpa [#allocation3], 1

</llo_original>
